<compile_context>
chip_gen: v7x
topology: tpu7x:2x2x1
jax: 0.10.0
libtpu: 0.0.40
codegen_flags: <defaults>
</compile_context>

<pallas_src>
import functools

import jax
import jax.numpy as jnp
from jax import lax
from jax.experimental import pallas as pl
from jax.experimental.pallas import tpu as pltpu

# Block configuration implemented here (the module's test config):
# ResNetBlock(in_channels=4, out_channels=8, kernel_size=3, stride=2, padding=1)
KS = 3          # kernel_size
STRIDE = 2      # conv1 / shortcut stride
PAD = 1         # conv padding
LANES = 128     # TPU lane width; output channels are zero-padded to this
SUBLANES = 8
M_TARGET = 256  # MXU rows to feed per grid step (v6e/v7x systolic depth)
W_OFF = 8       # sublane-aligned start of the out1 interior in the scratch


def _round_up(x, m):
    return (x + m - 1) // m * m


# ----------------------------- Pallas kernel ---------------------------------
def _resnet_block_kernel(bt, ho, wo, cin_p, xph_ref, w1sc_ref, b1sc_ref, w2_ref,
                         o_ref, out1_scr, k1_scr, k2_scr, sc_scr):
    """Entire ResNetBlock for bt images; all intermediates stay in VMEM."""
    m = bt * ho * wo
    cp = o_ref.shape[-1]  # cout padded to 128 lanes

    # Zero the out1 scratch so conv2's halo reads see zeros.  The interior is
    # fully overwritten below; see header TODO about halo-only zeroing.
    out1_scr[...] = jnp.zeros(out1_scr.shape, out1_scr.dtype)

    # ---- stage conv1's 9 taps along K (stride-2 phase decomposition) --------
    # Tap (ki,kj) of the padded 3x3/s2 conv == phase (ki%2,kj%2) window at
    # offset (ki//2,kj//2): contiguous slices, no strided loads.  One bf16
    # cast per tap of distinct data; assembled slab feeds a single matmul.
    for ki in range(KS):
        for kj in range(KS):
            ph = 2 * (ki % 2) + (kj % 2)
            t = ki * KS + kj
            slab = xph_ref[ph, :, pl.ds(ki // 2, ho), pl.ds(kj // 2, wo), :]
            k1_scr[:, pl.ds(t * cin_p, cin_p)] = (
                slab.reshape(m, cin_p).astype(jnp.bfloat16))

    # ---- conv1 (3x3/s2) + 1x1/s2 shortcut as ONE K=9*cin_p matmul -----------
    # Output lanes [0,cp) = bn1-folded conv1; lanes [cp,2cp) = bnsc-folded
    # shortcut (weights only in the centre-tap rows).  BN shifts (incl. bn2's
    # shift for the shortcut bank) are added here in f32.
    acc = jnp.dot(k1_scr[...], w1sc_ref[...],
                  preferred_element_type=jnp.float32) + b1sc_ref[...]
    sc_scr[...] = acc[:, cp:]             # shortcut + bnsc shift + bn2 shift
    out1 = jnp.maximum(acc[:, :cp], 0.0)  # relu(bn1(conv1(x)))

    # ---- out1 -> haloed bf16 scratch (single cast, sublane-aligned store) ---
    out1_scr[:, pl.ds(PAD, ho), pl.ds(W_OFF, wo), :] = (
        out1.astype(jnp.bfloat16).reshape(bt, ho, wo, cp))

    # ---- stage conv2's 9 taps along K (full-lane bf16 stores, no casts) -----
    for ki in range(KS):
        for kj in range(KS):
            t = ki * KS + kj
            slab = out1_scr[:, pl.ds(ki, ho), pl.ds(W_OFF - PAD + kj, wo), :]
            k2_scr[:, pl.ds(t * cp, cp)] = slab.reshape(m, cp)

    # ---- conv2 (3x3/s1) as ONE K=9*cp matmul + shortcut + relu --------------
    acc2 = jnp.dot(k2_scr[...], w2_ref[...], preferred_element_type=jnp.float32)
    y = jnp.maximum(acc2 + sc_scr[...], 0.0)
    o_ref[...] = y.reshape(bt, ho, wo, cp).astype(o_ref.dtype)


# ----------------------------- parameter prep --------------------------------
def _fold_bn(w_oihw, bn, eps=1e-5):
    """Fold eval-mode BatchNorm into the conv weight; return (w*scale, shift)."""
    gamma, beta, mean, var = bn
    scale = gamma / jnp.sqrt(var + eps)
    shift = beta - mean * scale
    return w_oihw * scale[:, None, None, None], shift


def _prep_params(params, cin_p, cout_p, eps=1e-5):
    """Fold BN, fold taps into K, fuse the shortcut bank, pad, cast to bf16."""
    cout, cin = params["w1"].shape[:2]

    w1, b1 = _fold_bn(params["w1"], params["bn1"], eps)
    w2, b2 = _fold_bn(params["w2"], params["bn2"], eps)
    wsc, bsc = _fold_bn(params["wsc"], params["bnsc"], eps)

    # conv1: (cout, cin, 3, 3) -> rows = tap-major K = 9*cin_p, cols = cout_p.
    w1_t = jnp.transpose(w1, (2, 3, 1, 0)).reshape(KS * KS, cin, cout)
    w1_t = jnp.pad(w1_t, ((0, 0), (0, cin_p - cin), (0, cout_p - cout)))
    w1_t = w1_t.reshape(KS * KS * cin_p, cout_p)
    # 1x1/stride-2 shortcut lives in the centre-tap rows of a 2nd lane bank.
    wsc_full = jnp.zeros((KS * KS, cin_p, cout_p), w1.dtype)
    wsc_full = wsc_full.at[KS * PAD + PAD, :cin, :cout].set(wsc[:, :, 0, 0].T)
    wsc_full = wsc_full.reshape(KS * KS * cin_p, cout_p)
    w1sc = jnp.concatenate([w1_t, wsc_full], axis=-1)          # (9*cin_p, 2*cout_p)

    # conv2: (cout, cout, 3, 3) -> (9*cout_p, cout_p), tap-major rows.
    w2_t = jnp.transpose(w2, (2, 3, 1, 0)).reshape(KS * KS, cout, cout)
    w2_t = jnp.pad(w2_t, ((0, 0), (0, cout_p - cout), (0, cout_p - cout)))
    w2_t = w2_t.reshape(KS * KS * cout_p, cout_p)

    pad_c = lambda s: jnp.pad(s, (0, cout_p - cout))
    # lanes [0,cout_p): bn1 shift; lanes [cout_p,2*cout_p): bnsc + bn2 shifts.
    b1sc = jnp.concatenate([pad_c(b1), pad_c(bsc + b2)]).reshape(1, 2 * cout_p)

    return (w1sc.astype(jnp.bfloat16), b1sc.astype(jnp.float32),
            w2_t.astype(jnp.bfloat16))


# ----------------------------- forward wrapper -------------------------------
def resnet_block_forward(x_nchw, params):
    """Pallas-backed eval-mode forward of ResNetBlock (k=3, stride=2, pad=1)."""
    n, cin, h, w = x_nchw.shape
    cout = params["w1"].shape[0]
    ho = (h + 2 * PAD - KS) // STRIDE + 1
    wo = (w + 2 * PAD - KS) // STRIDE + 1
    hp, wp = h + 2 * PAD, w + 2 * PAD
    assert hp % STRIDE == 0 and wp % STRIDE == 0, "phase relayout needs even padded size"

    cin_p = _round_up(cin, SUBLANES)
    cout_p = _round_up(cout, LANES)

    # Batch-fold: feed the MXU >= M_TARGET rows per grid step when the batch
    # allows it (per-step M = b_tile*ho*wo), amortizing per-step overhead.
    b_tile = max(1, min(n, M_TARGET // (ho * wo)))
    while n % b_tile:
        b_tile -= 1

    # NCHW -> NHWC, pad channels/spatial, stride-2 phase relayout so every
    # conv1 tap is a contiguous slice in-kernel (single fused producer pass;
    # no HBM im2col).  TODO(synk): on v5e, read the padded NHWC directly with
    # strided in-kernel slices to skip this relayout pass entirely.
    x = jnp.transpose(x_nchw, (0, 2, 3, 1)).astype(jnp.float32)
    x = jnp.pad(x, ((0, 0), (PAD, PAD), (PAD, PAD), (0, cin_p - cin)))
    x_ph = x.reshape(n, hp // 2, 2, wp // 2, 2, cin_p)
    x_ph = x_ph.transpose(2, 4, 0, 1, 3, 5).reshape(4, n, hp // 2, wp // 2, cin_p)

    w1sc_t, b1sc_t, w2_t = _prep_params(params, cin_p, cout_p)

    m = b_tile * ho * wo
    w_pad = _round_up(W_OFF + wo + PAD, SUBLANES)   # aligned out1 scratch width
    kernel = functools.partial(_resnet_block_kernel, b_tile, ho, wo, cin_p)
    out = pl.pallas_call(
        kernel,
        out_shape=jax.ShapeDtypeStruct((n, ho, wo, cout_p), jnp.float32),
        grid=(n // b_tile,),
        in_specs=[
            pl.BlockSpec((4, b_tile, hp // 2, wp // 2, cin_p),
                         lambda b: (0, b, 0, 0, 0)),
            # Constant weight blocks (see header TODO re single-buffering).
            pl.BlockSpec(w1sc_t.shape, lambda b: (0, 0)),
            pl.BlockSpec(b1sc_t.shape, lambda b: (0, 0)),
            pl.BlockSpec(w2_t.shape, lambda b: (0, 0)),
        ],
        out_specs=pl.BlockSpec((b_tile, ho, wo, cout_p), lambda b: (b, 0, 0, 0)),
        scratch_shapes=[
            pltpu.VMEM((b_tile, ho + 2 * PAD, w_pad, cout_p), jnp.bfloat16),  # out1
            pltpu.VMEM((m, KS * KS * cin_p), jnp.bfloat16),                   # conv1 K slab
            pltpu.VMEM((m, KS * KS * cout_p), jnp.bfloat16),                  # conv2 K slab
            pltpu.VMEM((m, cout_p), jnp.float32),                             # shortcut
        ],
        compiler_params=pltpu.CompilerParams(
            dimension_semantics=("parallel",),  # image groups across cores
        ),
    )(x_ph, w1sc_t, b1sc_t, w2_t)

    # TODO(synk): for v5e HBM, emit bf16 NHWC and keep it downstream instead
    # of f32 + channel slice + transpose back to NCHW.
    out = out[..., :cout]
    return jnp.transpose(out, (0, 3, 1, 2))  # NHWC -> NCHW


# ----------------------------- references ------------------------------------
def _conv_nchw(x, w, stride, padding):
    return lax.conv_general_dilated(
        x, w, (stride, stride), [(padding, padding), (padding, padding)],
        dimension_numbers=("NCHW", "OIHW", "NCHW"),
        preferred_element_type=jnp.float32)


def _bn_eval(y, bn, eps=1e-5):
    gamma, beta, mean, var = bn
    sh = (1, -1, 1, 1)
    return ((y - mean.reshape(sh)) / jnp.sqrt(var.reshape(sh) + eps)
            * gamma.reshape(sh) + beta.reshape(sh))


def reference_forward_f32(x, params):
    """Exact eval-mode module math in f32."""
    h = jnp.maximum(_bn_eval(_conv_nchw(x, params["w1"], STRIDE, PAD), params["bn1"]), 0.0)
    h2 = _bn_eval(_conv_nchw(h, params["w2"], 1, PAD), params["bn2"])
    sc = _bn_eval(_conv_nchw(x, params["wsc"], STRIDE, 0), params["bnsc"])
    return jnp.maximum(h2 + sc, 0.0)


def reference_forward_bf16(x, params, eps=1e-5):
    """Same math with the kernel's bf16 quantization points (tight check)."""
    q = lambda a: a.astype(jnp.bfloat16).astype(jnp.float32)
    sh = (1, -1, 1, 1)
    w1, b1 = _fold_bn(params["w1"], params["bn1"], eps)
    w2, b2 = _fold_bn(params["w2"], params["bn2"], eps)
    wsc, bsc = _fold_bn(params["wsc"], params["bnsc"], eps)
    xq = q(x)
    h = jnp.maximum(_conv_nchw(xq, q(w1), STRIDE, PAD) + b1.reshape(sh), 0.0)
    h2 = _conv_nchw(q(h), q(w2), 1, PAD) + b2.reshape(sh)
    sc = _conv_nchw(xq, q(wsc), STRIDE, 0) + bsc.reshape(sh)
    return jnp.maximum(h2 + sc, 0.0)


# ----------------------------- main -------------------------------------------
if __name__ == "__main__":
    # ResNetBlock(in_channels=4, out_channels=8, kernel_size=3, stride=2, padding=1)
    N, CIN, H, W = 2, 4, 16, 16
    COUT = 8

    key = jax.random.PRNGKey(0)
    keys = jax.random.split(key, 12)
    params = {
        "w1": 0.1 * jax.random.normal(keys[0], (COUT, CIN, 3, 3), jnp.float32),
        "w2": 0.1 * jax.random.normal(keys[1], (COUT, COUT, 3, 3), jnp.float32),
        "wsc": 0.1 * jax.random.normal(keys[2], (COUT, CIN, 1, 1), jnp.float32),
        # BN params: (gamma, beta, running_mean, running_var), eval mode
        "bn1": (1.0 + 0.1 * jax.random.normal(keys[3], (COUT,), jnp.float32),
                0.1 * jax.random.normal(keys[4], (COUT,), jnp.float32),
                0.1 * jax.random.normal(keys[5], (COUT,), jnp.float32),
                0.5 + jax.random.uniform(keys[6], (COUT,), jnp.float32)),
        "bn2": (1.0 + 0.1 * jax.random.normal(keys[7], (COUT,), jnp.float32),
                0.1 * jax.random.normal(keys[8], (COUT,), jnp.float32),
                0.1 * jax.random.normal(keys[9], (COUT,), jnp.float32),
                0.5 + jax.random.uniform(keys[10], (COUT,), jnp.float32)),
        "bnsc": (jnp.ones((COUT,), jnp.float32),
                 jnp.zeros((COUT,), jnp.float32),
                 jnp.zeros((COUT,), jnp.float32),
                 jnp.ones((COUT,), jnp.float32)),
    }
    x = jax.random.normal(keys[11], (N, CIN, H, W), jnp.float32)

    out = jax.block_until_ready(jax.jit(resnet_block_forward)(x, params))
    ref_q = jax.block_until_ready(jax.jit(reference_forward_bf16)(x, params))
    ref_f = jax.block_until_ready(jax.jit(reference_forward_f32)(x, params))

    assert out.shape == (N, COUT, H // STRIDE, W // STRIDE), out.shape
    err_q = float(jnp.max(jnp.abs(out - ref_q)))
    err_f = float(jnp.max(jnp.abs(out - ref_f)))
    # Tight: reference with the same bf16 quantization points as the kernel.
    assert jnp.allclose(out, ref_q, atol=5e-3, rtol=5e-3), \
        f"max err vs bf16-consistent ref {err_q}"
    # Loose: exact f32 module semantics (bf16 MXU inputs).
    assert jnp.allclose(out, ref_f, atol=5e-2, rtol=5e-2), \
        f"max err vs f32 module ref {err_f}"
    print("KERNEL_OK")
</pallas_src>

<mosaic_0001>
module attributes {stable_mosaic.version = 11 : i64} {
  func.func @_resnet_block_kernel(%arg0: i32, %arg1: memref<4x2x9x9x8xf32, #tpu.memory_space<vmem>>, %arg2: memref<72x256xbf16, #tpu.memory_space<vmem>>, %arg3: memref<1x256xf32, #tpu.memory_space<vmem>>, %arg4: memref<1152x128xbf16, #tpu.memory_space<vmem>>, %arg5: memref<2x8x8x128xf32, #tpu.memory_space<vmem>>, %arg6: memref<2x10x24x128xbf16, #tpu.memory_space<vmem>>, %arg7: memref<128x72xbf16, #tpu.memory_space<vmem>>, %arg8: memref<128x1152xbf16, #tpu.memory_space<vmem>>, %arg9: memref<128x128xf32, #tpu.memory_space<vmem>>) attributes {dimension_semantics = [#tpu.dimension_semantics<parallel>], iteration_bounds = array<i64: 1>, scalar_prefetch = 0 : i64, scratch_operands = 4 : i64, tpu.core_type = #tpu.core_type<tc>, window_params = [{transform_indices = @transform_0, window_bounds = array<i64: 4, 2, 9, 9, 8>}, {pipeline_mode = #tpu.pipeline_mode<synchronous>, transform_indices = @transform_1, window_bounds = array<i64: 72, 256>}, {pipeline_mode = #tpu.pipeline_mode<synchronous>, transform_indices = @transform_2, window_bounds = array<i64: 1, 256>}, {pipeline_mode = #tpu.pipeline_mode<synchronous>, transform_indices = @transform_3, window_bounds = array<i64: 1152, 128>}, {transform_indices = @transform_4, window_bounds = array<i64: 2, 8, 8, 128>}]} {
    %cst = arith.constant 0.000000e+00 : bf16
    %0 = vector.broadcast %cst : bf16 to vector<2x10x24x128xbf16>
    %c0 = arith.constant 0 : index
    %c0_0 = arith.constant 0 : index
    %c0_1 = arith.constant 0 : index
    %c0_2 = arith.constant 0 : index
    %1 = vector.load %arg6[%c0, %c0_0, %c0_1, %c0_2] : memref<2x10x24x128xbf16, #tpu.memory_space<vmem>>, vector<2x10x24x128xbf16>
    tpu.vector_store %arg6[%c0, %c0_0, %c0_1, %c0_2], %0 {strides = array<i32>} : memref<2x10x24x128xbf16, #tpu.memory_space<vmem>>, vector<2x10x24x128xbf16>,
    %c0_3 = arith.constant 0 : index
    %c0_4 = arith.constant 0 : index
    %c0_5 = arith.constant 0 : index
    %c0_6 = arith.constant 0 : index
    %c0_7 = arith.constant 0 : index
    %2 = vector.load %arg1[%c0_3, %c0_4, %c0_5, %c0_6, %c0_7] : memref<4x2x9x9x8xf32, #tpu.memory_space<vmem>>, vector<1x2x8x8x8xf32>
    %3 = vector.shape_cast %2 : vector<1x2x8x8x8xf32> to vector<2x8x8x8xf32>
    %4 = vector.shape_cast %3 : vector<2x8x8x8xf32> to vector<128x8xf32>
    %5 = arith.truncf %4 : vector<128x8xf32> to vector<128x8xbf16>
    %c0_8 = arith.constant 0 : index
    %c0_9 = arith.constant 0 : index
    %6 = vector.load %arg7[%c0_8, %c0_9] : memref<128x72xbf16, #tpu.memory_space<vmem>>, vector<128x8xbf16>
    tpu.vector_store %arg7[%c0_8, %c0_9], %5 {strides = array<i32>} : memref<128x72xbf16, #tpu.memory_space<vmem>>, vector<128x8xbf16>,
    %c1 = arith.constant 1 : index
    %c0_10 = arith.constant 0 : index
    %c0_11 = arith.constant 0 : index
    %c0_12 = arith.constant 0 : index
    %c0_13 = arith.constant 0 : index
    %7 = vector.load %arg1[%c1, %c0_10, %c0_11, %c0_12, %c0_13] : memref<4x2x9x9x8xf32, #tpu.memory_space<vmem>>, vector<1x2x8x8x8xf32>
    %8 = vector.shape_cast %7 : vector<1x2x8x8x8xf32> to vector<2x8x8x8xf32>
    %9 = vector.shape_cast %8 : vector<2x8x8x8xf32> to vector<128x8xf32>
    %10 = arith.truncf %9 : vector<128x8xf32> to vector<128x8xbf16>
    %c0_14 = arith.constant 0 : index
    %c8 = arith.constant 8 : index
    %11 = vector.load %arg7[%c0_14, %c8] : memref<128x72xbf16, #tpu.memory_space<vmem>>, vector<128x8xbf16>
    tpu.vector_store %arg7[%c0_14, %c8], %10 {strides = array<i32>} : memref<128x72xbf16, #tpu.memory_space<vmem>>, vector<128x8xbf16>,
    %c0_15 = arith.constant 0 : index
    %c0_16 = arith.constant 0 : index
    %c0_17 = arith.constant 0 : index
    %c1_18 = arith.constant 1 : index
    %c0_19 = arith.constant 0 : index
    %12 = vector.load %arg1[%c0_15, %c0_16, %c0_17, %c1_18, %c0_19] : memref<4x2x9x9x8xf32, #tpu.memory_space<vmem>>, vector<1x2x8x8x8xf32>
    %13 = vector.shape_cast %12 : vector<1x2x8x8x8xf32> to vector<2x8x8x8xf32>
    %14 = vector.shape_cast %13 : vector<2x8x8x8xf32> to vector<128x8xf32>
    %15 = arith.truncf %14 : vector<128x8xf32> to vector<128x8xbf16>
    %c0_20 = arith.constant 0 : index
    %c16 = arith.constant 16 : index
    %16 = vector.load %arg7[%c0_20, %c16] : memref<128x72xbf16, #tpu.memory_space<vmem>>, vector<128x8xbf16>
    tpu.vector_store %arg7[%c0_20, %c16], %15 {strides = array<i32>} : memref<128x72xbf16, #tpu.memory_space<vmem>>, vector<128x8xbf16>,
    %c2 = arith.constant 2 : index
    %c0_21 = arith.constant 0 : index
    %c0_22 = arith.constant 0 : index
    %c0_23 = arith.constant 0 : index
    %c0_24 = arith.constant 0 : index
    %17 = vector.load %arg1[%c2, %c0_21, %c0_22, %c0_23, %c0_24] : memref<4x2x9x9x8xf32, #tpu.memory_space<vmem>>, vector<1x2x8x8x8xf32>
    %18 = vector.shape_cast %17 : vector<1x2x8x8x8xf32> to vector<2x8x8x8xf32>
    %19 = vector.shape_cast %18 : vector<2x8x8x8xf32> to vector<128x8xf32>
    %20 = arith.truncf %19 : vector<128x8xf32> to vector<128x8xbf16>
    %c0_25 = arith.constant 0 : index
    %c24 = arith.constant 24 : index
    %21 = vector.load %arg7[%c0_25, %c24] : memref<128x72xbf16, #tpu.memory_space<vmem>>, vector<128x8xbf16>
    tpu.vector_store %arg7[%c0_25, %c24], %20 {strides = array<i32>} : memref<128x72xbf16, #tpu.memory_space<vmem>>, vector<128x8xbf16>,
    %c3 = arith.constant 3 : index
    %c0_26 = arith.constant 0 : index
    %c0_27 = arith.constant 0 : index
    %c0_28 = arith.constant 0 : index
    %c0_29 = arith.constant 0 : index
    %22 = vector.load %arg1[%c3, %c0_26, %c0_27, %c0_28, %c0_29] : memref<4x2x9x9x8xf32, #tpu.memory_space<vmem>>, vector<1x2x8x8x8xf32>
    %23 = vector.shape_cast %22 : vector<1x2x8x8x8xf32> to vector<2x8x8x8xf32>
    %24 = vector.shape_cast %23 : vector<2x8x8x8xf32> to vector<128x8xf32>
    %25 = arith.truncf %24 : vector<128x8xf32> to vector<128x8xbf16>
    %c0_30 = arith.constant 0 : index
    %c32 = arith.constant 32 : index
    %26 = vector.load %arg7[%c0_30, %c32] : memref<128x72xbf16, #tpu.memory_space<vmem>>, vector<128x8xbf16>
    tpu.vector_store %arg7[%c0_30, %c32], %25 {strides = array<i32>} : memref<128x72xbf16, #tpu.memory_space<vmem>>, vector<128x8xbf16>,
    %c2_31 = arith.constant 2 : index
    %c0_32 = arith.constant 0 : index
    %c0_33 = arith.constant 0 : index
    %c1_34 = arith.constant 1 : index
    %c0_35 = arith.constant 0 : index
    %27 = vector.load %arg1[%c2_31, %c0_32, %c0_33, %c1_34, %c0_35] : memref<4x2x9x9x8xf32, #tpu.memory_space<vmem>>, vector<1x2x8x8x8xf32>
    %28 = vector.shape_cast %27 : vector<1x2x8x8x8xf32> to vector<2x8x8x8xf32>
    %29 = vector.shape_cast %28 : vector<2x8x8x8xf32> to vector<128x8xf32>
    %30 = arith.truncf %29 : vector<128x8xf32> to vector<128x8xbf16>
    %c0_36 = arith.constant 0 : index
    %c40 = arith.constant 40 : index
    %31 = vector.load %arg7[%c0_36, %c40] : memref<128x72xbf16, #tpu.memory_space<vmem>>, vector<128x8xbf16>
    tpu.vector_store %arg7[%c0_36, %c40], %30 {strides = array<i32>} : memref<128x72xbf16, #tpu.memory_space<vmem>>, vector<128x8xbf16>,
    %c0_37 = arith.constant 0 : index
    %c0_38 = arith.constant 0 : index
    %c1_39 = arith.constant 1 : index
    %c0_40 = arith.constant 0 : index
    %c0_41 = arith.constant 0 : index
    %32 = vector.load %arg1[%c0_37, %c0_38, %c1_39, %c0_40, %c0_41] : memref<4x2x9x9x8xf32, #tpu.memory_space<vmem>>, vector<1x2x8x8x8xf32>
    %33 = vector.shape_cast %32 : vector<1x2x8x8x8xf32> to vector<2x8x8x8xf32>
    %34 = vector.shape_cast %33 : vector<2x8x8x8xf32> to vector<128x8xf32>
    %35 = arith.truncf %34 : vector<128x8xf32> to vector<128x8xbf16>
    %c0_42 = arith.constant 0 : index
    %c48 = arith.constant 48 : index
    %36 = vector.load %arg7[%c0_42, %c48] : memref<128x72xbf16, #tpu.memory_space<vmem>>, vector<128x8xbf16>
    tpu.vector_store %arg7[%c0_42, %c48], %35 {strides = array<i32>} : memref<128x72xbf16, #tpu.memory_space<vmem>>, vector<128x8xbf16>,
    %c1_43 = arith.constant 1 : index
    %c0_44 = arith.constant 0 : index
    %c1_45 = arith.constant 1 : index
    %c0_46 = arith.constant 0 : index
    %c0_47 = arith.constant 0 : index
    %37 = vector.load %arg1[%c1_43, %c0_44, %c1_45, %c0_46, %c0_47] : memref<4x2x9x9x8xf32, #tpu.memory_space<vmem>>, vector<1x2x8x8x8xf32>
    %38 = vector.shape_cast %37 : vector<1x2x8x8x8xf32> to vector<2x8x8x8xf32>
    %39 = vector.shape_cast %38 : vector<2x8x8x8xf32> to vector<128x8xf32>
    %40 = arith.truncf %39 : vector<128x8xf32> to vector<128x8xbf16>
    %c0_48 = arith.constant 0 : index
    %c56 = arith.constant 56 : index
    %41 = vector.load %arg7[%c0_48, %c56] : memref<128x72xbf16, #tpu.memory_space<vmem>>, vector<128x8xbf16>
    tpu.vector_store %arg7[%c0_48, %c56], %40 {strides = array<i32>} : memref<128x72xbf16, #tpu.memory_space<vmem>>, vector<128x8xbf16>,
    %c0_49 = arith.constant 0 : index
    %c0_50 = arith.constant 0 : index
    %c1_51 = arith.constant 1 : index
    %c1_52 = arith.constant 1 : index
    %c0_53 = arith.constant 0 : index
    %42 = vector.load %arg1[%c0_49, %c0_50, %c1_51, %c1_52, %c0_53] : memref<4x2x9x9x8xf32, #tpu.memory_space<vmem>>, vector<1x2x8x8x8xf32>
    %43 = vector.shape_cast %42 : vector<1x2x8x8x8xf32> to vector<2x8x8x8xf32>
    %44 = vector.shape_cast %43 : vector<2x8x8x8xf32> to vector<128x8xf32>
    %45 = arith.truncf %44 : vector<128x8xf32> to vector<128x8xbf16>
    %c0_54 = arith.constant 0 : index
    %c64 = arith.constant 64 : index
    %46 = vector.load %arg7[%c0_54, %c64] : memref<128x72xbf16, #tpu.memory_space<vmem>>, vector<128x8xbf16>
    tpu.vector_store %arg7[%c0_54, %c64], %45 {strides = array<i32>} : memref<128x72xbf16, #tpu.memory_space<vmem>>, vector<128x8xbf16>,
    %c0_55 = arith.constant 0 : index
    %c0_56 = arith.constant 0 : index
    %47 = vector.load %arg7[%c0_55, %c0_56] : memref<128x72xbf16, #tpu.memory_space<vmem>>, vector<128x72xbf16>
    %c0_57 = arith.constant 0 : index
    %c0_58 = arith.constant 0 : index
    %48 = vector.load %arg2[%c0_57, %c0_58] : memref<72x256xbf16, #tpu.memory_space<vmem>>, vector<72x256xbf16>
    %cst_59 = arith.constant dense<0.000000e+00> : vector<128x256xf32>
    %49 = tpu.matmul %47, %48, %cst_59 {dimension_numbers = #tpu.dot_dimension_numbers<[1], [0], [0], [1], [0, 0, 1, 1], [], []>} : vector<128x72xbf16>, vector<72x256xbf16>, vector<128x256xf32> -> vector<128x256xf32>
    %c0_60 = arith.constant 0 : index
    %c0_61 = arith.constant 0 : index
    %50 = vector.load %arg3[%c0_60, %c0_61] : memref<1x256xf32, #tpu.memory_space<vmem>>, vector<1x256xf32>
    %51 = vector.broadcast %50 : vector<1x256xf32> to vector<128x256xf32>
    %52 = arith.addf %49, %51 : vector<128x256xf32>
    %53 = vector.extract_strided_slice %52 {offsets = [0, 128], sizes = [128, 128], strides = [1, 1]} : vector<128x256xf32> to vector<128x128xf32>
    %c0_62 = arith.constant 0 : index
    %c0_63 = arith.constant 0 : index
    %54 = vector.load %arg9[%c0_62, %c0_63] : memref<128x128xf32, #tpu.memory_space<vmem>>, vector<128x128xf32>
    tpu.vector_store %arg9[%c0_62, %c0_63], %53 {strides = array<i32>} : memref<128x128xf32, #tpu.memory_space<vmem>>, vector<128x128xf32>,
    %55 = vector.extract_strided_slice %52 {offsets = [0, 0], sizes = [128, 128], strides = [1, 1]} : vector<128x256xf32> to vector<128x128xf32>
    %cst_64 = arith.constant 0.000000e+00 : f32
    %56 = vector.broadcast %cst_64 : f32 to vector<128x128xf32>
    %57 = arith.maximumf %55, %56 : vector<128x128xf32>
    %58 = arith.truncf %57 : vector<128x128xf32> to vector<128x128xbf16>
    %59 = vector.shape_cast %58 : vector<128x128xbf16> to vector<2x8x8x128xbf16>
    %c0_65 = arith.constant 0 : index
    %c1_66 = arith.constant 1 : index
    %c8_67 = arith.constant 8 : index
    %c0_68 = arith.constant 0 : index
    %60 = vector.load %arg6[%c0_65, %c1_66, %c8_67, %c0_68] : memref<2x10x24x128xbf16, #tpu.memory_space<vmem>>, vector<2x8x8x128xbf16>
    tpu.vector_store %arg6[%c0_65, %c1_66, %c8_67, %c0_68], %59 {strides = array<i32>} : memref<2x10x24x128xbf16, #tpu.memory_space<vmem>>, vector<2x8x8x128xbf16>,
    %c0_69 = arith.constant 0 : index
    %c0_70 = arith.constant 0 : index
    %c7 = arith.constant 7 : index
    %c0_71 = arith.constant 0 : index
    %61 = vector.load %arg6[%c0_69, %c0_70, %c7, %c0_71] : memref<2x10x24x128xbf16, #tpu.memory_space<vmem>>, vector<2x8x8x128xbf16>
    %62 = vector.shape_cast %61 : vector<2x8x8x128xbf16> to vector<128x128xbf16>
    %c0_72 = arith.constant 0 : index
    %c0_73 = arith.constant 0 : index
    %63 = vector.load %arg8[%c0_72, %c0_73] : memref<128x1152xbf16, #tpu.memory_space<vmem>>, vector<128x128xbf16>
    tpu.vector_store %arg8[%c0_72, %c0_73], %62 {strides = array<i32>} : memref<128x1152xbf16, #tpu.memory_space<vmem>>, vector<128x128xbf16>,
    %c0_74 = arith.constant 0 : index
    %c0_75 = arith.constant 0 : index
    %c8_76 = arith.constant 8 : index
    %c0_77 = arith.constant 0 : index
    %64 = vector.load %arg6[%c0_74, %c0_75, %c8_76, %c0_77] : memref<2x10x24x128xbf16, #tpu.memory_space<vmem>>, vector<2x8x8x128xbf16>
    %65 = vector.shape_cast %64 : vector<2x8x8x128xbf16> to vector<128x128xbf16>
    %c0_78 = arith.constant 0 : index
    %c128 = arith.constant 128 : index
    %66 = vector.load %arg8[%c0_78, %c128] : memref<128x1152xbf16, #tpu.memory_space<vmem>>, vector<128x128xbf16>
    tpu.vector_store %arg8[%c0_78, %c128], %65 {strides = array<i32>} : memref<128x1152xbf16, #tpu.memory_space<vmem>>, vector<128x128xbf16>,
    %c0_79 = arith.constant 0 : index
    %c0_80 = arith.constant 0 : index
    %c9 = arith.constant 9 : index
    %c0_81 = arith.constant 0 : index
    %67 = vector.load %arg6[%c0_79, %c0_80, %c9, %c0_81] : memref<2x10x24x128xbf16, #tpu.memory_space<vmem>>, vector<2x8x8x128xbf16>
    %68 = vector.shape_cast %67 : vector<2x8x8x128xbf16> to vector<128x128xbf16>
    %c0_82 = arith.constant 0 : index
    %c256 = arith.constant 256 : index
    %69 = vector.load %arg8[%c0_82, %c256] : memref<128x1152xbf16, #tpu.memory_space<vmem>>, vector<128x128xbf16>
    tpu.vector_store %arg8[%c0_82, %c256], %68 {strides = array<i32>} : memref<128x1152xbf16, #tpu.memory_space<vmem>>, vector<128x128xbf16>,
    %c0_83 = arith.constant 0 : index
    %c1_84 = arith.constant 1 : index
    %c7_85 = arith.constant 7 : index
    %c0_86 = arith.constant 0 : index
    %70 = vector.load %arg6[%c0_83, %c1_84, %c7_85, %c0_86] : memref<2x10x24x128xbf16, #tpu.memory_space<vmem>>, vector<2x8x8x128xbf16>
    %71 = vector.shape_cast %70 : vector<2x8x8x128xbf16> to vector<128x128xbf16>
    %c0_87 = arith.constant 0 : index
    %c384 = arith.constant 384 : index
    %72 = vector.load %arg8[%c0_87, %c384] : memref<128x1152xbf16, #tpu.memory_space<vmem>>, vector<128x128xbf16>
    tpu.vector_store %arg8[%c0_87, %c384], %71 {strides = array<i32>} : memref<128x1152xbf16, #tpu.memory_space<vmem>>, vector<128x128xbf16>,
    %c0_88 = arith.constant 0 : index
    %c1_89 = arith.constant 1 : index
    %c8_90 = arith.constant 8 : index
    %c0_91 = arith.constant 0 : index
    %73 = vector.load %arg6[%c0_88, %c1_89, %c8_90, %c0_91] : memref<2x10x24x128xbf16, #tpu.memory_space<vmem>>, vector<2x8x8x128xbf16>
    %74 = vector.shape_cast %73 : vector<2x8x8x128xbf16> to vector<128x128xbf16>
    %c0_92 = arith.constant 0 : index
    %c512 = arith.constant 512 : index
    %75 = vector.load %arg8[%c0_92, %c512] : memref<128x1152xbf16, #tpu.memory_space<vmem>>, vector<128x128xbf16>
    tpu.vector_store %arg8[%c0_92, %c512], %74 {strides = array<i32>} : memref<128x1152xbf16, #tpu.memory_space<vmem>>, vector<128x128xbf16>,
    %c0_93 = arith.constant 0 : index
    %c1_94 = arith.constant 1 : index
    %c9_95 = arith.constant 9 : index
    %c0_96 = arith.constant 0 : index
    %76 = vector.load %arg6[%c0_93, %c1_94, %c9_95, %c0_96] : memref<2x10x24x128xbf16, #tpu.memory_space<vmem>>, vector<2x8x8x128xbf16>
    %77 = vector.shape_cast %76 : vector<2x8x8x128xbf16> to vector<128x128xbf16>
    %c0_97 = arith.constant 0 : index
    %c640 = arith.constant 640 : index
    %78 = vector.load %arg8[%c0_97, %c640] : memref<128x1152xbf16, #tpu.memory_space<vmem>>, vector<128x128xbf16>
    tpu.vector_store %arg8[%c0_97, %c640], %77 {strides = array<i32>} : memref<128x1152xbf16, #tpu.memory_space<vmem>>, vector<128x128xbf16>,
    %c0_98 = arith.constant 0 : index
    %c2_99 = arith.constant 2 : index
    %c7_100 = arith.constant 7 : index
    %c0_101 = arith.constant 0 : index
    %79 = vector.load %arg6[%c0_98, %c2_99, %c7_100, %c0_101] : memref<2x10x24x128xbf16, #tpu.memory_space<vmem>>, vector<2x8x8x128xbf16>
    %80 = vector.shape_cast %79 : vector<2x8x8x128xbf16> to vector<128x128xbf16>
    %c0_102 = arith.constant 0 : index
    %c768 = arith.constant 768 : index
    %81 = vector.load %arg8[%c0_102, %c768] : memref<128x1152xbf16, #tpu.memory_space<vmem>>, vector<128x128xbf16>
    tpu.vector_store %arg8[%c0_102, %c768], %80 {strides = array<i32>} : memref<128x1152xbf16, #tpu.memory_space<vmem>>, vector<128x128xbf16>,
    %c0_103 = arith.constant 0 : index
    %c2_104 = arith.constant 2 : index
    %c8_105 = arith.constant 8 : index
    %c0_106 = arith.constant 0 : index
    %82 = vector.load %arg6[%c0_103, %c2_104, %c8_105, %c0_106] : memref<2x10x24x128xbf16, #tpu.memory_space<vmem>>, vector<2x8x8x128xbf16>
    %83 = vector.shape_cast %82 : vector<2x8x8x128xbf16> to vector<128x128xbf16>
    %c0_107 = arith.constant 0 : index
    %c896 = arith.constant 896 : index
    %84 = vector.load %arg8[%c0_107, %c896] : memref<128x1152xbf16, #tpu.memory_space<vmem>>, vector<128x128xbf16>
    tpu.vector_store %arg8[%c0_107, %c896], %83 {strides = array<i32>} : memref<128x1152xbf16, #tpu.memory_space<vmem>>, vector<128x128xbf16>,
    %c0_108 = arith.constant 0 : index
    %c2_109 = arith.constant 2 : index
    %c9_110 = arith.constant 9 : index
    %c0_111 = arith.constant 0 : index
    %85 = vector.load %arg6[%c0_108, %c2_109, %c9_110, %c0_111] : memref<2x10x24x128xbf16, #tpu.memory_space<vmem>>, vector<2x8x8x128xbf16>
    %86 = vector.shape_cast %85 : vector<2x8x8x128xbf16> to vector<128x128xbf16>
    %c0_112 = arith.constant 0 : index
    %c1024 = arith.constant 1024 : index
    %87 = vector.load %arg8[%c0_112, %c1024] : memref<128x1152xbf16, #tpu.memory_space<vmem>>, vector<128x128xbf16>
    tpu.vector_store %arg8[%c0_112, %c1024], %86 {strides = array<i32>} : memref<128x1152xbf16, #tpu.memory_space<vmem>>, vector<128x128xbf16>,
    %c0_113 = arith.constant 0 : index
    %c0_114 = arith.constant 0 : index
    %88 = vector.load %arg8[%c0_113, %c0_114] : memref<128x1152xbf16, #tpu.memory_space<vmem>>, vector<128x1152xbf16>
    %c0_115 = arith.constant 0 : index
    %c0_116 = arith.constant 0 : index
    %89 = vector.load %arg4[%c0_115, %c0_116] : memref<1152x128xbf16, #tpu.memory_space<vmem>>, vector<1152x128xbf16>
    %cst_117 = arith.constant dense<0.000000e+00> : vector<128x128xf32>
    %90 = tpu.matmul %88, %89, %cst_117 {dimension_numbers = #tpu.dot_dimension_numbers<[1], [0], [0], [1], [0, 0, 1, 1], [], []>} : vector<128x1152xbf16>, vector<1152x128xbf16>, vector<128x128xf32> -> vector<128x128xf32>
    %c0_118 = arith.constant 0 : index
    %c0_119 = arith.constant 0 : index
    %91 = vector.load %arg9[%c0_118, %c0_119] : memref<128x128xf32, #tpu.memory_space<vmem>>, vector<128x128xf32>
    %92 = arith.addf %90, %91 : vector<128x128xf32>
    %cst_120 = arith.constant 0.000000e+00 : f32
    %93 = vector.broadcast %cst_120 : f32 to vector<128x128xf32>
    %94 = arith.maximumf %92, %93 : vector<128x128xf32>
    %95 = vector.shape_cast %94 : vector<128x128xf32> to vector<2x8x8x128xf32>
    %c0_121 = arith.constant 0 : index
    %c0_122 = arith.constant 0 : index
    %c0_123 = arith.constant 0 : index
    %c0_124 = arith.constant 0 : index
    %96 = vector.load %arg5[%c0_121, %c0_122, %c0_123, %c0_124] : memref<2x8x8x128xf32, #tpu.memory_space<vmem>>, vector<2x8x8x128xf32>
    tpu.vector_store %arg5[%c0_121, %c0_122, %c0_123, %c0_124], %95 {strides = array<i32>} : memref<2x8x8x128xf32, #tpu.memory_space<vmem>>, vector<2x8x8x128xf32>,
    return
  }
  func.func @transform_0(%arg0: i32) -> (i32, i32, i32, i32, i32) {
    %c0_i32 = arith.constant 0 : i32
    %c0_i32_0 = arith.constant 0 : i32
    %c0_i32_1 = arith.constant 0 : i32
    %c0_i32_2 = arith.constant 0 : i32
    %c0_i32_3 = arith.constant 0 : i32
    return %c0_i32, %arg0, %c0_i32_0, %c0_i32_1, %c0_i32_2 : i32, i32, i32, i32, i32
  }
  func.func @transform_1(%arg0: i32) -> (i32, i32) {
    %c0_i32 = arith.constant 0 : i32
    %c0_i32_0 = arith.constant 0 : i32
    %c0_i32_1 = arith.constant 0 : i32
    return %c0_i32, %c0_i32_0 : i32, i32
  }
  func.func @transform_2(%arg0: i32) -> (i32, i32) {
    %c0_i32 = arith.constant 0 : i32
    %c0_i32_0 = arith.constant 0 : i32
    %c0_i32_1 = arith.constant 0 : i32
    return %c0_i32, %c0_i32_0 : i32, i32
  }
  func.func @transform_3(%arg0: i32) -> (i32, i32) {
    %c0_i32 = arith.constant 0 : i32
    %c0_i32_0 = arith.constant 0 : i32
    %c0_i32_1 = arith.constant 0 : i32
    return %c0_i32, %c0_i32_0 : i32, i32
  }
  func.func @transform_4(%arg0: i32) -> (i32, i32, i32, i32) {
    %c0_i32 = arith.constant 0 : i32
    %c0_i32_0 = arith.constant 0 : i32
    %c0_i32_1 = arith.constant 0 : i32
    %c0_i32_2 = arith.constant 0 : i32
    return %arg0, %c0_i32, %c0_i32_0, %c0_i32_1 : i32, i32, i32, i32
  }
}

</mosaic_0001>

<llo_original>
// kernel: resnet_block_forward.1
$region0: #{resnet_block_forward.1}
  #allocation0 [shape = 'u32[]', space=smem, size = 0x4, offset = 0x4, fixed_abs, tag = 'smem constant byte address 0x4 - core index']
  #allocation1 [shape = 'u32[144,128]{1,0:T(1,128)}', space=vmem, size = 0x12000, scoped, tag = 'internal scratch']
  #allocation2 [shape = 'bf16[2,10,24,128]{3,2,1,0:T(8,128)(2,1)}', space=vmem, size = 0x1e000, scoped, tag = 'scratch operand']
  #allocation3 [shape = 'bf16[128,72]{1,0:T(16,128)(2,1)}', space=vmem, size = 0x8000, scoped, tag = 'scratch operand']
  #allocation4 [shape = 'bf16[128,1152]{1,0:T(16,128)(2,1)}', space=vmem, size = 0x48000, scoped, tag = 'scratch operand']
  #allocation5 [shape = 'f32[128,128]{1,0:T(8,128)}', space=vmem, size = 0x10000, scoped, tag = 'scratch operand']
  %s0 = inlined_call_operand.vmem [shape: f32[4,2,9,9,8], index: 0, kind: input, shape index: {}]
  %s1 = inlined_call_operand.vmem [shape: bf16[72,256], index: 1, kind: input, shape index: {}]
  %s2 = inlined_call_operand.vmem [shape: f32[1,256], index: 2, kind: input, shape index: {}]
  %s3 = inlined_call_operand.vmem [shape: bf16[1152,128], index: 3, kind: input, shape index: {}]
  %s4 = inlined_call_operand.vmem [shape: f32[2,8,8,128], index: 4, kind: output, shape index: {}]
  %s5 = sld [smem:[#allocation0]]
  $region26: #{resnet_block_forward.1} parent=0
    _
  %s7 = ssub.s32 1, %s5
  %s8 = scalar_select 0, %s7, %s5
  // Predicated region
  $region2: #{resnet_block_forward.1} parent=0 // pred_check
    _
  $region3: #{resnet_block_forward.1} parent=0 // pred_check_branch
    %10 = sbr.rel (0) target = $region5
  $region4: #{resnet_block_forward.1} parent=0 // pred_region
    _
  $region5: #{resnet_block_forward.1} parent=0 // pred_fallthru
    _
  // Predicated region
  $region6: #{resnet_block_forward.1} parent=0 // pred_check
    _
  $region7: #{resnet_block_forward.1} parent=0 // pred_check_branch
    %12 = sbr.rel (0) target = $region9
  $region8: #{resnet_block_forward.1} parent=0 // pred_region
    _
  $region9: #{resnet_block_forward.1} parent=0 // pred_fallthru
    _
  // Predicated region
  $region10: #{resnet_block_forward.1} parent=0 // pred_check
    _
  $region11: #{resnet_block_forward.1} parent=0 // pred_check_branch
    %14 = sbr.rel (0) target = $region13
  $region12: #{resnet_block_forward.1} parent=0 // pred_region
    _
  $region13: #{resnet_block_forward.1} parent=0 // pred_fallthru
    _
  // Predicated region
  $region14: #{resnet_block_forward.1} parent=0 // pred_check
    _
  $region15: #{resnet_block_forward.1} parent=0 // pred_check_branch
    %16 = sbr.rel (0) target = $region17
  $region16: #{resnet_block_forward.1} parent=0 // pred_region
    _
  $region17: #{resnet_block_forward.1} parent=0 // pred_fallthru
    _
  %18 = vst [vmem:[#allocation2] sm:$0xf] 0
  %19 = vst [vmem:[#allocation2 + $0x4] sm:$0xf] 0
  %20 = vst [vmem:[#allocation2 + $0x8] sm:$0xf] 0
  %21 = vst [vmem:[#allocation2 + $0xc] sm:$0xf] 0
  %22 = vst [vmem:[#allocation2 + $0x10] sm:$0xf] 0
  %23 = vst [vmem:[#allocation2 + $0x14] sm:$0xf] 0
  %24 = vst [vmem:[#allocation2 + $0x18] sm:$0xf] 0
  %25 = vst [vmem:[#allocation2 + $0x1c] sm:$0xf] 0
  %26 = vst [vmem:[#allocation2 + $0x20] sm:$0xf] 0
  %27 = vst [vmem:[#allocation2 + $0x24] sm:$0xf] 0
  %28 = vst [vmem:[#allocation2 + $0x28] sm:$0xf] 0
  %29 = vst [vmem:[#allocation2 + $0x2c] sm:$0xf] 0
  %30 = vst [vmem:[#allocation2 + $0x30] sm:$0xf] 0
  %31 = vst [vmem:[#allocation2 + $0x34] sm:$0xf] 0
  %32 = vst [vmem:[#allocation2 + $0x38] sm:$0xf] 0
  %33 = vst [vmem:[#allocation2 + $0x3c] sm:$0xf] 0
  %34 = vst [vmem:[#allocation2 + $0x40] sm:$0xf] 0
  %35 = vst [vmem:[#allocation2 + $0x44] sm:$0xf] 0
  %36 = vst [vmem:[#allocation2 + $0x48] sm:$0xf] 0
  %37 = vst [vmem:[#allocation2 + $0x4c] sm:$0xf] 0
  %38 = vst [vmem:[#allocation2 + $0x50] sm:$0xf] 0
  %39 = vst [vmem:[#allocation2 + $0x54] sm:$0xf] 0
  %40 = vst [vmem:[#allocation2 + $0x58] sm:$0xf] 0
  %41 = vst [vmem:[#allocation2 + $0x5c] sm:$0xf] 0
  %42 = vst [vmem:[#allocation2 + $0x60] sm:$0xf] 0
  %43 = vst [vmem:[#allocation2 + $0x64] sm:$0xf] 0
  %44 = vst [vmem:[#allocation2 + $0x68] sm:$0xf] 0
  %45 = vst [vmem:[#allocation2 + $0x6c] sm:$0xf] 0
  %46 = vst [vmem:[#allocation2 + $0x70] sm:$0xf] 0
  %47 = vst [vmem:[#allocation2 + $0x74] sm:$0xf] 0
  %48 = vst [vmem:[#allocation2 + $0x78] sm:$0xf] 0
  %49 = vst [vmem:[#allocation2 + $0x7c] sm:$0xf] 0
  %50 = vst [vmem:[#allocation2 + $0x80] sm:$0xf] 0
  %51 = vst [vmem:[#allocation2 + $0x84] sm:$0xf] 0
  %52 = vst [vmem:[#allocation2 + $0x88] sm:$0xf] 0
  %53 = vst [vmem:[#allocation2 + $0x8c] sm:$0xf] 0
  %54 = vst [vmem:[#allocation2 + $0x90] sm:$0xf] 0
  %55 = vst [vmem:[#allocation2 + $0x94] sm:$0xf] 0
  %56 = vst [vmem:[#allocation2 + $0x98] sm:$0xf] 0
  %57 = vst [vmem:[#allocation2 + $0x9c] sm:$0xf] 0
  %58 = vst [vmem:[#allocation2 + $0xa0] sm:$0xf] 0
  %59 = vst [vmem:[#allocation2 + $0xa4] sm:$0xf] 0
  %60 = vst [vmem:[#allocation2 + $0xa8] sm:$0xf] 0
  %61 = vst [vmem:[#allocation2 + $0xac] sm:$0xf] 0
  %62 = vst [vmem:[#allocation2 + $0xb0] sm:$0xf] 0
  %63 = vst [vmem:[#allocation2 + $0xb4] sm:$0xf] 0
  %64 = vst [vmem:[#allocation2 + $0xb8] sm:$0xf] 0
  %65 = vst [vmem:[#allocation2 + $0xbc] sm:$0xf] 0
  %66 = vst [vmem:[#allocation2 + $0xc0] sm:$0xf] 0
  %67 = vst [vmem:[#allocation2 + $0xc4] sm:$0xf] 0
  %68 = vst [vmem:[#allocation2 + $0xc8] sm:$0xf] 0
  %69 = vst [vmem:[#allocation2 + $0xcc] sm:$0xf] 0
  %70 = vst [vmem:[#allocation2 + $0xd0] sm:$0xf] 0
  %71 = vst [vmem:[#allocation2 + $0xd4] sm:$0xf] 0
  %72 = vst [vmem:[#allocation2 + $0xd8] sm:$0xf] 0
  %73 = vst [vmem:[#allocation2 + $0xdc] sm:$0xf] 0
  %74 = vst [vmem:[#allocation2 + $0xe0] sm:$0xf] 0
  %75 = vst [vmem:[#allocation2 + $0xe4] sm:$0xf] 0
  %76 = vst [vmem:[#allocation2 + $0xe8] sm:$0xf] 0
  %77 = vst [vmem:[#allocation2 + $0xec] sm:$0xf] 0
  %v78 = vld [vmem:[%s0] sm:$0xff]
  %v79 = vld [vmem:[%s0 + $0x10] sm:$0xff]
  %v80 = vld [vmem:[%s0 + $0x20] sm:$0xff]
  %v81 = vld [vmem:[%s0 + $0x30] sm:$0xff]
  %v82 = vld [vmem:[%s0 + $0x40] sm:$0xff]
  %v83 = vld [vmem:[%s0 + $0x50] sm:$0xff]
  %v84 = vld [vmem:[%s0 + $0x60] sm:$0xff]
  %v85 = vld [vmem:[%s0 + $0x70] sm:$0xff]
  %v86 = vld [vmem:[%s0 + $0x90] sm:$0xff]
  %v87 = vld [vmem:[%s0 + $0xa0] sm:$0xff]
  %v88 = vld [vmem:[%s0 + $0xb0] sm:$0xff]
  %v89 = vld [vmem:[%s0 + $0xc0] sm:$0xff]
  %v90 = vld [vmem:[%s0 + $0xd0] sm:$0xff]
  %v91 = vld [vmem:[%s0 + $0xe0] sm:$0xff]
  %v92 = vld [vmem:[%s0 + $0xf0] sm:$0xff]
  %v93 = vld [vmem:[%s0 + $0x100] sm:$0xff]
  %v94 = vpack.c.bf16 %v79, %v78
  %v95 = vpack.c.bf16 %v81, %v80
  %v96 = vpack.c.bf16 %v83, %v82
  %v97 = vpack.c.bf16 %v85, %v84
  %v98 = vpack.c.bf16 %v87, %v86
  %v99 = vpack.c.bf16 %v89, %v88
  %v100 = vpack.c.bf16 %v91, %v90
  %v101 = vpack.c.bf16 %v93, %v92
  %vm102 = vcmask 64512
  %103 = vst.msk [vmem:[#allocation3] sm:$0xff] %vm102, %v94
  %104 = vst.msk [vmem:[#allocation3 + $0x8] sm:$0xff] %vm102, %v95
  %105 = vst.msk [vmem:[#allocation3 + $0x10] sm:$0xff] %vm102, %v96
  %106 = vst.msk [vmem:[#allocation3 + $0x18] sm:$0xff] %vm102, %v97
  %107 = vst.msk [vmem:[#allocation3 + $0x20] sm:$0xff] %vm102, %v98
  %108 = vst.msk [vmem:[#allocation3 + $0x28] sm:$0xff] %vm102, %v99
  %109 = vst.msk [vmem:[#allocation3 + $0x30] sm:$0xff] %vm102, %v100
  %110 = vst.msk [vmem:[#allocation3 + $0x38] sm:$0xff] %vm102, %v101
  %s111 = scalar_lea.vmem %s0, 288
  %v112 = vld [vmem:[%s111] sm:$0xff]
  %v113 = vld [vmem:[%s111 + $0x10] sm:$0xff]
  %v114 = vld [vmem:[%s111 + $0x20] sm:$0xff]
  %v115 = vld [vmem:[%s111 + $0x30] sm:$0xff]
  %v116 = vld [vmem:[%s111 + $0x40] sm:$0xff]
  %v117 = vld [vmem:[%s111 + $0x50] sm:$0xff]
  %v118 = vld [vmem:[%s111 + $0x60] sm:$0xff]
  %v119 = vld [vmem:[%s111 + $0x70] sm:$0xff]
  %v120 = vld [vmem:[%s111 + $0x90] sm:$0xff]
  %v121 = vld [vmem:[%s111 + $0xa0] sm:$0xff]
  %v122 = vld [vmem:[%s111 + $0xb0] sm:$0xff]
  %v123 = vld [vmem:[%s111 + $0xc0] sm:$0xff]
  %v124 = vld [vmem:[%s111 + $0xd0] sm:$0xff]
  %v125 = vld [vmem:[%s111 + $0xe0] sm:$0xff]
  %v126 = vld [vmem:[%s111 + $0xf0] sm:$0xff]
  %v127 = vld [vmem:[%s111 + $0x100] sm:$0xff]
  %v128 = vpack.c.bf16 %v113, %v112
  %v129 = vpack.c.bf16 %v115, %v114
  %v130 = vpack.c.bf16 %v117, %v116
  %v131 = vpack.c.bf16 %v119, %v118
  %v132 = vpack.c.bf16 %v121, %v120
  %v133 = vpack.c.bf16 %v123, %v122
  %v134 = vpack.c.bf16 %v125, %v124
  %v135 = vpack.c.bf16 %v127, %v126
  %144 = vrot.lane.b32.xlu0 %v128, 8
  %v145 = vpop.permute.xlu0 %144
  %146 = vrot.lane.b32.xlu0 %v129, 8
  %v147 = vpop.permute.xlu0 %146
  %148 = vrot.lane.b32.xlu0 %v130, 8
  %v149 = vpop.permute.xlu0 %148
  %150 = vrot.lane.b32.xlu0 %v131, 8
  %v151 = vpop.permute.xlu0 %150
  %152 = vrot.lane.b32.xlu0 %v132, 8
  %v153 = vpop.permute.xlu0 %152
  %154 = vrot.lane.b32.xlu0 %v133, 8
  %v155 = vpop.permute.xlu0 %154
  %156 = vrot.lane.b32.xlu0 %v134, 8
  %v157 = vpop.permute.xlu0 %156
  %158 = vrot.lane.b32.xlu0 %v135, 8
  %v159 = vpop.permute.xlu0 %158
  %vm168 = vcmask 130112
  %169 = vst.msk [vmem:[#allocation3] sm:$0xff] %vm168, %v145
  %170 = vst.msk [vmem:[#allocation3 + $0x8] sm:$0xff] %vm168, %v147
  %171 = vst.msk [vmem:[#allocation3 + $0x10] sm:$0xff] %vm168, %v149
  %172 = vst.msk [vmem:[#allocation3 + $0x18] sm:$0xff] %vm168, %v151
  %173 = vst.msk [vmem:[#allocation3 + $0x20] sm:$0xff] %vm168, %v153
  %174 = vst.msk [vmem:[#allocation3 + $0x28] sm:$0xff] %vm168, %v155
  %175 = vst.msk [vmem:[#allocation3 + $0x30] sm:$0xff] %vm168, %v157
  %176 = vst.msk [vmem:[#allocation3 + $0x38] sm:$0xff] %vm168, %v159
  %v177 = vld [vmem:[%s0 + $0x1] sm:$0xff]
  %v178 = vld [vmem:[%s0 + $0x11] sm:$0xff]
  %v179 = vld [vmem:[%s0 + $0x21] sm:$0xff]
  %v180 = vld [vmem:[%s0 + $0x31] sm:$0xff]
  %v181 = vld [vmem:[%s0 + $0x41] sm:$0xff]
  %v182 = vld [vmem:[%s0 + $0x51] sm:$0xff]
  %v183 = vld [vmem:[%s0 + $0x61] sm:$0xff]
  %v184 = vld [vmem:[%s0 + $0x71] sm:$0xff]
  %v185 = vld [vmem:[%s0 + $0x91] sm:$0xff]
  %v186 = vld [vmem:[%s0 + $0xa1] sm:$0xff]
  %v187 = vld [vmem:[%s0 + $0xb1] sm:$0xff]
  %v188 = vld [vmem:[%s0 + $0xc1] sm:$0xff]
  %v189 = vld [vmem:[%s0 + $0xd1] sm:$0xff]
  %v190 = vld [vmem:[%s0 + $0xe1] sm:$0xff]
  %v191 = vld [vmem:[%s0 + $0xf1] sm:$0xff]
  %v192 = vld [vmem:[%s0 + $0x101] sm:$0xff]
  %v193 = vpack.c.bf16 %v178, %v177
  %v194 = vpack.c.bf16 %v180, %v179
  %v195 = vpack.c.bf16 %v182, %v181
  %v196 = vpack.c.bf16 %v184, %v183
  %v197 = vpack.c.bf16 %v186, %v185
  %v198 = vpack.c.bf16 %v188, %v187
  %v199 = vpack.c.bf16 %v190, %v189
  %v200 = vpack.c.bf16 %v192, %v191
  %209 = vrot.lane.b32.xlu0 %v193, 16
  %v210 = vpop.permute.xlu0 %209
  %211 = vrot.lane.b32.xlu0 %v194, 16
  %v212 = vpop.permute.xlu0 %211
  %213 = vrot.lane.b32.xlu0 %v195, 16
  %v214 = vpop.permute.xlu0 %213
  %215 = vrot.lane.b32.xlu0 %v196, 16
  %v216 = vpop.permute.xlu0 %215
  %217 = vrot.lane.b32.xlu0 %v197, 16
  %v218 = vpop.permute.xlu0 %217
  %219 = vrot.lane.b32.xlu0 %v198, 16
  %v220 = vpop.permute.xlu0 %219
  %221 = vrot.lane.b32.xlu0 %v199, 16
  %v222 = vpop.permute.xlu0 %221
  %223 = vrot.lane.b32.xlu0 %v200, 16
  %v224 = vpop.permute.xlu0 %223
  %vm233 = vcmask 195712
  %234 = vst.msk [vmem:[#allocation3] sm:$0xff] %vm233, %v210
  %235 = vst.msk [vmem:[#allocation3 + $0x8] sm:$0xff] %vm233, %v212
  %236 = vst.msk [vmem:[#allocation3 + $0x10] sm:$0xff] %vm233, %v214
  %237 = vst.msk [vmem:[#allocation3 + $0x18] sm:$0xff] %vm233, %v216
  %238 = vst.msk [vmem:[#allocation3 + $0x20] sm:$0xff] %vm233, %v218
  %239 = vst.msk [vmem:[#allocation3 + $0x28] sm:$0xff] %vm233, %v220
  %240 = vst.msk [vmem:[#allocation3 + $0x30] sm:$0xff] %vm233, %v222
  %241 = vst.msk [vmem:[#allocation3 + $0x38] sm:$0xff] %vm233, %v224
  %s242 = scalar_lea.vmem %s0, 576
  %v243 = vld [vmem:[%s242] sm:$0xff]
  %v244 = vld [vmem:[%s242 + $0x10] sm:$0xff]
  %v245 = vld [vmem:[%s242 + $0x20] sm:$0xff]
  %v246 = vld [vmem:[%s242 + $0x30] sm:$0xff]
  %v247 = vld [vmem:[%s242 + $0x40] sm:$0xff]
  %v248 = vld [vmem:[%s242 + $0x50] sm:$0xff]
  %v249 = vld [vmem:[%s242 + $0x60] sm:$0xff]
  %v250 = vld [vmem:[%s242 + $0x70] sm:$0xff]
  %v251 = vld [vmem:[%s242 + $0x90] sm:$0xff]
  %v252 = vld [vmem:[%s242 + $0xa0] sm:$0xff]
  %v253 = vld [vmem:[%s242 + $0xb0] sm:$0xff]
  %v254 = vld [vmem:[%s242 + $0xc0] sm:$0xff]
  %v255 = vld [vmem:[%s242 + $0xd0] sm:$0xff]
  %v256 = vld [vmem:[%s242 + $0xe0] sm:$0xff]
  %v257 = vld [vmem:[%s242 + $0xf0] sm:$0xff]
  %v258 = vld [vmem:[%s242 + $0x100] sm:$0xff]
  %v259 = vpack.c.bf16 %v244, %v243
  %v260 = vpack.c.bf16 %v246, %v245
  %v261 = vpack.c.bf16 %v248, %v247
  %v262 = vpack.c.bf16 %v250, %v249
  %v263 = vpack.c.bf16 %v252, %v251
  %v264 = vpack.c.bf16 %v254, %v253
  %v265 = vpack.c.bf16 %v256, %v255
  %v266 = vpack.c.bf16 %v258, %v257
  %275 = vrot.lane.b32.xlu0 %v259, 24
  %v276 = vpop.permute.xlu0 %275
  %277 = vrot.lane.b32.xlu0 %v260, 24
  %v278 = vpop.permute.xlu0 %277
  %279 = vrot.lane.b32.xlu0 %v261, 24
  %v280 = vpop.permute.xlu0 %279
  %281 = vrot.lane.b32.xlu0 %v262, 24
  %v282 = vpop.permute.xlu0 %281
  %283 = vrot.lane.b32.xlu0 %v263, 24
  %v284 = vpop.permute.xlu0 %283
  %285 = vrot.lane.b32.xlu0 %v264, 24
  %v286 = vpop.permute.xlu0 %285
  %287 = vrot.lane.b32.xlu0 %v265, 24
  %v288 = vpop.permute.xlu0 %287
  %289 = vrot.lane.b32.xlu0 %v266, 24
  %v290 = vpop.permute.xlu0 %289
  %vm299 = vcmask 261312
  %300 = vst.msk [vmem:[#allocation3] sm:$0xff] %vm299, %v276
  %301 = vst.msk [vmem:[#allocation3 + $0x8] sm:$0xff] %vm299, %v278
  %302 = vst.msk [vmem:[#allocation3 + $0x10] sm:$0xff] %vm299, %v280
  %303 = vst.msk [vmem:[#allocation3 + $0x18] sm:$0xff] %vm299, %v282
  %304 = vst.msk [vmem:[#allocation3 + $0x20] sm:$0xff] %vm299, %v284
  %305 = vst.msk [vmem:[#allocation3 + $0x28] sm:$0xff] %vm299, %v286
  %306 = vst.msk [vmem:[#allocation3 + $0x30] sm:$0xff] %vm299, %v288
  %307 = vst.msk [vmem:[#allocation3 + $0x38] sm:$0xff] %vm299, %v290
  %s308 = scalar_lea.vmem %s0, 864
  %v309 = vld [vmem:[%s308] sm:$0xff]
  %v310 = vld [vmem:[%s308 + $0x10] sm:$0xff]
  %v311 = vld [vmem:[%s308 + $0x20] sm:$0xff]
  %v312 = vld [vmem:[%s308 + $0x30] sm:$0xff]
  %v313 = vld [vmem:[%s308 + $0x40] sm:$0xff]
  %v314 = vld [vmem:[%s308 + $0x50] sm:$0xff]
  %v315 = vld [vmem:[%s308 + $0x60] sm:$0xff]
  %v316 = vld [vmem:[%s308 + $0x70] sm:$0xff]
  %v317 = vld [vmem:[%s308 + $0x90] sm:$0xff]
  %v318 = vld [vmem:[%s308 + $0xa0] sm:$0xff]
  %v319 = vld [vmem:[%s308 + $0xb0] sm:$0xff]
  %v320 = vld [vmem:[%s308 + $0xc0] sm:$0xff]
  %v321 = vld [vmem:[%s308 + $0xd0] sm:$0xff]
  %v322 = vld [vmem:[%s308 + $0xe0] sm:$0xff]
  %v323 = vld [vmem:[%s308 + $0xf0] sm:$0xff]
  %v324 = vld [vmem:[%s308 + $0x100] sm:$0xff]
  %v325 = vpack.c.bf16 %v310, %v309
  %v326 = vpack.c.bf16 %v312, %v311
  %v327 = vpack.c.bf16 %v314, %v313
  %v328 = vpack.c.bf16 %v316, %v315
  %v329 = vpack.c.bf16 %v318, %v317
  %v330 = vpack.c.bf16 %v320, %v319
  %v331 = vpack.c.bf16 %v322, %v321
  %v332 = vpack.c.bf16 %v324, %v323
  %341 = vrot.lane.b32.xlu0 %v325, 32
  %v342 = vpop.permute.xlu0 %341
  %343 = vrot.lane.b32.xlu0 %v326, 32
  %v344 = vpop.permute.xlu0 %343
  %345 = vrot.lane.b32.xlu0 %v327, 32
  %v346 = vpop.permute.xlu0 %345
  %347 = vrot.lane.b32.xlu0 %v328, 32
  %v348 = vpop.permute.xlu0 %347
  %349 = vrot.lane.b32.xlu0 %v329, 32
  %v350 = vpop.permute.xlu0 %349
  %351 = vrot.lane.b32.xlu0 %v330, 32
  %v352 = vpop.permute.xlu0 %351
  %353 = vrot.lane.b32.xlu0 %v331, 32
  %v354 = vpop.permute.xlu0 %353
  %355 = vrot.lane.b32.xlu0 %v332, 32
  %v356 = vpop.permute.xlu0 %355
  %vm365 = vcmask 326912
  %366 = vst.msk [vmem:[#allocation3] sm:$0xff] %vm365, %v342
  %367 = vst.msk [vmem:[#allocation3 + $0x8] sm:$0xff] %vm365, %v344
  %368 = vst.msk [vmem:[#allocation3 + $0x10] sm:$0xff] %vm365, %v346
  %369 = vst.msk [vmem:[#allocation3 + $0x18] sm:$0xff] %vm365, %v348
  %370 = vst.msk [vmem:[#allocation3 + $0x20] sm:$0xff] %vm365, %v350
  %371 = vst.msk [vmem:[#allocation3 + $0x28] sm:$0xff] %vm365, %v352
  %372 = vst.msk [vmem:[#allocation3 + $0x30] sm:$0xff] %vm365, %v354
  %373 = vst.msk [vmem:[#allocation3 + $0x38] sm:$0xff] %vm365, %v356
  %v374 = vld [vmem:[%s242 + $0x1] sm:$0xff]
  %v375 = vld [vmem:[%s242 + $0x11] sm:$0xff]
  %v376 = vld [vmem:[%s242 + $0x21] sm:$0xff]
  %v377 = vld [vmem:[%s242 + $0x31] sm:$0xff]
  %v378 = vld [vmem:[%s242 + $0x41] sm:$0xff]
  %v379 = vld [vmem:[%s242 + $0x51] sm:$0xff]
  %v380 = vld [vmem:[%s242 + $0x61] sm:$0xff]
  %v381 = vld [vmem:[%s242 + $0x71] sm:$0xff]
  %v382 = vld [vmem:[%s242 + $0x91] sm:$0xff]
  %v383 = vld [vmem:[%s242 + $0xa1] sm:$0xff]
  %v384 = vld [vmem:[%s242 + $0xb1] sm:$0xff]
  %v385 = vld [vmem:[%s242 + $0xc1] sm:$0xff]
  %v386 = vld [vmem:[%s242 + $0xd1] sm:$0xff]
  %v387 = vld [vmem:[%s242 + $0xe1] sm:$0xff]
  %v388 = vld [vmem:[%s242 + $0xf1] sm:$0xff]
  %v389 = vld [vmem:[%s242 + $0x101] sm:$0xff]
  %v390 = vpack.c.bf16 %v375, %v374
  %v391 = vpack.c.bf16 %v377, %v376
  %v392 = vpack.c.bf16 %v379, %v378
  %v393 = vpack.c.bf16 %v381, %v380
  %v394 = vpack.c.bf16 %v383, %v382
  %v395 = vpack.c.bf16 %v385, %v384
  %v396 = vpack.c.bf16 %v387, %v386
  %v397 = vpack.c.bf16 %v389, %v388
  %406 = vrot.lane.b32.xlu0 %v390, 40
  %v407 = vpop.permute.xlu0 %406
  %408 = vrot.lane.b32.xlu0 %v391, 40
  %v409 = vpop.permute.xlu0 %408
  %410 = vrot.lane.b32.xlu0 %v392, 40
  %v411 = vpop.permute.xlu0 %410
  %412 = vrot.lane.b32.xlu0 %v393, 40
  %v413 = vpop.permute.xlu0 %412
  %414 = vrot.lane.b32.xlu0 %v394, 40
  %v415 = vpop.permute.xlu0 %414
  %416 = vrot.lane.b32.xlu0 %v395, 40
  %v417 = vpop.permute.xlu0 %416
  %418 = vrot.lane.b32.xlu0 %v396, 40
  %v419 = vpop.permute.xlu0 %418
  %420 = vrot.lane.b32.xlu0 %v397, 40
  %v421 = vpop.permute.xlu0 %420
  %vm430 = vcmask 392512
  %431 = vst.msk [vmem:[#allocation3] sm:$0xff] %vm430, %v407
  %432 = vst.msk [vmem:[#allocation3 + $0x8] sm:$0xff] %vm430, %v409
  %433 = vst.msk [vmem:[#allocation3 + $0x10] sm:$0xff] %vm430, %v411
  %434 = vst.msk [vmem:[#allocation3 + $0x18] sm:$0xff] %vm430, %v413
  %435 = vst.msk [vmem:[#allocation3 + $0x20] sm:$0xff] %vm430, %v415
  %436 = vst.msk [vmem:[#allocation3 + $0x28] sm:$0xff] %vm430, %v417
  %437 = vst.msk [vmem:[#allocation3 + $0x30] sm:$0xff] %vm430, %v419
  %438 = vst.msk [vmem:[#allocation3 + $0x38] sm:$0xff] %vm430, %v421
  %s439 = scalar_lea.vmem %s0, 16
  %v440 = vld [vmem:[%s439] sm:$0xff]
  %v441 = vld [vmem:[%s439 + $0x10] sm:$0xff]
  %v442 = vld [vmem:[%s439 + $0x20] sm:$0xff]
  %v443 = vld [vmem:[%s439 + $0x30] sm:$0xff]
  %v444 = vld [vmem:[%s439 + $0x40] sm:$0xff]
  %v445 = vld [vmem:[%s439 + $0x50] sm:$0xff]
  %v446 = vld [vmem:[%s439 + $0x60] sm:$0xff]
  %v447 = vld [vmem:[%s439 + $0x70] sm:$0xff]
  %v448 = vld [vmem:[%s439 + $0x90] sm:$0xff]
  %v449 = vld [vmem:[%s439 + $0xa0] sm:$0xff]
  %v450 = vld [vmem:[%s439 + $0xb0] sm:$0xff]
  %v451 = vld [vmem:[%s439 + $0xc0] sm:$0xff]
  %v452 = vld [vmem:[%s439 + $0xd0] sm:$0xff]
  %v453 = vld [vmem:[%s439 + $0xe0] sm:$0xff]
  %v454 = vld [vmem:[%s439 + $0xf0] sm:$0xff]
  %v455 = vld [vmem:[%s439 + $0x100] sm:$0xff]
  %v456 = vpack.c.bf16 %v441, %v440
  %v457 = vpack.c.bf16 %v443, %v442
  %v458 = vpack.c.bf16 %v445, %v444
  %v459 = vpack.c.bf16 %v447, %v446
  %v460 = vpack.c.bf16 %v449, %v448
  %v461 = vpack.c.bf16 %v451, %v450
  %v462 = vpack.c.bf16 %v453, %v452
  %v463 = vpack.c.bf16 %v455, %v454
  %472 = vrot.lane.b32.xlu0 %v456, 48
  %v473 = vpop.permute.xlu0 %472
  %474 = vrot.lane.b32.xlu0 %v457, 48
  %v475 = vpop.permute.xlu0 %474
  %476 = vrot.lane.b32.xlu0 %v458, 48
  %v477 = vpop.permute.xlu0 %476
  %478 = vrot.lane.b32.xlu0 %v459, 48
  %v479 = vpop.permute.xlu0 %478
  %480 = vrot.lane.b32.xlu0 %v460, 48
  %v481 = vpop.permute.xlu0 %480
  %482 = vrot.lane.b32.xlu0 %v461, 48
  %v483 = vpop.permute.xlu0 %482
  %484 = vrot.lane.b32.xlu0 %v462, 48
  %v485 = vpop.permute.xlu0 %484
  %486 = vrot.lane.b32.xlu0 %v463, 48
  %v487 = vpop.permute.xlu0 %486
  %vm496 = vcmask 458112
  %497 = vst.msk [vmem:[#allocation3] sm:$0xff] %vm496, %v473
  %498 = vst.msk [vmem:[#allocation3 + $0x8] sm:$0xff] %vm496, %v475
  %499 = vst.msk [vmem:[#allocation3 + $0x10] sm:$0xff] %vm496, %v477
  %500 = vst.msk [vmem:[#allocation3 + $0x18] sm:$0xff] %vm496, %v479
  %501 = vst.msk [vmem:[#allocation3 + $0x20] sm:$0xff] %vm496, %v481
  %502 = vst.msk [vmem:[#allocation3 + $0x28] sm:$0xff] %vm496, %v483
  %503 = vst.msk [vmem:[#allocation3 + $0x30] sm:$0xff] %vm496, %v485
  %504 = vst.msk [vmem:[#allocation3 + $0x38] sm:$0xff] %vm496, %v487
  %s505 = scalar_lea.vmem %s0, 304
  %v506 = vld [vmem:[%s505] sm:$0xff]
  %v507 = vld [vmem:[%s505 + $0x10] sm:$0xff]
  %v508 = vld [vmem:[%s505 + $0x20] sm:$0xff]
  %v509 = vld [vmem:[%s505 + $0x30] sm:$0xff]
  %v510 = vld [vmem:[%s505 + $0x40] sm:$0xff]
  %v511 = vld [vmem:[%s505 + $0x50] sm:$0xff]
  %v512 = vld [vmem:[%s505 + $0x60] sm:$0xff]
  %v513 = vld [vmem:[%s505 + $0x70] sm:$0xff]
  %v514 = vld [vmem:[%s505 + $0x90] sm:$0xff]
  %v515 = vld [vmem:[%s505 + $0xa0] sm:$0xff]
  %v516 = vld [vmem:[%s505 + $0xb0] sm:$0xff]
  %v517 = vld [vmem:[%s505 + $0xc0] sm:$0xff]
  %v518 = vld [vmem:[%s505 + $0xd0] sm:$0xff]
  %v519 = vld [vmem:[%s505 + $0xe0] sm:$0xff]
  %v520 = vld [vmem:[%s505 + $0xf0] sm:$0xff]
  %v521 = vld [vmem:[%s505 + $0x100] sm:$0xff]
  %v522 = vpack.c.bf16 %v507, %v506
  %v523 = vpack.c.bf16 %v509, %v508
  %v524 = vpack.c.bf16 %v511, %v510
  %v525 = vpack.c.bf16 %v513, %v512
  %v526 = vpack.c.bf16 %v515, %v514
  %v527 = vpack.c.bf16 %v517, %v516
  %v528 = vpack.c.bf16 %v519, %v518
  %v529 = vpack.c.bf16 %v521, %v520
  %538 = vrot.lane.b32.xlu0 %v522, 56
  %v539 = vpop.permute.xlu0 %538
  %540 = vrot.lane.b32.xlu0 %v523, 56
  %v541 = vpop.permute.xlu0 %540
  %542 = vrot.lane.b32.xlu0 %v524, 56
  %v543 = vpop.permute.xlu0 %542
  %544 = vrot.lane.b32.xlu0 %v525, 56
  %v545 = vpop.permute.xlu0 %544
  %546 = vrot.lane.b32.xlu0 %v526, 56
  %v547 = vpop.permute.xlu0 %546
  %548 = vrot.lane.b32.xlu0 %v527, 56
  %v549 = vpop.permute.xlu0 %548
  %550 = vrot.lane.b32.xlu0 %v528, 56
  %v551 = vpop.permute.xlu0 %550
  %552 = vrot.lane.b32.xlu0 %v529, 56
  %v553 = vpop.permute.xlu0 %552
  %vm562 = vcmask 523712
  %563 = vst.msk [vmem:[#allocation3] sm:$0xff] %vm562, %v539
  %564 = vst.msk [vmem:[#allocation3 + $0x8] sm:$0xff] %vm562, %v541
  %565 = vst.msk [vmem:[#allocation3 + $0x10] sm:$0xff] %vm562, %v543
  %566 = vst.msk [vmem:[#allocation3 + $0x18] sm:$0xff] %vm562, %v545
  %567 = vst.msk [vmem:[#allocation3 + $0x20] sm:$0xff] %vm562, %v547
  %568 = vst.msk [vmem:[#allocation3 + $0x28] sm:$0xff] %vm562, %v549
  %569 = vst.msk [vmem:[#allocation3 + $0x30] sm:$0xff] %vm562, %v551
  %570 = vst.msk [vmem:[#allocation3 + $0x38] sm:$0xff] %vm562, %v553
  %v571 = vld [vmem:[%s439 + $0x1] sm:$0xff]
  %v572 = vld [vmem:[%s439 + $0x11] sm:$0xff]
  %v573 = vld [vmem:[%s439 + $0x21] sm:$0xff]
  %v574 = vld [vmem:[%s439 + $0x31] sm:$0xff]
  %v575 = vld [vmem:[%s439 + $0x41] sm:$0xff]
  %v576 = vld [vmem:[%s439 + $0x51] sm:$0xff]
  %v577 = vld [vmem:[%s439 + $0x61] sm:$0xff]
  %v578 = vld [vmem:[%s439 + $0x71] sm:$0xff]
  %v579 = vld [vmem:[%s439 + $0x91] sm:$0xff]
  %v580 = vld [vmem:[%s439 + $0xa1] sm:$0xff]
  %v581 = vld [vmem:[%s439 + $0xb1] sm:$0xff]
  %v582 = vld [vmem:[%s439 + $0xc1] sm:$0xff]
  %v583 = vld [vmem:[%s439 + $0xd1] sm:$0xff]
  %v584 = vld [vmem:[%s439 + $0xe1] sm:$0xff]
  %v585 = vld [vmem:[%s439 + $0xf1] sm:$0xff]
  %v586 = vld [vmem:[%s439 + $0x101] sm:$0xff]
  %v587 = vpack.c.bf16 %v572, %v571
  %v588 = vpack.c.bf16 %v574, %v573
  %v589 = vpack.c.bf16 %v576, %v575
  %v590 = vpack.c.bf16 %v578, %v577
  %v591 = vpack.c.bf16 %v580, %v579
  %v592 = vpack.c.bf16 %v582, %v581
  %v593 = vpack.c.bf16 %v584, %v583
  %v594 = vpack.c.bf16 %v586, %v585
  %603 = vrot.lane.b32.xlu0 %v587, 64
  %v604 = vpop.permute.xlu0 %603
  %605 = vrot.lane.b32.xlu0 %v588, 64
  %v606 = vpop.permute.xlu0 %605
  %607 = vrot.lane.b32.xlu0 %v589, 64
  %v608 = vpop.permute.xlu0 %607
  %609 = vrot.lane.b32.xlu0 %v590, 64
  %v610 = vpop.permute.xlu0 %609
  %611 = vrot.lane.b32.xlu0 %v591, 64
  %v612 = vpop.permute.xlu0 %611
  %613 = vrot.lane.b32.xlu0 %v592, 64
  %v614 = vpop.permute.xlu0 %613
  %615 = vrot.lane.b32.xlu0 %v593, 64
  %v616 = vpop.permute.xlu0 %615
  %617 = vrot.lane.b32.xlu0 %v594, 64
  %v618 = vpop.permute.xlu0 %617
  %vm627 = vcmask 589312
  %628 = vst.msk [vmem:[#allocation3] sm:$0xff] %vm627, %v604
  %629 = vst.msk [vmem:[#allocation3 + $0x8] sm:$0xff] %vm627, %v606
  %630 = vst.msk [vmem:[#allocation3 + $0x10] sm:$0xff] %vm627, %v608
  %631 = vst.msk [vmem:[#allocation3 + $0x18] sm:$0xff] %vm627, %v610
  %632 = vst.msk [vmem:[#allocation3 + $0x20] sm:$0xff] %vm627, %v612
  %633 = vst.msk [vmem:[#allocation3 + $0x28] sm:$0xff] %vm627, %v614
  %634 = vst.msk [vmem:[#allocation3 + $0x30] sm:$0xff] %vm627, %v616
  %635 = vst.msk [vmem:[#allocation3 + $0x38] sm:$0xff] %vm627, %v618
  %v636 = vld [vmem:[#allocation3] sm:$0xff]
  %v637 = vld [vmem:[#allocation3 + $0x8] sm:$0xff]
  %v638 = vld [vmem:[#allocation3 + $0x10] sm:$0xff]
  %v639 = vld [vmem:[#allocation3 + $0x18] sm:$0xff]
  %v640 = vld [vmem:[#allocation3 + $0x20] sm:$0xff]
  %v641 = vld [vmem:[#allocation3 + $0x28] sm:$0xff]
  %v642 = vld [vmem:[#allocation3 + $0x30] sm:$0xff]
  %v643 = vld [vmem:[#allocation3 + $0x38] sm:$0xff]
  %v644 = vld [vmem:[%s1] sm:$0xff]
  %v645 = vld [vmem:[%s1 + $0x8] sm:$0xff]
  %v646 = vld [vmem:[%s1 + $0x10] sm:$0xff]
  %v647 = vld [vmem:[%s1 + $0x18] sm:$0xff]
  %v648 = vld [vmem:[%s1 + $0x20] sm:$0xff]
  %v649 = vld [vmem:[%s1 + $0x28] sm:$0xff]
  %v650 = vld [vmem:[%s1 + $0x30] sm:$0xff]
  %v651 = vld [vmem:[%s1 + $0x38] sm:$0xff]
  %v652 = vld [vmem:[%s1 + $0x40] sm:$0xff]
  %v653 = vld [vmem:[%s2] sm:$0x3]
  %v655 = vlaneseq
  %v656 = vshrl.u32 %v655, 7
  %v657 = vsub.s32 0, %v656
  %v658 = vrot.slane %v653, %v657
  %v659 = vlaneseq
  %v660 = vshrl.u32 %v659, 7
  %v661 = vsub.s32 1, %v660
  %v662 = vrot.slane %v653, %v661
  %v674 = vunpack.c.l.b16 %v644
  %v675 = vunpack.c.h.b16 %v644
  %v676 = vunpack.c.l.b16 %v645
  %v677 = vunpack.c.h.b16 %v645
  %v678 = vunpack.c.l.b16 %v646
  %v679 = vunpack.c.h.b16 %v646
  %v680 = vunpack.c.l.b16 %v647
  %v681 = vunpack.c.h.b16 %v647
  %v682 = vunpack.c.l.b16 %v648
  %v683 = vunpack.c.h.b16 %v648
  %v684 = vunpack.c.l.b16 %v649
  %v685 = vunpack.c.h.b16 %v649
  %v686 = vunpack.c.l.b16 %v650
  %v687 = vunpack.c.h.b16 %v650
  %v688 = vunpack.c.l.b16 %v651
  %v689 = vunpack.c.h.b16 %v651
  %v690 = vunpack.c.l.b16 %v652
  %v691 = vunpack.c.h.b16 %v652
  %v692 = vpack.c.b16 %v676, %v674
  %v693 = vpack.c.b16 %v677, %v675
  %v694 = vpack.c.b16 %v680, %v678
  %v695 = vpack.c.b16 %v681, %v679
  %v696 = vpack.c.b16 %v684, %v682
  %v697 = vpack.c.b16 %v685, %v683
  %v698 = vpack.c.b16 %v688, %v686
  %v699 = vpack.c.b16 %v689, %v687
  %v700 = vpack.c.b16 %v690, %v690
  %v701 = vpack.c.b16 %v691, %v691
  %vm710 = vcmask 588800
  %v712 = vsel %vm710, %v636, 0
  %v715 = vsel %vm710, %v637, 0
  %v718 = vsel %vm710, %v638, 0
  %v721 = vsel %vm710, %v639, 0
  %v724 = vsel %vm710, %v640, 0
  %v727 = vsel %vm710, %v641, 0
  %v730 = vsel %vm710, %v642, 0
  %v733 = vsel %vm710, %v643, 0
  %vm735 = vcmask 1043456
  %v737 = vsel %vm735, %v700, 0
  %v740 = vsel %vm735, %v701, 0
  %742 = vmatprep.subr.bf16.mxu0 %v693
  %743 = vmatpush1.bf16.msra.mxu0 %v692
  %744 = vmatprep.subr.bf16.mxu0 %v695
  %745 = vmatpush1.bf16.msra.mxu0 %v694
  %746 = vmatprep.subr.bf16.mxu0 %v697
  %747 = vmatpush1.bf16.msra.mxu0 %v696
  %748 = vmatprep.subr.bf16.mxu0 %v699
  %749 = vmatpush1.bf16.msra.mxu0 %v698
  %750 = vmatprep.subr.bf16.mxu0 %v740
  %751 = vmatpush1.bf16.msra.mxu0 %v737
  %752 = vmatprep.subr.bf16.mxu0 0
  %753 = vmatpush1.bf16.msra.mxu0 0
  %754 = vmatprep.subr.bf16.mxu0 0
  %755 = vmatpush1.bf16.msra.mxu0 0
  %756 = vmatprep.subr.bf16.mxu0 0
  %757 = vmatpush1.bf16.msra.mxu0 0
  %758 = vmatprep.subr.bf16.mxu0 0
  %759 = vmatpush1.bf16.msra.mxu0 0
  %760 = vmatprep.subr.bf16.mxu0 0
  %761 = vmatpush1.bf16.msra.mxu0 0
  %762 = vmatprep.subr.bf16.mxu0 0
  %763 = vmatpush1.bf16.msra.mxu0 0
  %764 = vmatprep.subr.bf16.mxu0 0
  %765 = vmatpush1.bf16.msra.mxu0 0
  %766 = vmatprep.subr.bf16.mxu0 0
  %767 = vmatpush1.bf16.msra.mxu0 0
  %768 = vmatprep.subr.bf16.mxu0 0
  %769 = vmatpush1.bf16.msra.mxu0 0
  %770 = vmatprep.subr.bf16.mxu0 0
  %771 = vmatpush1.bf16.msra.mxu0 0
  %772 = vmatprep.subr.bf16.mxu0 0
  %773 = vmatpush1.bf16.msra.mxu0 0
  %774 = vmatprep.mubr.bf16.mxu0 0
  %775 = vmatmul.mubr.bf16.gmra.mrb[0].mxu0 %v712
  %v776 = vpop.f32.mrb[0].mxu0
  %v777 = vadd.f32 %v658, %v776
  %v778 = vpop.f32.mrb[0].mxu0
  %v779 = vadd.f32 %v662, %v778
  %v780 = vpop.f32.mrb[0].mxu0
  %v781 = vadd.f32 %v658, %v780
  %v782 = vpop.f32.mrb[0].mxu0
  %v783 = vadd.f32 %v662, %v782
  %784 = vmatprep.mubr.bf16.mxu0 0
  %785 = vmatmul.mubr.bf16.gmra.mrb[0].mxu0 %v715
  %v786 = vpop.f32.mrb[0].mxu0
  %v787 = vadd.f32 %v658, %v786
  %v788 = vpop.f32.mrb[0].mxu0
  %v789 = vadd.f32 %v662, %v788
  %v790 = vpop.f32.mrb[0].mxu0
  %v791 = vadd.f32 %v658, %v790
  %v792 = vpop.f32.mrb[0].mxu0
  %v793 = vadd.f32 %v662, %v792
  %794 = vmatprep.mubr.bf16.mxu0 0
  %795 = vmatmul.mubr.bf16.gmra.mrb[0].mxu0 %v718
  %v796 = vpop.f32.mrb[0].mxu0
  %v797 = vadd.f32 %v658, %v796
  %v798 = vpop.f32.mrb[0].mxu0
  %v799 = vadd.f32 %v662, %v798
  %v800 = vpop.f32.mrb[0].mxu0
  %v801 = vadd.f32 %v658, %v800
  %v802 = vpop.f32.mrb[0].mxu0
  %v803 = vadd.f32 %v662, %v802
  %804 = vmatprep.mubr.bf16.mxu0 0
  %805 = vmatmul.mubr.bf16.gmra.mrb[0].mxu0 %v721
  %v806 = vpop.f32.mrb[0].mxu0
  %v807 = vadd.f32 %v658, %v806
  %v808 = vpop.f32.mrb[0].mxu0
  %v809 = vadd.f32 %v662, %v808
  %v810 = vpop.f32.mrb[0].mxu0
  %v811 = vadd.f32 %v658, %v810
  %v812 = vpop.f32.mrb[0].mxu0
  %v813 = vadd.f32 %v662, %v812
  %814 = vmatprep.mubr.bf16.mxu0 0
  %815 = vmatmul.mubr.bf16.gmra.mrb[0].mxu0 %v724
  %v816 = vpop.f32.mrb[0].mxu0
  %v817 = vadd.f32 %v658, %v816
  %v818 = vpop.f32.mrb[0].mxu0
  %v819 = vadd.f32 %v662, %v818
  %v820 = vpop.f32.mrb[0].mxu0
  %v821 = vadd.f32 %v658, %v820
  %v822 = vpop.f32.mrb[0].mxu0
  %v823 = vadd.f32 %v662, %v822
  %824 = vmatprep.mubr.bf16.mxu0 0
  %825 = vmatmul.mubr.bf16.gmra.mrb[0].mxu0 %v727
  %v826 = vpop.f32.mrb[0].mxu0
  %v827 = vadd.f32 %v658, %v826
  %v828 = vpop.f32.mrb[0].mxu0
  %v829 = vadd.f32 %v662, %v828
  %v830 = vpop.f32.mrb[0].mxu0
  %v831 = vadd.f32 %v658, %v830
  %v832 = vpop.f32.mrb[0].mxu0
  %v833 = vadd.f32 %v662, %v832
  %834 = vmatprep.mubr.bf16.mxu0 0
  %835 = vmatmul.mubr.bf16.gmra.mrb[0].mxu0 %v730
  %v836 = vpop.f32.mrb[0].mxu0
  %v837 = vadd.f32 %v658, %v836
  %v838 = vpop.f32.mrb[0].mxu0
  %v839 = vadd.f32 %v662, %v838
  %v840 = vpop.f32.mrb[0].mxu0
  %v841 = vadd.f32 %v658, %v840
  %v842 = vpop.f32.mrb[0].mxu0
  %v843 = vadd.f32 %v662, %v842
  %844 = vmatprep.mubr.bf16.mxu0 0
  %845 = vmatmul.mubr.bf16.gmra.mrb[0].mxu0 %v733
  %v846 = vpop.f32.mrb[0].mxu0
  %v847 = vadd.f32 %v658, %v846
  %v848 = vpop.f32.mrb[0].mxu0
  %v849 = vadd.f32 %v662, %v848
  %v850 = vpop.f32.mrb[0].mxu0
  %v851 = vadd.f32 %v658, %v850
  %v852 = vpop.f32.mrb[0].mxu0
  %v853 = vadd.f32 %v662, %v852
  %854 = vdwg.mxu0
  %855 = vst [vmem:[#allocation5] sm:$0xff] %v779
  %856 = vst [vmem:[#allocation5 + $0x8] sm:$0xff] %v783
  %857 = vst [vmem:[#allocation5 + $0x10] sm:$0xff] %v789
  %858 = vst [vmem:[#allocation5 + $0x18] sm:$0xff] %v793
  %859 = vst [vmem:[#allocation5 + $0x20] sm:$0xff] %v799
  %860 = vst [vmem:[#allocation5 + $0x28] sm:$0xff] %v803
  %861 = vst [vmem:[#allocation5 + $0x30] sm:$0xff] %v809
  %862 = vst [vmem:[#allocation5 + $0x38] sm:$0xff] %v813
  %863 = vst [vmem:[#allocation5 + $0x40] sm:$0xff] %v819
  %864 = vst [vmem:[#allocation5 + $0x48] sm:$0xff] %v823
  %865 = vst [vmem:[#allocation5 + $0x50] sm:$0xff] %v829
  %866 = vst [vmem:[#allocation5 + $0x58] sm:$0xff] %v833
  %867 = vst [vmem:[#allocation5 + $0x60] sm:$0xff] %v839
  %868 = vst [vmem:[#allocation5 + $0x68] sm:$0xff] %v843
  %869 = vst [vmem:[#allocation5 + $0x70] sm:$0xff] %v849
  %870 = vst [vmem:[#allocation5 + $0x78] sm:$0xff] %v853
  %v871 = vmax.f32 %v777, 0.0
  %v872 = vmax.f32 %v781, 0.0
  %v873 = vmax.f32 %v787, 0.0
  %v874 = vmax.f32 %v791, 0.0
  %v875 = vmax.f32 %v797, 0.0
  %v876 = vmax.f32 %v801, 0.0
  %v877 = vmax.f32 %v807, 0.0
  %v878 = vmax.f32 %v811, 0.0
  %v879 = vmax.f32 %v817, 0.0
  %v880 = vmax.f32 %v821, 0.0
  %v881 = vmax.f32 %v827, 0.0
  %v882 = vmax.f32 %v831, 0.0
  %v883 = vmax.f32 %v837, 0.0
  %v884 = vmax.f32 %v841, 0.0
  %v885 = vmax.f32 %v847, 0.0
  %v886 = vmax.f32 %v851, 0.0
  %v887 = vpack.c.bf16 %v872, %v871
  %v888 = vpack.c.bf16 %v874, %v873
  %v889 = vpack.c.bf16 %v876, %v875
  %v890 = vpack.c.bf16 %v878, %v877
  %v891 = vpack.c.bf16 %v880, %v879
  %v892 = vpack.c.bf16 %v882, %v881
  %v893 = vpack.c.bf16 %v884, %v883
  %v894 = vpack.c.bf16 %v886, %v885
  %v903 = vunpack.c.l.b16 %v887
  %v904 = vunpack.c.h.b16 %v887
  %v905 = vunpack.c.l.b16 %v888
  %v906 = vunpack.c.h.b16 %v888
  %v907 = vunpack.c.l.b16 %v889
  %v908 = vunpack.c.h.b16 %v889
  %v909 = vunpack.c.l.b16 %v890
  %v910 = vunpack.c.h.b16 %v890
  %v911 = vunpack.c.l.b16 %v891
  %v912 = vunpack.c.h.b16 %v891
  %v913 = vunpack.c.l.b16 %v892
  %v914 = vunpack.c.h.b16 %v892
  %v915 = vunpack.c.l.b16 %v893
  %v916 = vunpack.c.h.b16 %v893
  %v917 = vunpack.c.l.b16 %v894
  %v918 = vunpack.c.h.b16 %v894
  %v919 = vpack.c.b16 %v903, %v903
  %v920 = vpack.c.b16 %v904, %v904
  %v921 = vpack.c.b16 %v905, %v905
  %v922 = vpack.c.b16 %v906, %v906
  %v923 = vpack.c.b16 %v907, %v907
  %v924 = vpack.c.b16 %v908, %v908
  %v925 = vpack.c.b16 %v909, %v909
  %v926 = vpack.c.b16 %v910, %v910
  %v927 = vpack.c.b16 %v911, %v911
  %v928 = vpack.c.b16 %v912, %v912
  %v929 = vpack.c.b16 %v913, %v913
  %v930 = vpack.c.b16 %v914, %v914
  %v931 = vpack.c.b16 %v915, %v915
  %v932 = vpack.c.b16 %v916, %v916
  %v933 = vpack.c.b16 %v917, %v917
  %v934 = vpack.c.b16 %v918, %v918
  %s951 = scalar_lea.vmem [#allocation2], 12
  %952 = vst [vmem:[%s951 + $0x4] sm:$0xf] %v919
  %953 = vst [vmem:[%s951 + $0x10] sm:$0xf] %v920
  %954 = vst [vmem:[%s951 + $0x1c] sm:$0xf] %v921
  %955 = vst [vmem:[%s951 + $0x28] sm:$0xf] %v922
  %956 = vst [vmem:[%s951 + $0x34] sm:$0xf] %v923
  %957 = vst [vmem:[%s951 + $0x40] sm:$0xf] %v924
  %958 = vst [vmem:[%s951 + $0x4c] sm:$0xf] %v925
  %959 = vst [vmem:[%s951 + $0x58] sm:$0xf] %v926
  %960 = vst [vmem:[%s951 + $0x7c] sm:$0xf] %v927
  %961 = vst [vmem:[%s951 + $0x88] sm:$0xf] %v928
  %962 = vst [vmem:[%s951 + $0x94] sm:$0xf] %v929
  %963 = vst [vmem:[%s951 + $0xa0] sm:$0xf] %v930
  %964 = vst [vmem:[%s951 + $0xac] sm:$0xf] %v931
  %965 = vst [vmem:[%s951 + $0xb8] sm:$0xf] %v932
  %966 = vst [vmem:[%s951 + $0xc4] sm:$0xf] %v933
  %967 = vst [vmem:[%s951 + $0xd0] sm:$0xf] %v934
  %v968 = vld [vmem:[#allocation2] sm:$0x8]
  %v969 = vld [vmem:[#allocation2 + $0x4] sm:$0xf]
  %v970 = vld [vmem:[#allocation2 + $0xc] sm:$0x8]
  %v971 = vld [vmem:[#allocation2 + $0x10] sm:$0xf]
  %v972 = vld [vmem:[#allocation2 + $0x18] sm:$0x8]
  %v973 = vld [vmem:[#allocation2 + $0x1c] sm:$0xf]
  %v974 = vld [vmem:[#allocation2 + $0x24] sm:$0x8]
  %v975 = vld [vmem:[#allocation2 + $0x28] sm:$0xf]
  %v976 = vld [vmem:[#allocation2 + $0x30] sm:$0x8]
  %v977 = vld [vmem:[#allocation2 + $0x34] sm:$0xf]
  %v978 = vld [vmem:[#allocation2 + $0x3c] sm:$0x8]
  %v979 = vld [vmem:[#allocation2 + $0x40] sm:$0xf]
  %v980 = vld [vmem:[#allocation2 + $0x48] sm:$0x8]
  %v981 = vld [vmem:[#allocation2 + $0x4c] sm:$0xf]
  %v982 = vld [vmem:[#allocation2 + $0x54] sm:$0x8]
  %v983 = vld [vmem:[#allocation2 + $0x58] sm:$0xf]
  %v984 = vld [vmem:[#allocation2 + $0x78] sm:$0x8]
  %v985 = vld [vmem:[#allocation2 + $0x7c] sm:$0xf]
  %v986 = vld [vmem:[#allocation2 + $0x84] sm:$0x8]
  %v987 = vld [vmem:[#allocation2 + $0x88] sm:$0xf]
  %v988 = vld [vmem:[#allocation2 + $0x90] sm:$0x8]
  %v989 = vld [vmem:[#allocation2 + $0x94] sm:$0xf]
  %v990 = vld [vmem:[#allocation2 + $0x9c] sm:$0x8]
  %v991 = vld [vmem:[#allocation2 + $0xa0] sm:$0xf]
  %v992 = vld [vmem:[#allocation2 + $0xa8] sm:$0x8]
  %v993 = vld [vmem:[#allocation2 + $0xac] sm:$0xf]
  %v994 = vld [vmem:[#allocation2 + $0xb4] sm:$0x8]
  %v995 = vld [vmem:[#allocation2 + $0xb8] sm:$0xf]
  %v996 = vld [vmem:[#allocation2 + $0xc0] sm:$0x8]
  %v997 = vld [vmem:[#allocation2 + $0xc4] sm:$0xf]
  %v998 = vld [vmem:[#allocation2 + $0xcc] sm:$0x8]
  %v999 = vld [vmem:[#allocation2 + $0xd0] sm:$0xf]
  %vm1000 = vsmask.f32 256
  %vm1001 = vsmask.f32 4368
  %vm1002 = vmor %vm1000, %vm1001
  %v1004 = vshrl.u32 %v968, 16
  %v1006 = vrot.slane %v1004, 7
  %v1007 = vrot.slane %v1006, 4
  %v1009 = vshrl.u32 %v969, 16
  %v1011 = vrot.slane %v1009, 7
  %v1012 = vshll.u32 %v969, 16
  %v1014 = vor.u32 %v1011, %v1012
  %v1015 = vsel %vm1002, %v1007, %v1014
  %v1017 = vshrl.u32 %v970, 16
  %v1019 = vrot.slane %v1017, 7
  %v1020 = vrot.slane %v1019, 4
  %v1022 = vshrl.u32 %v971, 16
  %v1024 = vrot.slane %v1022, 7
  %v1025 = vshll.u32 %v971, 16
  %v1027 = vor.u32 %v1024, %v1025
  %v1028 = vsel %vm1002, %v1020, %v1027
  %v1030 = vshrl.u32 %v972, 16
  %v1032 = vrot.slane %v1030, 7
  %v1033 = vrot.slane %v1032, 4
  %v1035 = vshrl.u32 %v973, 16
  %v1037 = vrot.slane %v1035, 7
  %v1038 = vshll.u32 %v973, 16
  %v1040 = vor.u32 %v1037, %v1038
  %v1041 = vsel %vm1002, %v1033, %v1040
  %v1043 = vshrl.u32 %v974, 16
  %v1045 = vrot.slane %v1043, 7
  %v1046 = vrot.slane %v1045, 4
  %v1048 = vshrl.u32 %v975, 16
  %v1050 = vrot.slane %v1048, 7
  %v1051 = vshll.u32 %v975, 16
  %v1053 = vor.u32 %v1050, %v1051
  %v1054 = vsel %vm1002, %v1046, %v1053
  %v1056 = vshrl.u32 %v976, 16
  %v1058 = vrot.slane %v1056, 7
  %v1059 = vrot.slane %v1058, 4
  %v1061 = vshrl.u32 %v977, 16
  %v1063 = vrot.slane %v1061, 7
  %v1064 = vshll.u32 %v977, 16
  %v1066 = vor.u32 %v1063, %v1064
  %v1067 = vsel %vm1002, %v1059, %v1066
  %v1069 = vshrl.u32 %v978, 16
  %v1071 = vrot.slane %v1069, 7
  %v1072 = vrot.slane %v1071, 4
  %v1074 = vshrl.u32 %v979, 16
  %v1076 = vrot.slane %v1074, 7
  %v1077 = vshll.u32 %v979, 16
  %v1079 = vor.u32 %v1076, %v1077
  %v1080 = vsel %vm1002, %v1072, %v1079
  %v1082 = vshrl.u32 %v980, 16
  %v1084 = vrot.slane %v1082, 7
  %v1085 = vrot.slane %v1084, 4
  %v1087 = vshrl.u32 %v981, 16
  %v1089 = vrot.slane %v1087, 7
  %v1090 = vshll.u32 %v981, 16
  %v1092 = vor.u32 %v1089, %v1090
  %v1093 = vsel %vm1002, %v1085, %v1092
  %v1095 = vshrl.u32 %v982, 16
  %v1097 = vrot.slane %v1095, 7
  %v1098 = vrot.slane %v1097, 4
  %v1100 = vshrl.u32 %v983, 16
  %v1102 = vrot.slane %v1100, 7
  %v1103 = vshll.u32 %v983, 16
  %v1105 = vor.u32 %v1102, %v1103
  %v1106 = vsel %vm1002, %v1098, %v1105
  %v1108 = vshrl.u32 %v984, 16
  %v1110 = vrot.slane %v1108, 7
  %v1111 = vrot.slane %v1110, 4
  %v1113 = vshrl.u32 %v985, 16
  %v1115 = vrot.slane %v1113, 7
  %v1116 = vshll.u32 %v985, 16
  %v1118 = vor.u32 %v1115, %v1116
  %v1119 = vsel %vm1002, %v1111, %v1118
  %v1121 = vshrl.u32 %v986, 16
  %v1123 = vrot.slane %v1121, 7
  %v1124 = vrot.slane %v1123, 4
  %v1126 = vshrl.u32 %v987, 16
  %v1128 = vrot.slane %v1126, 7
  %v1129 = vshll.u32 %v987, 16
  %v1131 = vor.u32 %v1128, %v1129
  %v1132 = vsel %vm1002, %v1124, %v1131
  %v1134 = vshrl.u32 %v988, 16
  %v1136 = vrot.slane %v1134, 7
  %v1137 = vrot.slane %v1136, 4
  %v1139 = vshrl.u32 %v989, 16
  %v1141 = vrot.slane %v1139, 7
  %v1142 = vshll.u32 %v989, 16
  %v1144 = vor.u32 %v1141, %v1142
  %v1145 = vsel %vm1002, %v1137, %v1144
  %v1147 = vshrl.u32 %v990, 16
  %v1149 = vrot.slane %v1147, 7
  %v1150 = vrot.slane %v1149, 4
  %v1152 = vshrl.u32 %v991, 16
  %v1154 = vrot.slane %v1152, 7
  %v1155 = vshll.u32 %v991, 16
  %v1157 = vor.u32 %v1154, %v1155
  %v1158 = vsel %vm1002, %v1150, %v1157
  %v1160 = vshrl.u32 %v992, 16
  %v1162 = vrot.slane %v1160, 7
  %v1163 = vrot.slane %v1162, 4
  %v1165 = vshrl.u32 %v993, 16
  %v1167 = vrot.slane %v1165, 7
  %v1168 = vshll.u32 %v993, 16
  %v1170 = vor.u32 %v1167, %v1168
  %v1171 = vsel %vm1002, %v1163, %v1170
  %v1173 = vshrl.u32 %v994, 16
  %v1175 = vrot.slane %v1173, 7
  %v1176 = vrot.slane %v1175, 4
  %v1178 = vshrl.u32 %v995, 16
  %v1180 = vrot.slane %v1178, 7
  %v1181 = vshll.u32 %v995, 16
  %v1183 = vor.u32 %v1180, %v1181
  %v1184 = vsel %vm1002, %v1176, %v1183
  %v1186 = vshrl.u32 %v996, 16
  %v1188 = vrot.slane %v1186, 7
  %v1189 = vrot.slane %v1188, 4
  %v1191 = vshrl.u32 %v997, 16
  %v1193 = vrot.slane %v1191, 7
  %v1194 = vshll.u32 %v997, 16
  %v1196 = vor.u32 %v1193, %v1194
  %v1197 = vsel %vm1002, %v1189, %v1196
  %v1199 = vshrl.u32 %v998, 16
  %v1201 = vrot.slane %v1199, 7
  %v1202 = vrot.slane %v1201, 4
  %v1204 = vshrl.u32 %v999, 16
  %v1206 = vrot.slane %v1204, 7
  %v1207 = vshll.u32 %v999, 16
  %v1209 = vor.u32 %v1206, %v1207
  %v1210 = vsel %vm1002, %v1202, %v1209
  %v1211 = vunpack.c.l.b16 %v1015
  %v1212 = vunpack.c.l.b16 %v1028
  %v1213 = vunpack.c.l.b16 %v1041
  %v1214 = vunpack.c.l.b16 %v1054
  %v1215 = vunpack.c.l.b16 %v1067
  %v1216 = vunpack.c.l.b16 %v1080
  %v1217 = vunpack.c.l.b16 %v1093
  %v1218 = vunpack.c.l.b16 %v1106
  %v1219 = vunpack.c.l.b16 %v1119
  %v1220 = vunpack.c.l.b16 %v1132
  %v1221 = vunpack.c.l.b16 %v1145
  %v1222 = vunpack.c.l.b16 %v1158
  %v1223 = vunpack.c.l.b16 %v1171
  %v1224 = vunpack.c.l.b16 %v1184
  %v1225 = vunpack.c.l.b16 %v1197
  %v1226 = vunpack.c.l.b16 %v1210
  %v1227 = vpack.c.b16 %v1212, %v1211
  %v1228 = vpack.c.b16 %v1214, %v1213
  %v1229 = vpack.c.b16 %v1216, %v1215
  %v1230 = vpack.c.b16 %v1218, %v1217
  %v1231 = vpack.c.b16 %v1220, %v1219
  %v1232 = vpack.c.b16 %v1222, %v1221
  %v1233 = vpack.c.b16 %v1224, %v1223
  %v1234 = vpack.c.b16 %v1226, %v1225
  %1243 = vst [vmem:[#allocation4] sm:$0xff] %v1227
  %1244 = vst [vmem:[#allocation4 + $0x48] sm:$0xff] %v1228
  %1245 = vst [vmem:[#allocation4 + $0x90] sm:$0xff] %v1229
  %1246 = vst [vmem:[#allocation4 + $0xd8] sm:$0xff] %v1230
  %1247 = vst [vmem:[#allocation4 + $0x120] sm:$0xff] %v1231
  %1248 = vst [vmem:[#allocation4 + $0x168] sm:$0xff] %v1232
  %1249 = vst [vmem:[#allocation4 + $0x1b0] sm:$0xff] %v1233
  %1250 = vst [vmem:[#allocation4 + $0x1f8] sm:$0xff] %v1234
  %v1251 = vld [vmem:[#allocation2 + $0x4] sm:$0xf]
  %v1252 = vld [vmem:[#allocation2 + $0x10] sm:$0xf]
  %v1253 = vld [vmem:[#allocation2 + $0x1c] sm:$0xf]
  %v1254 = vld [vmem:[#allocation2 + $0x28] sm:$0xf]
  %v1255 = vld [vmem:[#allocation2 + $0x34] sm:$0xf]
  %v1256 = vld [vmem:[#allocation2 + $0x40] sm:$0xf]
  %v1257 = vld [vmem:[#allocation2 + $0x4c] sm:$0xf]
  %v1258 = vld [vmem:[#allocation2 + $0x58] sm:$0xf]
  %v1259 = vld [vmem:[#allocation2 + $0x7c] sm:$0xf]
  %v1260 = vld [vmem:[#allocation2 + $0x88] sm:$0xf]
  %v1261 = vld [vmem:[#allocation2 + $0x94] sm:$0xf]
  %v1262 = vld [vmem:[#allocation2 + $0xa0] sm:$0xf]
  %v1263 = vld [vmem:[#allocation2 + $0xac] sm:$0xf]
  %v1264 = vld [vmem:[#allocation2 + $0xb8] sm:$0xf]
  %v1265 = vld [vmem:[#allocation2 + $0xc4] sm:$0xf]
  %v1266 = vld [vmem:[#allocation2 + $0xd0] sm:$0xf]
  %v1283 = vunpack.c.l.b16 %v1251
  %v1284 = vunpack.c.l.b16 %v1252
  %v1285 = vunpack.c.l.b16 %v1253
  %v1286 = vunpack.c.l.b16 %v1254
  %v1287 = vunpack.c.l.b16 %v1255
  %v1288 = vunpack.c.l.b16 %v1256
  %v1289 = vunpack.c.l.b16 %v1257
  %v1290 = vunpack.c.l.b16 %v1258
  %v1291 = vunpack.c.l.b16 %v1259
  %v1292 = vunpack.c.l.b16 %v1260
  %v1293 = vunpack.c.l.b16 %v1261
  %v1294 = vunpack.c.l.b16 %v1262
  %v1295 = vunpack.c.l.b16 %v1263
  %v1296 = vunpack.c.l.b16 %v1264
  %v1297 = vunpack.c.l.b16 %v1265
  %v1298 = vunpack.c.l.b16 %v1266
  %v1299 = vpack.c.b16 %v1284, %v1283
  %v1300 = vpack.c.b16 %v1286, %v1285
  %v1301 = vpack.c.b16 %v1288, %v1287
  %v1302 = vpack.c.b16 %v1290, %v1289
  %v1303 = vpack.c.b16 %v1292, %v1291
  %v1304 = vpack.c.b16 %v1294, %v1293
  %v1305 = vpack.c.b16 %v1296, %v1295
  %v1306 = vpack.c.b16 %v1298, %v1297
  %1315 = vst [vmem:[#allocation4 + $0x8] sm:$0xff] %v1299
  %1316 = vst [vmem:[#allocation4 + $0x50] sm:$0xff] %v1300
  %1317 = vst [vmem:[#allocation4 + $0x98] sm:$0xff] %v1301
  %1318 = vst [vmem:[#allocation4 + $0xe0] sm:$0xff] %v1302
  %1319 = vst [vmem:[#allocation4 + $0x128] sm:$0xff] %v1303
  %1320 = vst [vmem:[#allocation4 + $0x170] sm:$0xff] %v1304
  %1321 = vst [vmem:[#allocation4 + $0x1b8] sm:$0xff] %v1305
  %1322 = vst [vmem:[#allocation4 + $0x200] sm:$0xff] %v1306
  %v1323 = vld [vmem:[#allocation2 + $0x4] sm:$0xf]
  %v1324 = vld [vmem:[#allocation2 + $0x8] sm:$0x1]
  %v1325 = vld [vmem:[#allocation2 + $0x10] sm:$0xf]
  %v1326 = vld [vmem:[#allocation2 + $0x14] sm:$0x1]
  %v1327 = vld [vmem:[#allocation2 + $0x1c] sm:$0xf]
  %v1328 = vld [vmem:[#allocation2 + $0x20] sm:$0x1]
  %v1329 = vld [vmem:[#allocation2 + $0x28] sm:$0xf]
  %v1330 = vld [vmem:[#allocation2 + $0x2c] sm:$0x1]
  %v1331 = vld [vmem:[#allocation2 + $0x34] sm:$0xf]
  %v1332 = vld [vmem:[#allocation2 + $0x38] sm:$0x1]
  %v1333 = vld [vmem:[#allocation2 + $0x40] sm:$0xf]
  %v1334 = vld [vmem:[#allocation2 + $0x44] sm:$0x1]
  %v1335 = vld [vmem:[#allocation2 + $0x4c] sm:$0xf]
  %v1336 = vld [vmem:[#allocation2 + $0x50] sm:$0x1]
  %v1337 = vld [vmem:[#allocation2 + $0x58] sm:$0xf]
  %v1338 = vld [vmem:[#allocation2 + $0x5c] sm:$0x1]
  %v1339 = vld [vmem:[#allocation2 + $0x7c] sm:$0xf]
  %v1340 = vld [vmem:[#allocation2 + $0x80] sm:$0x1]
  %v1341 = vld [vmem:[#allocation2 + $0x88] sm:$0xf]
  %v1342 = vld [vmem:[#allocation2 + $0x8c] sm:$0x1]
  %v1343 = vld [vmem:[#allocation2 + $0x94] sm:$0xf]
  %v1344 = vld [vmem:[#allocation2 + $0x98] sm:$0x1]
  %v1345 = vld [vmem:[#allocation2 + $0xa0] sm:$0xf]
  %v1346 = vld [vmem:[#allocation2 + $0xa4] sm:$0x1]
  %v1347 = vld [vmem:[#allocation2 + $0xac] sm:$0xf]
  %v1348 = vld [vmem:[#allocation2 + $0xb0] sm:$0x1]
  %v1349 = vld [vmem:[#allocation2 + $0xb8] sm:$0xf]
  %v1350 = vld [vmem:[#allocation2 + $0xbc] sm:$0x1]
  %v1351 = vld [vmem:[#allocation2 + $0xc4] sm:$0xf]
  %v1352 = vld [vmem:[#allocation2 + $0xc8] sm:$0x1]
  %v1353 = vld [vmem:[#allocation2 + $0xd0] sm:$0xf]
  %v1354 = vld [vmem:[#allocation2 + $0xd4] sm:$0x1]
  %vm1355 = vsmask.f32 3328
  %vm1356 = vsmask.f32 7440
  %vm1357 = vmor %vm1355, %vm1356
  %v1359 = vshrl.u32 %v1323, 16
  %v1361 = vrot.slane %v1359, 4
  %v1362 = vshll.u32 %v1323, 16
  %v1364 = vrot.slane %v1362, 5
  %v1365 = vor.u32 %v1361, %v1364
  %v1366 = vrot.slane %v1365, 4
  %v1368 = vshll.u32 %v1324, 16
  %v1370 = vrot.slane %v1368, 5
  %v1371 = vsel %vm1357, %v1366, %v1370
  %v1373 = vshrl.u32 %v1325, 16
  %v1375 = vrot.slane %v1373, 4
  %v1376 = vshll.u32 %v1325, 16
  %v1378 = vrot.slane %v1376, 5
  %v1379 = vor.u32 %v1375, %v1378
  %v1380 = vrot.slane %v1379, 4
  %v1382 = vshll.u32 %v1326, 16
  %v1384 = vrot.slane %v1382, 5
  %v1385 = vsel %vm1357, %v1380, %v1384
  %v1387 = vshrl.u32 %v1327, 16
  %v1389 = vrot.slane %v1387, 4
  %v1390 = vshll.u32 %v1327, 16
  %v1392 = vrot.slane %v1390, 5
  %v1393 = vor.u32 %v1389, %v1392
  %v1394 = vrot.slane %v1393, 4
  %v1396 = vshll.u32 %v1328, 16
  %v1398 = vrot.slane %v1396, 5
  %v1399 = vsel %vm1357, %v1394, %v1398
  %v1401 = vshrl.u32 %v1329, 16
  %v1403 = vrot.slane %v1401, 4
  %v1404 = vshll.u32 %v1329, 16
  %v1406 = vrot.slane %v1404, 5
  %v1407 = vor.u32 %v1403, %v1406
  %v1408 = vrot.slane %v1407, 4
  %v1410 = vshll.u32 %v1330, 16
  %v1412 = vrot.slane %v1410, 5
  %v1413 = vsel %vm1357, %v1408, %v1412
  %v1415 = vshrl.u32 %v1331, 16
  %v1417 = vrot.slane %v1415, 4
  %v1418 = vshll.u32 %v1331, 16
  %v1420 = vrot.slane %v1418, 5
  %v1421 = vor.u32 %v1417, %v1420
  %v1422 = vrot.slane %v1421, 4
  %v1424 = vshll.u32 %v1332, 16
  %v1426 = vrot.slane %v1424, 5
  %v1427 = vsel %vm1357, %v1422, %v1426
  %v1429 = vshrl.u32 %v1333, 16
  %v1431 = vrot.slane %v1429, 4
  %v1432 = vshll.u32 %v1333, 16
  %v1434 = vrot.slane %v1432, 5
  %v1435 = vor.u32 %v1431, %v1434
  %v1436 = vrot.slane %v1435, 4
  %v1438 = vshll.u32 %v1334, 16
  %v1440 = vrot.slane %v1438, 5
  %v1441 = vsel %vm1357, %v1436, %v1440
  %v1443 = vshrl.u32 %v1335, 16
  %v1445 = vrot.slane %v1443, 4
  %v1446 = vshll.u32 %v1335, 16
  %v1448 = vrot.slane %v1446, 5
  %v1449 = vor.u32 %v1445, %v1448
  %v1450 = vrot.slane %v1449, 4
  %v1452 = vshll.u32 %v1336, 16
  %v1454 = vrot.slane %v1452, 5
  %v1455 = vsel %vm1357, %v1450, %v1454
  %v1457 = vshrl.u32 %v1337, 16
  %v1459 = vrot.slane %v1457, 4
  %v1460 = vshll.u32 %v1337, 16
  %v1462 = vrot.slane %v1460, 5
  %v1463 = vor.u32 %v1459, %v1462
  %v1464 = vrot.slane %v1463, 4
  %v1466 = vshll.u32 %v1338, 16
  %v1468 = vrot.slane %v1466, 5
  %v1469 = vsel %vm1357, %v1464, %v1468
  %v1471 = vshrl.u32 %v1339, 16
  %v1473 = vrot.slane %v1471, 4
  %v1474 = vshll.u32 %v1339, 16
  %v1476 = vrot.slane %v1474, 5
  %v1477 = vor.u32 %v1473, %v1476
  %v1478 = vrot.slane %v1477, 4
  %v1480 = vshll.u32 %v1340, 16
  %v1482 = vrot.slane %v1480, 5
  %v1483 = vsel %vm1357, %v1478, %v1482
  %v1485 = vshrl.u32 %v1341, 16
  %v1487 = vrot.slane %v1485, 4
  %v1488 = vshll.u32 %v1341, 16
  %v1490 = vrot.slane %v1488, 5
  %v1491 = vor.u32 %v1487, %v1490
  %v1492 = vrot.slane %v1491, 4
  %v1494 = vshll.u32 %v1342, 16
  %v1496 = vrot.slane %v1494, 5
  %v1497 = vsel %vm1357, %v1492, %v1496
  %v1499 = vshrl.u32 %v1343, 16
  %v1501 = vrot.slane %v1499, 4
  %v1502 = vshll.u32 %v1343, 16
  %v1504 = vrot.slane %v1502, 5
  %v1505 = vor.u32 %v1501, %v1504
  %v1506 = vrot.slane %v1505, 4
  %v1508 = vshll.u32 %v1344, 16
  %v1510 = vrot.slane %v1508, 5
  %v1511 = vsel %vm1357, %v1506, %v1510
  %v1513 = vshrl.u32 %v1345, 16
  %v1515 = vrot.slane %v1513, 4
  %v1516 = vshll.u32 %v1345, 16
  %v1518 = vrot.slane %v1516, 5
  %v1519 = vor.u32 %v1515, %v1518
  %v1520 = vrot.slane %v1519, 4
  %v1522 = vshll.u32 %v1346, 16
  %v1524 = vrot.slane %v1522, 5
  %v1525 = vsel %vm1357, %v1520, %v1524
  %v1527 = vshrl.u32 %v1347, 16
  %v1529 = vrot.slane %v1527, 4
  %v1530 = vshll.u32 %v1347, 16
  %v1532 = vrot.slane %v1530, 5
  %v1533 = vor.u32 %v1529, %v1532
  %v1534 = vrot.slane %v1533, 4
  %v1536 = vshll.u32 %v1348, 16
  %v1538 = vrot.slane %v1536, 5
  %v1539 = vsel %vm1357, %v1534, %v1538
  %v1541 = vshrl.u32 %v1349, 16
  %v1543 = vrot.slane %v1541, 4
  %v1544 = vshll.u32 %v1349, 16
  %v1546 = vrot.slane %v1544, 5
  %v1547 = vor.u32 %v1543, %v1546
  %v1548 = vrot.slane %v1547, 4
  %v1550 = vshll.u32 %v1350, 16
  %v1552 = vrot.slane %v1550, 5
  %v1553 = vsel %vm1357, %v1548, %v1552
  %v1555 = vshrl.u32 %v1351, 16
  %v1557 = vrot.slane %v1555, 4
  %v1558 = vshll.u32 %v1351, 16
  %v1560 = vrot.slane %v1558, 5
  %v1561 = vor.u32 %v1557, %v1560
  %v1562 = vrot.slane %v1561, 4
  %v1564 = vshll.u32 %v1352, 16
  %v1566 = vrot.slane %v1564, 5
  %v1567 = vsel %vm1357, %v1562, %v1566
  %v1569 = vshrl.u32 %v1353, 16
  %v1571 = vrot.slane %v1569, 4
  %v1572 = vshll.u32 %v1353, 16
  %v1574 = vrot.slane %v1572, 5
  %v1575 = vor.u32 %v1571, %v1574
  %v1576 = vrot.slane %v1575, 4
  %v1578 = vshll.u32 %v1354, 16
  %v1580 = vrot.slane %v1578, 5
  %v1581 = vsel %vm1357, %v1576, %v1580
  %v1582 = vunpack.c.l.b16 %v1371
  %v1583 = vunpack.c.l.b16 %v1385
  %v1584 = vunpack.c.l.b16 %v1399
  %v1585 = vunpack.c.l.b16 %v1413
  %v1586 = vunpack.c.l.b16 %v1427
  %v1587 = vunpack.c.l.b16 %v1441
  %v1588 = vunpack.c.l.b16 %v1455
  %v1589 = vunpack.c.l.b16 %v1469
  %v1590 = vunpack.c.l.b16 %v1483
  %v1591 = vunpack.c.l.b16 %v1497
  %v1592 = vunpack.c.l.b16 %v1511
  %v1593 = vunpack.c.l.b16 %v1525
  %v1594 = vunpack.c.l.b16 %v1539
  %v1595 = vunpack.c.l.b16 %v1553
  %v1596 = vunpack.c.l.b16 %v1567
  %v1597 = vunpack.c.l.b16 %v1581
  %v1598 = vpack.c.b16 %v1583, %v1582
  %v1599 = vpack.c.b16 %v1585, %v1584
  %v1600 = vpack.c.b16 %v1587, %v1586
  %v1601 = vpack.c.b16 %v1589, %v1588
  %v1602 = vpack.c.b16 %v1591, %v1590
  %v1603 = vpack.c.b16 %v1593, %v1592
  %v1604 = vpack.c.b16 %v1595, %v1594
  %v1605 = vpack.c.b16 %v1597, %v1596
  %1614 = vst [vmem:[#allocation4 + $0x10] sm:$0xff] %v1598
  %1615 = vst [vmem:[#allocation4 + $0x58] sm:$0xff] %v1599
  %1616 = vst [vmem:[#allocation4 + $0xa0] sm:$0xff] %v1600
  %1617 = vst [vmem:[#allocation4 + $0xe8] sm:$0xff] %v1601
  %1618 = vst [vmem:[#allocation4 + $0x130] sm:$0xff] %v1602
  %1619 = vst [vmem:[#allocation4 + $0x178] sm:$0xff] %v1603
  %1620 = vst [vmem:[#allocation4 + $0x1c0] sm:$0xff] %v1604
  %1621 = vst [vmem:[#allocation4 + $0x208] sm:$0xff] %v1605
  %v1622 = vld [vmem:[%s951] sm:$0x8]
  %v1623 = vld [vmem:[%s951 + $0x4] sm:$0xf]
  %v1624 = vld [vmem:[%s951 + $0xc] sm:$0x8]
  %v1625 = vld [vmem:[%s951 + $0x10] sm:$0xf]
  %v1626 = vld [vmem:[%s951 + $0x18] sm:$0x8]
  %v1627 = vld [vmem:[%s951 + $0x1c] sm:$0xf]
  %v1628 = vld [vmem:[%s951 + $0x24] sm:$0x8]
  %v1629 = vld [vmem:[%s951 + $0x28] sm:$0xf]
  %v1630 = vld [vmem:[%s951 + $0x30] sm:$0x8]
  %v1631 = vld [vmem:[%s951 + $0x34] sm:$0xf]
  %v1632 = vld [vmem:[%s951 + $0x3c] sm:$0x8]
  %v1633 = vld [vmem:[%s951 + $0x40] sm:$0xf]
  %v1634 = vld [vmem:[%s951 + $0x48] sm:$0x8]
  %v1635 = vld [vmem:[%s951 + $0x4c] sm:$0xf]
  %v1636 = vld [vmem:[%s951 + $0x54] sm:$0x8]
  %v1637 = vld [vmem:[%s951 + $0x58] sm:$0xf]
  %v1638 = vld [vmem:[%s951 + $0x78] sm:$0x8]
  %v1639 = vld [vmem:[%s951 + $0x7c] sm:$0xf]
  %v1640 = vld [vmem:[%s951 + $0x84] sm:$0x8]
  %v1641 = vld [vmem:[%s951 + $0x88] sm:$0xf]
  %v1642 = vld [vmem:[%s951 + $0x90] sm:$0x8]
  %v1643 = vld [vmem:[%s951 + $0x94] sm:$0xf]
  %v1644 = vld [vmem:[%s951 + $0x9c] sm:$0x8]
  %v1645 = vld [vmem:[%s951 + $0xa0] sm:$0xf]
  %v1646 = vld [vmem:[%s951 + $0xa8] sm:$0x8]
  %v1647 = vld [vmem:[%s951 + $0xac] sm:$0xf]
  %v1648 = vld [vmem:[%s951 + $0xb4] sm:$0x8]
  %v1649 = vld [vmem:[%s951 + $0xb8] sm:$0xf]
  %v1650 = vld [vmem:[%s951 + $0xc0] sm:$0x8]
  %v1651 = vld [vmem:[%s951 + $0xc4] sm:$0xf]
  %v1652 = vld [vmem:[%s951 + $0xcc] sm:$0x8]
  %v1653 = vld [vmem:[%s951 + $0xd0] sm:$0xf]
  %v1655 = vshrl.u32 %v1622, 16
  %v1657 = vrot.slane %v1655, 7
  %v1658 = vrot.slane %v1657, 4
  %v1660 = vshrl.u32 %v1623, 16
  %v1662 = vrot.slane %v1660, 7
  %v1663 = vshll.u32 %v1623, 16
  %v1665 = vor.u32 %v1662, %v1663
  %v1666 = vsel %vm1002, %v1658, %v1665
  %v1668 = vshrl.u32 %v1624, 16
  %v1670 = vrot.slane %v1668, 7
  %v1671 = vrot.slane %v1670, 4
  %v1673 = vshrl.u32 %v1625, 16
  %v1675 = vrot.slane %v1673, 7
  %v1676 = vshll.u32 %v1625, 16
  %v1678 = vor.u32 %v1675, %v1676
  %v1679 = vsel %vm1002, %v1671, %v1678
  %v1681 = vshrl.u32 %v1626, 16
  %v1683 = vrot.slane %v1681, 7
  %v1684 = vrot.slane %v1683, 4
  %v1686 = vshrl.u32 %v1627, 16
  %v1688 = vrot.slane %v1686, 7
  %v1689 = vshll.u32 %v1627, 16
  %v1691 = vor.u32 %v1688, %v1689
  %v1692 = vsel %vm1002, %v1684, %v1691
  %v1694 = vshrl.u32 %v1628, 16
  %v1696 = vrot.slane %v1694, 7
  %v1697 = vrot.slane %v1696, 4
  %v1699 = vshrl.u32 %v1629, 16
  %v1701 = vrot.slane %v1699, 7
  %v1702 = vshll.u32 %v1629, 16
  %v1704 = vor.u32 %v1701, %v1702
  %v1705 = vsel %vm1002, %v1697, %v1704
  %v1707 = vshrl.u32 %v1630, 16
  %v1709 = vrot.slane %v1707, 7
  %v1710 = vrot.slane %v1709, 4
  %v1712 = vshrl.u32 %v1631, 16
  %v1714 = vrot.slane %v1712, 7
  %v1715 = vshll.u32 %v1631, 16
  %v1717 = vor.u32 %v1714, %v1715
  %v1718 = vsel %vm1002, %v1710, %v1717
  %v1720 = vshrl.u32 %v1632, 16
  %v1722 = vrot.slane %v1720, 7
  %v1723 = vrot.slane %v1722, 4
  %v1725 = vshrl.u32 %v1633, 16
  %v1727 = vrot.slane %v1725, 7
  %v1728 = vshll.u32 %v1633, 16
  %v1730 = vor.u32 %v1727, %v1728
  %v1731 = vsel %vm1002, %v1723, %v1730
  %v1733 = vshrl.u32 %v1634, 16
  %v1735 = vrot.slane %v1733, 7
  %v1736 = vrot.slane %v1735, 4
  %v1738 = vshrl.u32 %v1635, 16
  %v1740 = vrot.slane %v1738, 7
  %v1741 = vshll.u32 %v1635, 16
  %v1743 = vor.u32 %v1740, %v1741
  %v1744 = vsel %vm1002, %v1736, %v1743
  %v1746 = vshrl.u32 %v1636, 16
  %v1748 = vrot.slane %v1746, 7
  %v1749 = vrot.slane %v1748, 4
  %v1751 = vshrl.u32 %v1637, 16
  %v1753 = vrot.slane %v1751, 7
  %v1754 = vshll.u32 %v1637, 16
  %v1756 = vor.u32 %v1753, %v1754
  %v1757 = vsel %vm1002, %v1749, %v1756
  %v1759 = vshrl.u32 %v1638, 16
  %v1761 = vrot.slane %v1759, 7
  %v1762 = vrot.slane %v1761, 4
  %v1764 = vshrl.u32 %v1639, 16
  %v1766 = vrot.slane %v1764, 7
  %v1767 = vshll.u32 %v1639, 16
  %v1769 = vor.u32 %v1766, %v1767
  %v1770 = vsel %vm1002, %v1762, %v1769
  %v1772 = vshrl.u32 %v1640, 16
  %v1774 = vrot.slane %v1772, 7
  %v1775 = vrot.slane %v1774, 4
  %v1777 = vshrl.u32 %v1641, 16
  %v1779 = vrot.slane %v1777, 7
  %v1780 = vshll.u32 %v1641, 16
  %v1782 = vor.u32 %v1779, %v1780
  %v1783 = vsel %vm1002, %v1775, %v1782
  %v1785 = vshrl.u32 %v1642, 16
  %v1787 = vrot.slane %v1785, 7
  %v1788 = vrot.slane %v1787, 4
  %v1790 = vshrl.u32 %v1643, 16
  %v1792 = vrot.slane %v1790, 7
  %v1793 = vshll.u32 %v1643, 16
  %v1795 = vor.u32 %v1792, %v1793
  %v1796 = vsel %vm1002, %v1788, %v1795
  %v1798 = vshrl.u32 %v1644, 16
  %v1800 = vrot.slane %v1798, 7
  %v1801 = vrot.slane %v1800, 4
  %v1803 = vshrl.u32 %v1645, 16
  %v1805 = vrot.slane %v1803, 7
  %v1806 = vshll.u32 %v1645, 16
  %v1808 = vor.u32 %v1805, %v1806
  %v1809 = vsel %vm1002, %v1801, %v1808
  %v1811 = vshrl.u32 %v1646, 16
  %v1813 = vrot.slane %v1811, 7
  %v1814 = vrot.slane %v1813, 4
  %v1816 = vshrl.u32 %v1647, 16
  %v1818 = vrot.slane %v1816, 7
  %v1819 = vshll.u32 %v1647, 16
  %v1821 = vor.u32 %v1818, %v1819
  %v1822 = vsel %vm1002, %v1814, %v1821
  %v1824 = vshrl.u32 %v1648, 16
  %v1826 = vrot.slane %v1824, 7
  %v1827 = vrot.slane %v1826, 4
  %v1829 = vshrl.u32 %v1649, 16
  %v1831 = vrot.slane %v1829, 7
  %v1832 = vshll.u32 %v1649, 16
  %v1834 = vor.u32 %v1831, %v1832
  %v1835 = vsel %vm1002, %v1827, %v1834
  %v1837 = vshrl.u32 %v1650, 16
  %v1839 = vrot.slane %v1837, 7
  %v1840 = vrot.slane %v1839, 4
  %v1842 = vshrl.u32 %v1651, 16
  %v1844 = vrot.slane %v1842, 7
  %v1845 = vshll.u32 %v1651, 16
  %v1847 = vor.u32 %v1844, %v1845
  %v1848 = vsel %vm1002, %v1840, %v1847
  %v1850 = vshrl.u32 %v1652, 16
  %v1852 = vrot.slane %v1850, 7
  %v1853 = vrot.slane %v1852, 4
  %v1855 = vshrl.u32 %v1653, 16
  %v1857 = vrot.slane %v1855, 7
  %v1858 = vshll.u32 %v1653, 16
  %v1860 = vor.u32 %v1857, %v1858
  %v1861 = vsel %vm1002, %v1853, %v1860
  %v1862 = vunpack.c.l.b16 %v1666
  %v1863 = vunpack.c.l.b16 %v1679
  %v1864 = vunpack.c.l.b16 %v1692
  %v1865 = vunpack.c.l.b16 %v1705
  %v1866 = vunpack.c.l.b16 %v1718
  %v1867 = vunpack.c.l.b16 %v1731
  %v1868 = vunpack.c.l.b16 %v1744
  %v1869 = vunpack.c.l.b16 %v1757
  %v1870 = vunpack.c.l.b16 %v1770
  %v1871 = vunpack.c.l.b16 %v1783
  %v1872 = vunpack.c.l.b16 %v1796
  %v1873 = vunpack.c.l.b16 %v1809
  %v1874 = vunpack.c.l.b16 %v1822
  %v1875 = vunpack.c.l.b16 %v1835
  %v1876 = vunpack.c.l.b16 %v1848
  %v1877 = vunpack.c.l.b16 %v1861
  %v1878 = vpack.c.b16 %v1863, %v1862
  %v1879 = vpack.c.b16 %v1865, %v1864
  %v1880 = vpack.c.b16 %v1867, %v1866
  %v1881 = vpack.c.b16 %v1869, %v1868
  %v1882 = vpack.c.b16 %v1871, %v1870
  %v1883 = vpack.c.b16 %v1873, %v1872
  %v1884 = vpack.c.b16 %v1875, %v1874
  %v1885 = vpack.c.b16 %v1877, %v1876
  %1894 = vst [vmem:[#allocation4 + $0x18] sm:$0xff] %v1878
  %1895 = vst [vmem:[#allocation4 + $0x60] sm:$0xff] %v1879
  %1896 = vst [vmem:[#allocation4 + $0xa8] sm:$0xff] %v1880
  %1897 = vst [vmem:[#allocation4 + $0xf0] sm:$0xff] %v1881
  %1898 = vst [vmem:[#allocation4 + $0x138] sm:$0xff] %v1882
  %1899 = vst [vmem:[#allocation4 + $0x180] sm:$0xff] %v1883
  %1900 = vst [vmem:[#allocation4 + $0x1c8] sm:$0xff] %v1884
  %1901 = vst [vmem:[#allocation4 + $0x210] sm:$0xff] %v1885
  %v1902 = vld [vmem:[%s951 + $0x4] sm:$0xf]
  %v1903 = vld [vmem:[%s951 + $0x10] sm:$0xf]
  %v1904 = vld [vmem:[%s951 + $0x1c] sm:$0xf]
  %v1905 = vld [vmem:[%s951 + $0x28] sm:$0xf]
  %v1906 = vld [vmem:[%s951 + $0x34] sm:$0xf]
  %v1907 = vld [vmem:[%s951 + $0x40] sm:$0xf]
  %v1908 = vld [vmem:[%s951 + $0x4c] sm:$0xf]
  %v1909 = vld [vmem:[%s951 + $0x58] sm:$0xf]
  %v1910 = vld [vmem:[%s951 + $0x7c] sm:$0xf]
  %v1911 = vld [vmem:[%s951 + $0x88] sm:$0xf]
  %v1912 = vld [vmem:[%s951 + $0x94] sm:$0xf]
  %v1913 = vld [vmem:[%s951 + $0xa0] sm:$0xf]
  %v1914 = vld [vmem:[%s951 + $0xac] sm:$0xf]
  %v1915 = vld [vmem:[%s951 + $0xb8] sm:$0xf]
  %v1916 = vld [vmem:[%s951 + $0xc4] sm:$0xf]
  %v1917 = vld [vmem:[%s951 + $0xd0] sm:$0xf]
  %v1934 = vunpack.c.l.b16 %v1902
  %v1935 = vunpack.c.l.b16 %v1903
  %v1936 = vunpack.c.l.b16 %v1904
  %v1937 = vunpack.c.l.b16 %v1905
  %v1938 = vunpack.c.l.b16 %v1906
  %v1939 = vunpack.c.l.b16 %v1907
  %v1940 = vunpack.c.l.b16 %v1908
  %v1941 = vunpack.c.l.b16 %v1909
  %v1942 = vunpack.c.l.b16 %v1910
  %v1943 = vunpack.c.l.b16 %v1911
  %v1944 = vunpack.c.l.b16 %v1912
  %v1945 = vunpack.c.l.b16 %v1913
  %v1946 = vunpack.c.l.b16 %v1914
  %v1947 = vunpack.c.l.b16 %v1915
  %v1948 = vunpack.c.l.b16 %v1916
  %v1949 = vunpack.c.l.b16 %v1917
  %v1950 = vpack.c.b16 %v1935, %v1934
  %v1951 = vpack.c.b16 %v1937, %v1936
  %v1952 = vpack.c.b16 %v1939, %v1938
  %v1953 = vpack.c.b16 %v1941, %v1940
  %v1954 = vpack.c.b16 %v1943, %v1942
  %v1955 = vpack.c.b16 %v1945, %v1944
  %v1956 = vpack.c.b16 %v1947, %v1946
  %v1957 = vpack.c.b16 %v1949, %v1948
  %1966 = vst [vmem:[#allocation4 + $0x20] sm:$0xff] %v1950
  %1967 = vst [vmem:[#allocation4 + $0x68] sm:$0xff] %v1951
  %1968 = vst [vmem:[#allocation4 + $0xb0] sm:$0xff] %v1952
  %1969 = vst [vmem:[#allocation4 + $0xf8] sm:$0xff] %v1953
  %1970 = vst [vmem:[#allocation4 + $0x140] sm:$0xff] %v1954
  %1971 = vst [vmem:[#allocation4 + $0x188] sm:$0xff] %v1955
  %1972 = vst [vmem:[#allocation4 + $0x1d0] sm:$0xff] %v1956
  %1973 = vst [vmem:[#allocation4 + $0x218] sm:$0xff] %v1957
  %v1974 = vld [vmem:[%s951 + $0x4] sm:$0xf]
  %v1975 = vld [vmem:[%s951 + $0x8] sm:$0x1]
  %v1976 = vld [vmem:[%s951 + $0x10] sm:$0xf]
  %v1977 = vld [vmem:[%s951 + $0x14] sm:$0x1]
  %v1978 = vld [vmem:[%s951 + $0x1c] sm:$0xf]
  %v1979 = vld [vmem:[%s951 + $0x20] sm:$0x1]
  %v1980 = vld [vmem:[%s951 + $0x28] sm:$0xf]
  %v1981 = vld [vmem:[%s951 + $0x2c] sm:$0x1]
  %v1982 = vld [vmem:[%s951 + $0x34] sm:$0xf]
  %v1983 = vld [vmem:[%s951 + $0x38] sm:$0x1]
  %v1984 = vld [vmem:[%s951 + $0x40] sm:$0xf]
  %v1985 = vld [vmem:[%s951 + $0x44] sm:$0x1]
  %v1986 = vld [vmem:[%s951 + $0x4c] sm:$0xf]
  %v1987 = vld [vmem:[%s951 + $0x50] sm:$0x1]
  %v1988 = vld [vmem:[%s951 + $0x58] sm:$0xf]
  %v1989 = vld [vmem:[%s951 + $0x5c] sm:$0x1]
  %v1990 = vld [vmem:[%s951 + $0x7c] sm:$0xf]
  %v1991 = vld [vmem:[%s951 + $0x80] sm:$0x1]
  %v1992 = vld [vmem:[%s951 + $0x88] sm:$0xf]
  %v1993 = vld [vmem:[%s951 + $0x8c] sm:$0x1]
  %v1994 = vld [vmem:[%s951 + $0x94] sm:$0xf]
  %v1995 = vld [vmem:[%s951 + $0x98] sm:$0x1]
  %v1996 = vld [vmem:[%s951 + $0xa0] sm:$0xf]
  %v1997 = vld [vmem:[%s951 + $0xa4] sm:$0x1]
  %v1998 = vld [vmem:[%s951 + $0xac] sm:$0xf]
  %v1999 = vld [vmem:[%s951 + $0xb0] sm:$0x1]
  %v2000 = vld [vmem:[%s951 + $0xb8] sm:$0xf]
  %v2001 = vld [vmem:[%s951 + $0xbc] sm:$0x1]
  %v2002 = vld [vmem:[%s951 + $0xc4] sm:$0xf]
  %v2003 = vld [vmem:[%s951 + $0xc8] sm:$0x1]
  %v2004 = vld [vmem:[%s951 + $0xd0] sm:$0xf]
  %v2005 = vld [vmem:[%s951 + $0xd4] sm:$0x1]
  %v2007 = vshrl.u32 %v1974, 16
  %v2009 = vrot.slane %v2007, 4
  %v2010 = vshll.u32 %v1974, 16
  %v2012 = vrot.slane %v2010, 5
  %v2013 = vor.u32 %v2009, %v2012
  %v2014 = vrot.slane %v2013, 4
  %v2016 = vshll.u32 %v1975, 16
  %v2018 = vrot.slane %v2016, 5
  %v2019 = vsel %vm1357, %v2014, %v2018
  %v2021 = vshrl.u32 %v1976, 16
  %v2023 = vrot.slane %v2021, 4
  %v2024 = vshll.u32 %v1976, 16
  %v2026 = vrot.slane %v2024, 5
  %v2027 = vor.u32 %v2023, %v2026
  %v2028 = vrot.slane %v2027, 4
  %v2030 = vshll.u32 %v1977, 16
  %v2032 = vrot.slane %v2030, 5
  %v2033 = vsel %vm1357, %v2028, %v2032
  %v2035 = vshrl.u32 %v1978, 16
  %v2037 = vrot.slane %v2035, 4
  %v2038 = vshll.u32 %v1978, 16
  %v2040 = vrot.slane %v2038, 5
  %v2041 = vor.u32 %v2037, %v2040
  %v2042 = vrot.slane %v2041, 4
  %v2044 = vshll.u32 %v1979, 16
  %v2046 = vrot.slane %v2044, 5
  %v2047 = vsel %vm1357, %v2042, %v2046
  %v2049 = vshrl.u32 %v1980, 16
  %v2051 = vrot.slane %v2049, 4
  %v2052 = vshll.u32 %v1980, 16
  %v2054 = vrot.slane %v2052, 5
  %v2055 = vor.u32 %v2051, %v2054
  %v2056 = vrot.slane %v2055, 4
  %v2058 = vshll.u32 %v1981, 16
  %v2060 = vrot.slane %v2058, 5
  %v2061 = vsel %vm1357, %v2056, %v2060
  %v2063 = vshrl.u32 %v1982, 16
  %v2065 = vrot.slane %v2063, 4
  %v2066 = vshll.u32 %v1982, 16
  %v2068 = vrot.slane %v2066, 5
  %v2069 = vor.u32 %v2065, %v2068
  %v2070 = vrot.slane %v2069, 4
  %v2072 = vshll.u32 %v1983, 16
  %v2074 = vrot.slane %v2072, 5
  %v2075 = vsel %vm1357, %v2070, %v2074
  %v2077 = vshrl.u32 %v1984, 16
  %v2079 = vrot.slane %v2077, 4
  %v2080 = vshll.u32 %v1984, 16
  %v2082 = vrot.slane %v2080, 5
  %v2083 = vor.u32 %v2079, %v2082
  %v2084 = vrot.slane %v2083, 4
  %v2086 = vshll.u32 %v1985, 16
  %v2088 = vrot.slane %v2086, 5
  %v2089 = vsel %vm1357, %v2084, %v2088
  %v2091 = vshrl.u32 %v1986, 16
  %v2093 = vrot.slane %v2091, 4
  %v2094 = vshll.u32 %v1986, 16
  %v2096 = vrot.slane %v2094, 5
  %v2097 = vor.u32 %v2093, %v2096
  %v2098 = vrot.slane %v2097, 4
  %v2100 = vshll.u32 %v1987, 16
  %v2102 = vrot.slane %v2100, 5
  %v2103 = vsel %vm1357, %v2098, %v2102
  %v2105 = vshrl.u32 %v1988, 16
  %v2107 = vrot.slane %v2105, 4
  %v2108 = vshll.u32 %v1988, 16
  %v2110 = vrot.slane %v2108, 5
  %v2111 = vor.u32 %v2107, %v2110
  %v2112 = vrot.slane %v2111, 4
  %v2114 = vshll.u32 %v1989, 16
  %v2116 = vrot.slane %v2114, 5
  %v2117 = vsel %vm1357, %v2112, %v2116
  %v2119 = vshrl.u32 %v1990, 16
  %v2121 = vrot.slane %v2119, 4
  %v2122 = vshll.u32 %v1990, 16
  %v2124 = vrot.slane %v2122, 5
  %v2125 = vor.u32 %v2121, %v2124
  %v2126 = vrot.slane %v2125, 4
  %v2128 = vshll.u32 %v1991, 16
  %v2130 = vrot.slane %v2128, 5
  %v2131 = vsel %vm1357, %v2126, %v2130
  %v2133 = vshrl.u32 %v1992, 16
  %v2135 = vrot.slane %v2133, 4
  %v2136 = vshll.u32 %v1992, 16
  %v2138 = vrot.slane %v2136, 5
  %v2139 = vor.u32 %v2135, %v2138
  %v2140 = vrot.slane %v2139, 4
  %v2142 = vshll.u32 %v1993, 16
  %v2144 = vrot.slane %v2142, 5
  %v2145 = vsel %vm1357, %v2140, %v2144
  %v2147 = vshrl.u32 %v1994, 16
  %v2149 = vrot.slane %v2147, 4
  %v2150 = vshll.u32 %v1994, 16
  %v2152 = vrot.slane %v2150, 5
  %v2153 = vor.u32 %v2149, %v2152
  %v2154 = vrot.slane %v2153, 4
  %v2156 = vshll.u32 %v1995, 16
  %v2158 = vrot.slane %v2156, 5
  %v2159 = vsel %vm1357, %v2154, %v2158
  %v2161 = vshrl.u32 %v1996, 16
  %v2163 = vrot.slane %v2161, 4
  %v2164 = vshll.u32 %v1996, 16
  %v2166 = vrot.slane %v2164, 5
  %v2167 = vor.u32 %v2163, %v2166
  %v2168 = vrot.slane %v2167, 4
  %v2170 = vshll.u32 %v1997, 16
  %v2172 = vrot.slane %v2170, 5
  %v2173 = vsel %vm1357, %v2168, %v2172
  %v2175 = vshrl.u32 %v1998, 16
  %v2177 = vrot.slane %v2175, 4
  %v2178 = vshll.u32 %v1998, 16
  %v2180 = vrot.slane %v2178, 5
  %v2181 = vor.u32 %v2177, %v2180
  %v2182 = vrot.slane %v2181, 4
  %v2184 = vshll.u32 %v1999, 16
  %v2186 = vrot.slane %v2184, 5
  %v2187 = vsel %vm1357, %v2182, %v2186
  %v2189 = vshrl.u32 %v2000, 16
  %v2191 = vrot.slane %v2189, 4
  %v2192 = vshll.u32 %v2000, 16
  %v2194 = vrot.slane %v2192, 5
  %v2195 = vor.u32 %v2191, %v2194
  %v2196 = vrot.slane %v2195, 4
  %v2198 = vshll.u32 %v2001, 16
  %v2200 = vrot.slane %v2198, 5
  %v2201 = vsel %vm1357, %v2196, %v2200
  %v2203 = vshrl.u32 %v2002, 16
  %v2205 = vrot.slane %v2203, 4
  %v2206 = vshll.u32 %v2002, 16
  %v2208 = vrot.slane %v2206, 5
  %v2209 = vor.u32 %v2205, %v2208
  %v2210 = vrot.slane %v2209, 4
  %v2212 = vshll.u32 %v2003, 16
  %v2214 = vrot.slane %v2212, 5
  %v2215 = vsel %vm1357, %v2210, %v2214
  %v2217 = vshrl.u32 %v2004, 16
  %v2219 = vrot.slane %v2217, 4
  %v2220 = vshll.u32 %v2004, 16
  %v2222 = vrot.slane %v2220, 5
  %v2223 = vor.u32 %v2219, %v2222
  %v2224 = vrot.slane %v2223, 4
  %v2226 = vshll.u32 %v2005, 16
  %v2228 = vrot.slane %v2226, 5
  %v2229 = vsel %vm1357, %v2224, %v2228
  %v2230 = vunpack.c.l.b16 %v2019
  %v2231 = vunpack.c.l.b16 %v2033
  %v2232 = vunpack.c.l.b16 %v2047
  %v2233 = vunpack.c.l.b16 %v2061
  %v2234 = vunpack.c.l.b16 %v2075
  %v2235 = vunpack.c.l.b16 %v2089
  %v2236 = vunpack.c.l.b16 %v2103
  %v2237 = vunpack.c.l.b16 %v2117
  %v2238 = vunpack.c.l.b16 %v2131
  %v2239 = vunpack.c.l.b16 %v2145
  %v2240 = vunpack.c.l.b16 %v2159
  %v2241 = vunpack.c.l.b16 %v2173
  %v2242 = vunpack.c.l.b16 %v2187
  %v2243 = vunpack.c.l.b16 %v2201
  %v2244 = vunpack.c.l.b16 %v2215
  %v2245 = vunpack.c.l.b16 %v2229
  %v2246 = vpack.c.b16 %v2231, %v2230
  %v2247 = vpack.c.b16 %v2233, %v2232
  %v2248 = vpack.c.b16 %v2235, %v2234
  %v2249 = vpack.c.b16 %v2237, %v2236
  %v2250 = vpack.c.b16 %v2239, %v2238
  %v2251 = vpack.c.b16 %v2241, %v2240
  %v2252 = vpack.c.b16 %v2243, %v2242
  %v2253 = vpack.c.b16 %v2245, %v2244
  %2262 = vst [vmem:[#allocation4 + $0x28] sm:$0xff] %v2246
  %2263 = vst [vmem:[#allocation4 + $0x70] sm:$0xff] %v2247
  %2264 = vst [vmem:[#allocation4 + $0xb8] sm:$0xff] %v2248
  %2265 = vst [vmem:[#allocation4 + $0x100] sm:$0xff] %v2249
  %2266 = vst [vmem:[#allocation4 + $0x148] sm:$0xff] %v2250
  %2267 = vst [vmem:[#allocation4 + $0x190] sm:$0xff] %v2251
  %2268 = vst [vmem:[#allocation4 + $0x1d8] sm:$0xff] %v2252
  %2269 = vst [vmem:[#allocation4 + $0x220] sm:$0xff] %v2253
  %s2270 = scalar_lea.vmem [#allocation2], 24
  %v2271 = vld [vmem:[%s2270] sm:$0x8]
  %v2272 = vld [vmem:[%s2270 + $0x4] sm:$0xf]
  %v2273 = vld [vmem:[%s2270 + $0xc] sm:$0x8]
  %v2274 = vld [vmem:[%s2270 + $0x10] sm:$0xf]
  %v2275 = vld [vmem:[%s2270 + $0x18] sm:$0x8]
  %v2276 = vld [vmem:[%s2270 + $0x1c] sm:$0xf]
  %v2277 = vld [vmem:[%s2270 + $0x24] sm:$0x8]
  %v2278 = vld [vmem:[%s2270 + $0x28] sm:$0xf]
  %v2279 = vld [vmem:[%s2270 + $0x30] sm:$0x8]
  %v2280 = vld [vmem:[%s2270 + $0x34] sm:$0xf]
  %v2281 = vld [vmem:[%s2270 + $0x3c] sm:$0x8]
  %v2282 = vld [vmem:[%s2270 + $0x40] sm:$0xf]
  %v2283 = vld [vmem:[%s2270 + $0x48] sm:$0x8]
  %v2284 = vld [vmem:[%s2270 + $0x4c] sm:$0xf]
  %v2285 = vld [vmem:[%s2270 + $0x54] sm:$0x8]
  %v2286 = vld [vmem:[%s2270 + $0x58] sm:$0xf]
  %v2287 = vld [vmem:[%s2270 + $0x78] sm:$0x8]
  %v2288 = vld [vmem:[%s2270 + $0x7c] sm:$0xf]
  %v2289 = vld [vmem:[%s2270 + $0x84] sm:$0x8]
  %v2290 = vld [vmem:[%s2270 + $0x88] sm:$0xf]
  %v2291 = vld [vmem:[%s2270 + $0x90] sm:$0x8]
  %v2292 = vld [vmem:[%s2270 + $0x94] sm:$0xf]
  %v2293 = vld [vmem:[%s2270 + $0x9c] sm:$0x8]
  %v2294 = vld [vmem:[%s2270 + $0xa0] sm:$0xf]
  %v2295 = vld [vmem:[%s2270 + $0xa8] sm:$0x8]
  %v2296 = vld [vmem:[%s2270 + $0xac] sm:$0xf]
  %v2297 = vld [vmem:[%s2270 + $0xb4] sm:$0x8]
  %v2298 = vld [vmem:[%s2270 + $0xb8] sm:$0xf]
  %v2299 = vld [vmem:[%s2270 + $0xc0] sm:$0x8]
  %v2300 = vld [vmem:[%s2270 + $0xc4] sm:$0xf]
  %v2301 = vld [vmem:[%s2270 + $0xcc] sm:$0x8]
  %v2302 = vld [vmem:[%s2270 + $0xd0] sm:$0xf]
  %v2304 = vshrl.u32 %v2271, 16
  %v2306 = vrot.slane %v2304, 7
  %v2307 = vrot.slane %v2306, 4
  %v2309 = vshrl.u32 %v2272, 16
  %v2311 = vrot.slane %v2309, 7
  %v2312 = vshll.u32 %v2272, 16
  %v2314 = vor.u32 %v2311, %v2312
  %v2315 = vsel %vm1002, %v2307, %v2314
  %v2317 = vshrl.u32 %v2273, 16
  %v2319 = vrot.slane %v2317, 7
  %v2320 = vrot.slane %v2319, 4
  %v2322 = vshrl.u32 %v2274, 16
  %v2324 = vrot.slane %v2322, 7
  %v2325 = vshll.u32 %v2274, 16
  %v2327 = vor.u32 %v2324, %v2325
  %v2328 = vsel %vm1002, %v2320, %v2327
  %v2330 = vshrl.u32 %v2275, 16
  %v2332 = vrot.slane %v2330, 7
  %v2333 = vrot.slane %v2332, 4
  %v2335 = vshrl.u32 %v2276, 16
  %v2337 = vrot.slane %v2335, 7
  %v2338 = vshll.u32 %v2276, 16
  %v2340 = vor.u32 %v2337, %v2338
  %v2341 = vsel %vm1002, %v2333, %v2340
  %v2343 = vshrl.u32 %v2277, 16
  %v2345 = vrot.slane %v2343, 7
  %v2346 = vrot.slane %v2345, 4
  %v2348 = vshrl.u32 %v2278, 16
  %v2350 = vrot.slane %v2348, 7
  %v2351 = vshll.u32 %v2278, 16
  %v2353 = vor.u32 %v2350, %v2351
  %v2354 = vsel %vm1002, %v2346, %v2353
  %v2356 = vshrl.u32 %v2279, 16
  %v2358 = vrot.slane %v2356, 7
  %v2359 = vrot.slane %v2358, 4
  %v2361 = vshrl.u32 %v2280, 16
  %v2363 = vrot.slane %v2361, 7
  %v2364 = vshll.u32 %v2280, 16
  %v2366 = vor.u32 %v2363, %v2364
  %v2367 = vsel %vm1002, %v2359, %v2366
  %v2369 = vshrl.u32 %v2281, 16
  %v2371 = vrot.slane %v2369, 7
  %v2372 = vrot.slane %v2371, 4
  %v2374 = vshrl.u32 %v2282, 16
  %v2376 = vrot.slane %v2374, 7
  %v2377 = vshll.u32 %v2282, 16
  %v2379 = vor.u32 %v2376, %v2377
  %v2380 = vsel %vm1002, %v2372, %v2379
  %v2382 = vshrl.u32 %v2283, 16
  %v2384 = vrot.slane %v2382, 7
  %v2385 = vrot.slane %v2384, 4
  %v2387 = vshrl.u32 %v2284, 16
  %v2389 = vrot.slane %v2387, 7
  %v2390 = vshll.u32 %v2284, 16
  %v2392 = vor.u32 %v2389, %v2390
  %v2393 = vsel %vm1002, %v2385, %v2392
  %v2395 = vshrl.u32 %v2285, 16
  %v2397 = vrot.slane %v2395, 7
  %v2398 = vrot.slane %v2397, 4
  %v2400 = vshrl.u32 %v2286, 16
  %v2402 = vrot.slane %v2400, 7
  %v2403 = vshll.u32 %v2286, 16
  %v2405 = vor.u32 %v2402, %v2403
  %v2406 = vsel %vm1002, %v2398, %v2405
  %v2408 = vshrl.u32 %v2287, 16
  %v2410 = vrot.slane %v2408, 7
  %v2411 = vrot.slane %v2410, 4
  %v2413 = vshrl.u32 %v2288, 16
  %v2415 = vrot.slane %v2413, 7
  %v2416 = vshll.u32 %v2288, 16
  %v2418 = vor.u32 %v2415, %v2416
  %v2419 = vsel %vm1002, %v2411, %v2418
  %v2421 = vshrl.u32 %v2289, 16
  %v2423 = vrot.slane %v2421, 7
  %v2424 = vrot.slane %v2423, 4
  %v2426 = vshrl.u32 %v2290, 16
  %v2428 = vrot.slane %v2426, 7
  %v2429 = vshll.u32 %v2290, 16
  %v2431 = vor.u32 %v2428, %v2429
  %v2432 = vsel %vm1002, %v2424, %v2431
  %v2434 = vshrl.u32 %v2291, 16
  %v2436 = vrot.slane %v2434, 7
  %v2437 = vrot.slane %v2436, 4
  %v2439 = vshrl.u32 %v2292, 16
  %v2441 = vrot.slane %v2439, 7
  %v2442 = vshll.u32 %v2292, 16
  %v2444 = vor.u32 %v2441, %v2442
  %v2445 = vsel %vm1002, %v2437, %v2444
  %v2447 = vshrl.u32 %v2293, 16
  %v2449 = vrot.slane %v2447, 7
  %v2450 = vrot.slane %v2449, 4
  %v2452 = vshrl.u32 %v2294, 16
  %v2454 = vrot.slane %v2452, 7
  %v2455 = vshll.u32 %v2294, 16
  %v2457 = vor.u32 %v2454, %v2455
  %v2458 = vsel %vm1002, %v2450, %v2457
  %v2460 = vshrl.u32 %v2295, 16
  %v2462 = vrot.slane %v2460, 7
  %v2463 = vrot.slane %v2462, 4
  %v2465 = vshrl.u32 %v2296, 16
  %v2467 = vrot.slane %v2465, 7
  %v2468 = vshll.u32 %v2296, 16
  %v2470 = vor.u32 %v2467, %v2468
  %v2471 = vsel %vm1002, %v2463, %v2470
  %v2473 = vshrl.u32 %v2297, 16
  %v2475 = vrot.slane %v2473, 7
  %v2476 = vrot.slane %v2475, 4
  %v2478 = vshrl.u32 %v2298, 16
  %v2480 = vrot.slane %v2478, 7
  %v2481 = vshll.u32 %v2298, 16
  %v2483 = vor.u32 %v2480, %v2481
  %v2484 = vsel %vm1002, %v2476, %v2483
  %v2486 = vshrl.u32 %v2299, 16
  %v2488 = vrot.slane %v2486, 7
  %v2489 = vrot.slane %v2488, 4
  %v2491 = vshrl.u32 %v2300, 16
  %v2493 = vrot.slane %v2491, 7
  %v2494 = vshll.u32 %v2300, 16
  %v2496 = vor.u32 %v2493, %v2494
  %v2497 = vsel %vm1002, %v2489, %v2496
  %v2499 = vshrl.u32 %v2301, 16
  %v2501 = vrot.slane %v2499, 7
  %v2502 = vrot.slane %v2501, 4
  %v2504 = vshrl.u32 %v2302, 16
  %v2506 = vrot.slane %v2504, 7
  %v2507 = vshll.u32 %v2302, 16
  %v2509 = vor.u32 %v2506, %v2507
  %v2510 = vsel %vm1002, %v2502, %v2509
  %v2511 = vunpack.c.l.b16 %v2315
  %v2512 = vunpack.c.l.b16 %v2328
  %v2513 = vunpack.c.l.b16 %v2341
  %v2514 = vunpack.c.l.b16 %v2354
  %v2515 = vunpack.c.l.b16 %v2367
  %v2516 = vunpack.c.l.b16 %v2380
  %v2517 = vunpack.c.l.b16 %v2393
  %v2518 = vunpack.c.l.b16 %v2406
  %v2519 = vunpack.c.l.b16 %v2419
  %v2520 = vunpack.c.l.b16 %v2432
  %v2521 = vunpack.c.l.b16 %v2445
  %v2522 = vunpack.c.l.b16 %v2458
  %v2523 = vunpack.c.l.b16 %v2471
  %v2524 = vunpack.c.l.b16 %v2484
  %v2525 = vunpack.c.l.b16 %v2497
  %v2526 = vunpack.c.l.b16 %v2510
  %v2527 = vpack.c.b16 %v2512, %v2511
  %v2528 = vpack.c.b16 %v2514, %v2513
  %v2529 = vpack.c.b16 %v2516, %v2515
  %v2530 = vpack.c.b16 %v2518, %v2517
  %v2531 = vpack.c.b16 %v2520, %v2519
  %v2532 = vpack.c.b16 %v2522, %v2521
  %v2533 = vpack.c.b16 %v2524, %v2523
  %v2534 = vpack.c.b16 %v2526, %v2525
  %2543 = vst [vmem:[#allocation4 + $0x30] sm:$0xff] %v2527
  %2544 = vst [vmem:[#allocation4 + $0x78] sm:$0xff] %v2528
  %2545 = vst [vmem:[#allocation4 + $0xc0] sm:$0xff] %v2529
  %2546 = vst [vmem:[#allocation4 + $0x108] sm:$0xff] %v2530
  %2547 = vst [vmem:[#allocation4 + $0x150] sm:$0xff] %v2531
  %2548 = vst [vmem:[#allocation4 + $0x198] sm:$0xff] %v2532
  %2549 = vst [vmem:[#allocation4 + $0x1e0] sm:$0xff] %v2533
  %2550 = vst [vmem:[#allocation4 + $0x228] sm:$0xff] %v2534
  %v2551 = vld [vmem:[%s2270 + $0x4] sm:$0xf]
  %v2552 = vld [vmem:[%s2270 + $0x10] sm:$0xf]
  %v2553 = vld [vmem:[%s2270 + $0x1c] sm:$0xf]
  %v2554 = vld [vmem:[%s2270 + $0x28] sm:$0xf]
  %v2555 = vld [vmem:[%s2270 + $0x34] sm:$0xf]
  %v2556 = vld [vmem:[%s2270 + $0x40] sm:$0xf]
  %v2557 = vld [vmem:[%s2270 + $0x4c] sm:$0xf]
  %v2558 = vld [vmem:[%s2270 + $0x58] sm:$0xf]
  %v2559 = vld [vmem:[%s2270 + $0x7c] sm:$0xf]
  %v2560 = vld [vmem:[%s2270 + $0x88] sm:$0xf]
  %v2561 = vld [vmem:[%s2270 + $0x94] sm:$0xf]
  %v2562 = vld [vmem:[%s2270 + $0xa0] sm:$0xf]
  %v2563 = vld [vmem:[%s2270 + $0xac] sm:$0xf]
  %v2564 = vld [vmem:[%s2270 + $0xb8] sm:$0xf]
  %v2565 = vld [vmem:[%s2270 + $0xc4] sm:$0xf]
  %v2566 = vld [vmem:[%s2270 + $0xd0] sm:$0xf]
  %v2583 = vunpack.c.l.b16 %v2551
  %v2584 = vunpack.c.l.b16 %v2552
  %v2585 = vunpack.c.l.b16 %v2553
  %v2586 = vunpack.c.l.b16 %v2554
  %v2587 = vunpack.c.l.b16 %v2555
  %v2588 = vunpack.c.l.b16 %v2556
  %v2589 = vunpack.c.l.b16 %v2557
  %v2590 = vunpack.c.l.b16 %v2558
  %v2591 = vunpack.c.l.b16 %v2559
  %v2592 = vunpack.c.l.b16 %v2560
  %v2593 = vunpack.c.l.b16 %v2561
  %v2594 = vunpack.c.l.b16 %v2562
  %v2595 = vunpack.c.l.b16 %v2563
  %v2596 = vunpack.c.l.b16 %v2564
  %v2597 = vunpack.c.l.b16 %v2565
  %v2598 = vunpack.c.l.b16 %v2566
  %v2599 = vpack.c.b16 %v2584, %v2583
  %v2600 = vpack.c.b16 %v2586, %v2585
  %v2601 = vpack.c.b16 %v2588, %v2587
  %v2602 = vpack.c.b16 %v2590, %v2589
  %v2603 = vpack.c.b16 %v2592, %v2591
  %v2604 = vpack.c.b16 %v2594, %v2593
  %v2605 = vpack.c.b16 %v2596, %v2595
  %v2606 = vpack.c.b16 %v2598, %v2597
  %2615 = vst [vmem:[#allocation4 + $0x38] sm:$0xff] %v2599
  %2616 = vst [vmem:[#allocation4 + $0x80] sm:$0xff] %v2600
  %2617 = vst [vmem:[#allocation4 + $0xc8] sm:$0xff] %v2601
  %2618 = vst [vmem:[#allocation4 + $0x110] sm:$0xff] %v2602
  %2619 = vst [vmem:[#allocation4 + $0x158] sm:$0xff] %v2603
  %2620 = vst [vmem:[#allocation4 + $0x1a0] sm:$0xff] %v2604
  %2621 = vst [vmem:[#allocation4 + $0x1e8] sm:$0xff] %v2605
  %2622 = vst [vmem:[#allocation4 + $0x230] sm:$0xff] %v2606
  %v2623 = vld [vmem:[%s2270 + $0x4] sm:$0xf]
  %v2624 = vld [vmem:[%s2270 + $0x8] sm:$0x1]
  %v2625 = vld [vmem:[%s2270 + $0x10] sm:$0xf]
  %v2626 = vld [vmem:[%s2270 + $0x14] sm:$0x1]
  %v2627 = vld [vmem:[%s2270 + $0x1c] sm:$0xf]
  %v2628 = vld [vmem:[%s2270 + $0x20] sm:$0x1]
  %v2629 = vld [vmem:[%s2270 + $0x28] sm:$0xf]
  %v2630 = vld [vmem:[%s2270 + $0x2c] sm:$0x1]
  %v2631 = vld [vmem:[%s2270 + $0x34] sm:$0xf]
  %v2632 = vld [vmem:[%s2270 + $0x38] sm:$0x1]
  %v2633 = vld [vmem:[%s2270 + $0x40] sm:$0xf]
  %v2634 = vld [vmem:[%s2270 + $0x44] sm:$0x1]
  %v2635 = vld [vmem:[%s2270 + $0x4c] sm:$0xf]
  %v2636 = vld [vmem:[%s2270 + $0x50] sm:$0x1]
  %v2637 = vld [vmem:[%s2270 + $0x58] sm:$0xf]
  %v2638 = vld [vmem:[%s2270 + $0x5c] sm:$0x1]
  %v2639 = vld [vmem:[%s2270 + $0x7c] sm:$0xf]
  %v2640 = vld [vmem:[%s2270 + $0x80] sm:$0x1]
  %v2641 = vld [vmem:[%s2270 + $0x88] sm:$0xf]
  %v2642 = vld [vmem:[%s2270 + $0x8c] sm:$0x1]
  %v2643 = vld [vmem:[%s2270 + $0x94] sm:$0xf]
  %v2644 = vld [vmem:[%s2270 + $0x98] sm:$0x1]
  %v2645 = vld [vmem:[%s2270 + $0xa0] sm:$0xf]
  %v2646 = vld [vmem:[%s2270 + $0xa4] sm:$0x1]
  %v2647 = vld [vmem:[%s2270 + $0xac] sm:$0xf]
  %v2648 = vld [vmem:[%s2270 + $0xb0] sm:$0x1]
  %v2649 = vld [vmem:[%s2270 + $0xb8] sm:$0xf]
  %v2650 = vld [vmem:[%s2270 + $0xbc] sm:$0x1]
  %v2651 = vld [vmem:[%s2270 + $0xc4] sm:$0xf]
  %v2652 = vld [vmem:[%s2270 + $0xc8] sm:$0x1]
  %v2653 = vld [vmem:[%s2270 + $0xd0] sm:$0xf]
  %v2654 = vld [vmem:[%s2270 + $0xd4] sm:$0x1]
  %v2656 = vshrl.u32 %v2623, 16
  %v2658 = vrot.slane %v2656, 4
  %v2659 = vshll.u32 %v2623, 16
  %v2661 = vrot.slane %v2659, 5
  %v2662 = vor.u32 %v2658, %v2661
  %v2663 = vrot.slane %v2662, 4
  %v2665 = vshll.u32 %v2624, 16
  %v2667 = vrot.slane %v2665, 5
  %v2668 = vsel %vm1357, %v2663, %v2667
  %v2670 = vshrl.u32 %v2625, 16
  %v2672 = vrot.slane %v2670, 4
  %v2673 = vshll.u32 %v2625, 16
  %v2675 = vrot.slane %v2673, 5
  %v2676 = vor.u32 %v2672, %v2675
  %v2677 = vrot.slane %v2676, 4
  %v2679 = vshll.u32 %v2626, 16
  %v2681 = vrot.slane %v2679, 5
  %v2682 = vsel %vm1357, %v2677, %v2681
  %v2684 = vshrl.u32 %v2627, 16
  %v2686 = vrot.slane %v2684, 4
  %v2687 = vshll.u32 %v2627, 16
  %v2689 = vrot.slane %v2687, 5
  %v2690 = vor.u32 %v2686, %v2689
  %v2691 = vrot.slane %v2690, 4
  %v2693 = vshll.u32 %v2628, 16
  %v2695 = vrot.slane %v2693, 5
  %v2696 = vsel %vm1357, %v2691, %v2695
  %v2698 = vshrl.u32 %v2629, 16
  %v2700 = vrot.slane %v2698, 4
  %v2701 = vshll.u32 %v2629, 16
  %v2703 = vrot.slane %v2701, 5
  %v2704 = vor.u32 %v2700, %v2703
  %v2705 = vrot.slane %v2704, 4
  %v2707 = vshll.u32 %v2630, 16
  %v2709 = vrot.slane %v2707, 5
  %v2710 = vsel %vm1357, %v2705, %v2709
  %v2712 = vshrl.u32 %v2631, 16
  %v2714 = vrot.slane %v2712, 4
  %v2715 = vshll.u32 %v2631, 16
  %v2717 = vrot.slane %v2715, 5
  %v2718 = vor.u32 %v2714, %v2717
  %v2719 = vrot.slane %v2718, 4
  %v2721 = vshll.u32 %v2632, 16
  %v2723 = vrot.slane %v2721, 5
  %v2724 = vsel %vm1357, %v2719, %v2723
  %v2726 = vshrl.u32 %v2633, 16
  %v2728 = vrot.slane %v2726, 4
  %v2729 = vshll.u32 %v2633, 16
  %v2731 = vrot.slane %v2729, 5
  %v2732 = vor.u32 %v2728, %v2731
  %v2733 = vrot.slane %v2732, 4
  %v2735 = vshll.u32 %v2634, 16
  %v2737 = vrot.slane %v2735, 5
  %v2738 = vsel %vm1357, %v2733, %v2737
  %v2740 = vshrl.u32 %v2635, 16
  %v2742 = vrot.slane %v2740, 4
  %v2743 = vshll.u32 %v2635, 16
  %v2745 = vrot.slane %v2743, 5
  %v2746 = vor.u32 %v2742, %v2745
  %v2747 = vrot.slane %v2746, 4
  %v2749 = vshll.u32 %v2636, 16
  %v2751 = vrot.slane %v2749, 5
  %v2752 = vsel %vm1357, %v2747, %v2751
  %v2754 = vshrl.u32 %v2637, 16
  %v2756 = vrot.slane %v2754, 4
  %v2757 = vshll.u32 %v2637, 16
  %v2759 = vrot.slane %v2757, 5
  %v2760 = vor.u32 %v2756, %v2759
  %v2761 = vrot.slane %v2760, 4
  %v2763 = vshll.u32 %v2638, 16
  %v2765 = vrot.slane %v2763, 5
  %v2766 = vsel %vm1357, %v2761, %v2765
  %v2768 = vshrl.u32 %v2639, 16
  %v2770 = vrot.slane %v2768, 4
  %v2771 = vshll.u32 %v2639, 16
  %v2773 = vrot.slane %v2771, 5
  %v2774 = vor.u32 %v2770, %v2773
  %v2775 = vrot.slane %v2774, 4
  %v2777 = vshll.u32 %v2640, 16
  %v2779 = vrot.slane %v2777, 5
  %v2780 = vsel %vm1357, %v2775, %v2779
  %v2782 = vshrl.u32 %v2641, 16
  %v2784 = vrot.slane %v2782, 4
  %v2785 = vshll.u32 %v2641, 16
  %v2787 = vrot.slane %v2785, 5
  %v2788 = vor.u32 %v2784, %v2787
  %v2789 = vrot.slane %v2788, 4
  %v2791 = vshll.u32 %v2642, 16
  %v2793 = vrot.slane %v2791, 5
  %v2794 = vsel %vm1357, %v2789, %v2793
  %v2796 = vshrl.u32 %v2643, 16
  %v2798 = vrot.slane %v2796, 4
  %v2799 = vshll.u32 %v2643, 16
  %v2801 = vrot.slane %v2799, 5
  %v2802 = vor.u32 %v2798, %v2801
  %v2803 = vrot.slane %v2802, 4
  %v2805 = vshll.u32 %v2644, 16
  %v2807 = vrot.slane %v2805, 5
  %v2808 = vsel %vm1357, %v2803, %v2807
  %v2810 = vshrl.u32 %v2645, 16
  %v2812 = vrot.slane %v2810, 4
  %v2813 = vshll.u32 %v2645, 16
  %v2815 = vrot.slane %v2813, 5
  %v2816 = vor.u32 %v2812, %v2815
  %v2817 = vrot.slane %v2816, 4
  %v2819 = vshll.u32 %v2646, 16
  %v2821 = vrot.slane %v2819, 5
  %v2822 = vsel %vm1357, %v2817, %v2821
  %v2824 = vshrl.u32 %v2647, 16
  %v2826 = vrot.slane %v2824, 4
  %v2827 = vshll.u32 %v2647, 16
  %v2829 = vrot.slane %v2827, 5
  %v2830 = vor.u32 %v2826, %v2829
  %v2831 = vrot.slane %v2830, 4
  %v2833 = vshll.u32 %v2648, 16
  %v2835 = vrot.slane %v2833, 5
  %v2836 = vsel %vm1357, %v2831, %v2835
  %v2838 = vshrl.u32 %v2649, 16
  %v2840 = vrot.slane %v2838, 4
  %v2841 = vshll.u32 %v2649, 16
  %v2843 = vrot.slane %v2841, 5
  %v2844 = vor.u32 %v2840, %v2843
  %v2845 = vrot.slane %v2844, 4
  %v2847 = vshll.u32 %v2650, 16
  %v2849 = vrot.slane %v2847, 5
  %v2850 = vsel %vm1357, %v2845, %v2849
  %v2852 = vshrl.u32 %v2651, 16
  %v2854 = vrot.slane %v2852, 4
  %v2855 = vshll.u32 %v2651, 16
  %v2857 = vrot.slane %v2855, 5
  %v2858 = vor.u32 %v2854, %v2857
  %v2859 = vrot.slane %v2858, 4
  %v2861 = vshll.u32 %v2652, 16
  %v2863 = vrot.slane %v2861, 5
  %v2864 = vsel %vm1357, %v2859, %v2863
  %v2866 = vshrl.u32 %v2653, 16
  %v2868 = vrot.slane %v2866, 4
  %v2869 = vshll.u32 %v2653, 16
  %v2871 = vrot.slane %v2869, 5
  %v2872 = vor.u32 %v2868, %v2871
  %v2873 = vrot.slane %v2872, 4
  %v2875 = vshll.u32 %v2654, 16
  %v2877 = vrot.slane %v2875, 5
  %v2878 = vsel %vm1357, %v2873, %v2877
  %v2879 = vunpack.c.l.b16 %v2668
  %v2880 = vunpack.c.l.b16 %v2682
  %v2881 = vunpack.c.l.b16 %v2696
  %v2882 = vunpack.c.l.b16 %v2710
  %v2883 = vunpack.c.l.b16 %v2724
  %v2884 = vunpack.c.l.b16 %v2738
  %v2885 = vunpack.c.l.b16 %v2752
  %v2886 = vunpack.c.l.b16 %v2766
  %v2887 = vunpack.c.l.b16 %v2780
  %v2888 = vunpack.c.l.b16 %v2794
  %v2889 = vunpack.c.l.b16 %v2808
  %v2890 = vunpack.c.l.b16 %v2822
  %v2891 = vunpack.c.l.b16 %v2836
  %v2892 = vunpack.c.l.b16 %v2850
  %v2893 = vunpack.c.l.b16 %v2864
  %v2894 = vunpack.c.l.b16 %v2878
  %v2895 = vpack.c.b16 %v2880, %v2879
  %v2896 = vpack.c.b16 %v2882, %v2881
  %v2897 = vpack.c.b16 %v2884, %v2883
  %v2898 = vpack.c.b16 %v2886, %v2885
  %v2899 = vpack.c.b16 %v2888, %v2887
  %v2900 = vpack.c.b16 %v2890, %v2889
  %v2901 = vpack.c.b16 %v2892, %v2891
  %v2902 = vpack.c.b16 %v2894, %v2893
  %2911 = vst [vmem:[#allocation4 + $0x40] sm:$0xff] %v2895
  %2912 = vst [vmem:[#allocation4 + $0x88] sm:$0xff] %v2896
  %2913 = vst [vmem:[#allocation4 + $0xd0] sm:$0xff] %v2897
  %2914 = vst [vmem:[#allocation4 + $0x118] sm:$0xff] %v2898
  %2915 = vst [vmem:[#allocation4 + $0x160] sm:$0xff] %v2899
  %2916 = vst [vmem:[#allocation4 + $0x1a8] sm:$0xff] %v2900
  %2917 = vst [vmem:[#allocation4 + $0x1f0] sm:$0xff] %v2901
  %2918 = vst [vmem:[#allocation4 + $0x238] sm:$0xff] %v2902
  %v2919 = vld [vmem:[#allocation4] sm:$0xff]
  %v2920 = vld [vmem:[#allocation4 + $0x8] sm:$0xff]
  %v2921 = vld [vmem:[#allocation4 + $0x10] sm:$0xff]
  %v2922 = vld [vmem:[#allocation4 + $0x18] sm:$0xff]
  %v2923 = vld [vmem:[#allocation4 + $0x20] sm:$0xff]
  %v2924 = vld [vmem:[#allocation4 + $0x28] sm:$0xff]
  %v2925 = vld [vmem:[#allocation4 + $0x30] sm:$0xff]
  %v2926 = vld [vmem:[#allocation4 + $0x38] sm:$0xff]
  %v2927 = vld [vmem:[#allocation4 + $0x40] sm:$0xff]
  %v2928 = vld [vmem:[#allocation4 + $0x48] sm:$0xff]
  %v2929 = vld [vmem:[#allocation4 + $0x50] sm:$0xff]
  %v2930 = vld [vmem:[#allocation4 + $0x58] sm:$0xff]
  %v2931 = vld [vmem:[#allocation4 + $0x60] sm:$0xff]
  %v2932 = vld [vmem:[#allocation4 + $0x68] sm:$0xff]
  %v2933 = vld [vmem:[#allocation4 + $0x70] sm:$0xff]
  %v2934 = vld [vmem:[#allocation4 + $0x78] sm:$0xff]
  %v2935 = vld [vmem:[#allocation4 + $0x80] sm:$0xff]
  %v2936 = vld [vmem:[#allocation4 + $0x88] sm:$0xff]
  %v2937 = vld [vmem:[#allocation4 + $0x90] sm:$0xff]
  %v2938 = vld [vmem:[#allocation4 + $0x98] sm:$0xff]
  %v2939 = vld [vmem:[#allocation4 + $0xa0] sm:$0xff]
  %v2940 = vld [vmem:[#allocation4 + $0xa8] sm:$0xff]
  %v2941 = vld [vmem:[#allocation4 + $0xb0] sm:$0xff]
  %v2942 = vld [vmem:[#allocation4 + $0xb8] sm:$0xff]
  %v2943 = vld [vmem:[#allocation4 + $0xc0] sm:$0xff]
  %v2944 = vld [vmem:[#allocation4 + $0xc8] sm:$0xff]
  %v2945 = vld [vmem:[#allocation4 + $0xd0] sm:$0xff]
  %v2946 = vld [vmem:[#allocation4 + $0xd8] sm:$0xff]
  %v2947 = vld [vmem:[#allocation4 + $0xe0] sm:$0xff]
  %v2948 = vld [vmem:[#allocation4 + $0xe8] sm:$0xff]
  %v2949 = vld [vmem:[#allocation4 + $0xf0] sm:$0xff]
  %v2950 = vld [vmem:[#allocation4 + $0xf8] sm:$0xff]
  %v2951 = vld [vmem:[#allocation4 + $0x100] sm:$0xff]
  %v2952 = vld [vmem:[#allocation4 + $0x108] sm:$0xff]
  %v2953 = vld [vmem:[#allocation4 + $0x110] sm:$0xff]
  %v2954 = vld [vmem:[#allocation4 + $0x118] sm:$0xff]
  %v2955 = vld [vmem:[#allocation4 + $0x120] sm:$0xff]
  %v2956 = vld [vmem:[#allocation4 + $0x128] sm:$0xff]
  %v2957 = vld [vmem:[#allocation4 + $0x130] sm:$0xff]
  %v2958 = vld [vmem:[#allocation4 + $0x138] sm:$0xff]
  %v2959 = vld [vmem:[#allocation4 + $0x140] sm:$0xff]
  %v2960 = vld [vmem:[#allocation4 + $0x148] sm:$0xff]
  %v2961 = vld [vmem:[#allocation4 + $0x150] sm:$0xff]
  %v2962 = vld [vmem:[#allocation4 + $0x158] sm:$0xff]
  %v2963 = vld [vmem:[#allocation4 + $0x160] sm:$0xff]
  %v2964 = vld [vmem:[#allocation4 + $0x168] sm:$0xff]
  %v2965 = vld [vmem:[#allocation4 + $0x170] sm:$0xff]
  %v2966 = vld [vmem:[#allocation4 + $0x178] sm:$0xff]
  %v2967 = vld [vmem:[#allocation4 + $0x180] sm:$0xff]
  %v2968 = vld [vmem:[#allocation4 + $0x188] sm:$0xff]
  %v2969 = vld [vmem:[#allocation4 + $0x190] sm:$0xff]
  %v2970 = vld [vmem:[#allocation4 + $0x198] sm:$0xff]
  %v2971 = vld [vmem:[#allocation4 + $0x1a0] sm:$0xff]
  %v2972 = vld [vmem:[#allocation4 + $0x1a8] sm:$0xff]
  %v2973 = vld [vmem:[#allocation4 + $0x1b0] sm:$0xff]
  %v2974 = vld [vmem:[#allocation4 + $0x1b8] sm:$0xff]
  %v2975 = vld [vmem:[#allocation4 + $0x1c0] sm:$0xff]
  %v2976 = vld [vmem:[#allocation4 + $0x1c8] sm:$0xff]
  %v2977 = vld [vmem:[#allocation4 + $0x1d0] sm:$0xff]
  %v2978 = vld [vmem:[#allocation4 + $0x1d8] sm:$0xff]
  %v2979 = vld [vmem:[#allocation4 + $0x1e0] sm:$0xff]
  %v2980 = vld [vmem:[#allocation4 + $0x1e8] sm:$0xff]
  %v2981 = vld [vmem:[#allocation4 + $0x1f0] sm:$0xff]
  %v2982 = vld [vmem:[#allocation4 + $0x1f8] sm:$0xff]
  %v2983 = vld [vmem:[#allocation4 + $0x200] sm:$0xff]
  %v2984 = vld [vmem:[#allocation4 + $0x208] sm:$0xff]
  %v2985 = vld [vmem:[#allocation4 + $0x210] sm:$0xff]
  %v2986 = vld [vmem:[#allocation4 + $0x218] sm:$0xff]
  %v2987 = vld [vmem:[#allocation4 + $0x220] sm:$0xff]
  %v2988 = vld [vmem:[#allocation4 + $0x228] sm:$0xff]
  %v2989 = vld [vmem:[#allocation4 + $0x230] sm:$0xff]
  %v2990 = vld [vmem:[#allocation4 + $0x238] sm:$0xff]
  %v2991 = vld [vmem:[%s3] sm:$0xf]
  %v2992 = vld [vmem:[%s3 + $0x4] sm:$0xf]
  %v2993 = vld [vmem:[%s3 + $0x8] sm:$0xf]
  %v2994 = vld [vmem:[%s3 + $0xc] sm:$0xf]
  %v2995 = vld [vmem:[%s3 + $0x10] sm:$0xf]
  %v2996 = vld [vmem:[%s3 + $0x14] sm:$0xf]
  %v2997 = vld [vmem:[%s3 + $0x18] sm:$0xf]
  %v2998 = vld [vmem:[%s3 + $0x1c] sm:$0xf]
  %v2999 = vld [vmem:[%s3 + $0x20] sm:$0xf]
  %v3000 = vld [vmem:[%s3 + $0x24] sm:$0xf]
  %v3001 = vld [vmem:[%s3 + $0x28] sm:$0xf]
  %v3002 = vld [vmem:[%s3 + $0x2c] sm:$0xf]
  %v3003 = vld [vmem:[%s3 + $0x30] sm:$0xf]
  %v3004 = vld [vmem:[%s3 + $0x34] sm:$0xf]
  %v3005 = vld [vmem:[%s3 + $0x38] sm:$0xf]
  %v3006 = vld [vmem:[%s3 + $0x3c] sm:$0xf]
  %v3007 = vld [vmem:[%s3 + $0x40] sm:$0xf]
  %v3008 = vld [vmem:[%s3 + $0x44] sm:$0xf]
  %v3009 = vld [vmem:[%s3 + $0x48] sm:$0xf]
  %v3010 = vld [vmem:[%s3 + $0x4c] sm:$0xf]
  %v3011 = vld [vmem:[%s3 + $0x50] sm:$0xf]
  %v3012 = vld [vmem:[%s3 + $0x54] sm:$0xf]
  %v3013 = vld [vmem:[%s3 + $0x58] sm:$0xf]
  %v3014 = vld [vmem:[%s3 + $0x5c] sm:$0xf]
  %v3015 = vld [vmem:[%s3 + $0x60] sm:$0xf]
  %v3016 = vld [vmem:[%s3 + $0x64] sm:$0xf]
  %v3017 = vld [vmem:[%s3 + $0x68] sm:$0xf]
  %v3018 = vld [vmem:[%s3 + $0x6c] sm:$0xf]
  %v3019 = vld [vmem:[%s3 + $0x70] sm:$0xf]
  %v3020 = vld [vmem:[%s3 + $0x74] sm:$0xf]
  %v3021 = vld [vmem:[%s3 + $0x78] sm:$0xf]
  %v3022 = vld [vmem:[%s3 + $0x7c] sm:$0xf]
  %v3023 = vld [vmem:[%s3 + $0x80] sm:$0xf]
  %v3024 = vld [vmem:[%s3 + $0x84] sm:$0xf]
  %v3025 = vld [vmem:[%s3 + $0x88] sm:$0xf]
  %v3026 = vld [vmem:[%s3 + $0x8c] sm:$0xf]
  %v3027 = vld [vmem:[%s3 + $0x90] sm:$0xf]
  %v3028 = vld [vmem:[%s3 + $0x94] sm:$0xf]
  %v3029 = vld [vmem:[%s3 + $0x98] sm:$0xf]
  %v3030 = vld [vmem:[%s3 + $0x9c] sm:$0xf]
  %v3031 = vld [vmem:[%s3 + $0xa0] sm:$0xf]
  %v3032 = vld [vmem:[%s3 + $0xa4] sm:$0xf]
  %v3033 = vld [vmem:[%s3 + $0xa8] sm:$0xf]
  %v3034 = vld [vmem:[%s3 + $0xac] sm:$0xf]
  %v3035 = vld [vmem:[%s3 + $0xb0] sm:$0xf]
  %v3036 = vld [vmem:[%s3 + $0xb4] sm:$0xf]
  %v3037 = vld [vmem:[%s3 + $0xb8] sm:$0xf]
  %v3038 = vld [vmem:[%s3 + $0xbc] sm:$0xf]
  %v3039 = vld [vmem:[%s3 + $0xc0] sm:$0xf]
  %v3040 = vld [vmem:[%s3 + $0xc4] sm:$0xf]
  %v3041 = vld [vmem:[%s3 + $0xc8] sm:$0xf]
  %v3042 = vld [vmem:[%s3 + $0xcc] sm:$0xf]
  %v3043 = vld [vmem:[%s3 + $0xd0] sm:$0xf]
  %v3044 = vld [vmem:[%s3 + $0xd4] sm:$0xf]
  %v3045 = vld [vmem:[%s3 + $0xd8] sm:$0xf]
  %v3046 = vld [vmem:[%s3 + $0xdc] sm:$0xf]
  %v3047 = vld [vmem:[%s3 + $0xe0] sm:$0xf]
  %v3048 = vld [vmem:[%s3 + $0xe4] sm:$0xf]
  %v3049 = vld [vmem:[%s3 + $0xe8] sm:$0xf]
  %v3050 = vld [vmem:[%s3 + $0xec] sm:$0xf]
  %v3051 = vld [vmem:[%s3 + $0xf0] sm:$0xf]
  %v3052 = vld [vmem:[%s3 + $0xf4] sm:$0xf]
  %v3053 = vld [vmem:[%s3 + $0xf8] sm:$0xf]
  %v3054 = vld [vmem:[%s3 + $0xfc] sm:$0xf]
  %v3055 = vld [vmem:[%s3 + $0x100] sm:$0xf]
  %v3056 = vld [vmem:[%s3 + $0x104] sm:$0xf]
  %v3057 = vld [vmem:[%s3 + $0x108] sm:$0xf]
  %v3058 = vld [vmem:[%s3 + $0x10c] sm:$0xf]
  %v3059 = vld [vmem:[%s3 + $0x110] sm:$0xf]
  %v3060 = vld [vmem:[%s3 + $0x114] sm:$0xf]
  %v3061 = vld [vmem:[%s3 + $0x118] sm:$0xf]
  %v3062 = vld [vmem:[%s3 + $0x11c] sm:$0xf]
  %v3063 = vld [vmem:[%s3 + $0x120] sm:$0xf]
  %v3064 = vld [vmem:[%s3 + $0x124] sm:$0xf]
  %v3065 = vld [vmem:[%s3 + $0x128] sm:$0xf]
  %v3066 = vld [vmem:[%s3 + $0x12c] sm:$0xf]
  %v3067 = vld [vmem:[%s3 + $0x130] sm:$0xf]
  %v3068 = vld [vmem:[%s3 + $0x134] sm:$0xf]
  %v3069 = vld [vmem:[%s3 + $0x138] sm:$0xf]
  %v3070 = vld [vmem:[%s3 + $0x13c] sm:$0xf]
  %v3071 = vld [vmem:[%s3 + $0x140] sm:$0xf]
  %v3072 = vld [vmem:[%s3 + $0x144] sm:$0xf]
  %v3073 = vld [vmem:[%s3 + $0x148] sm:$0xf]
  %v3074 = vld [vmem:[%s3 + $0x14c] sm:$0xf]
  %v3075 = vld [vmem:[%s3 + $0x150] sm:$0xf]
  %v3076 = vld [vmem:[%s3 + $0x154] sm:$0xf]
  %v3077 = vld [vmem:[%s3 + $0x158] sm:$0xf]
  %v3078 = vld [vmem:[%s3 + $0x15c] sm:$0xf]
  %v3079 = vld [vmem:[%s3 + $0x160] sm:$0xf]
  %v3080 = vld [vmem:[%s3 + $0x164] sm:$0xf]
  %v3081 = vld [vmem:[%s3 + $0x168] sm:$0xf]
  %v3082 = vld [vmem:[%s3 + $0x16c] sm:$0xf]
  %v3083 = vld [vmem:[%s3 + $0x170] sm:$0xf]
  %v3084 = vld [vmem:[%s3 + $0x174] sm:$0xf]
  %v3085 = vld [vmem:[%s3 + $0x178] sm:$0xf]
  %v3086 = vld [vmem:[%s3 + $0x17c] sm:$0xf]
  %v3087 = vld [vmem:[%s3 + $0x180] sm:$0xf]
  %v3088 = vld [vmem:[%s3 + $0x184] sm:$0xf]
  %v3089 = vld [vmem:[%s3 + $0x188] sm:$0xf]
  %v3090 = vld [vmem:[%s3 + $0x18c] sm:$0xf]
  %v3091 = vld [vmem:[%s3 + $0x190] sm:$0xf]
  %v3092 = vld [vmem:[%s3 + $0x194] sm:$0xf]
  %v3093 = vld [vmem:[%s3 + $0x198] sm:$0xf]
  %v3094 = vld [vmem:[%s3 + $0x19c] sm:$0xf]
  %v3095 = vld [vmem:[%s3 + $0x1a0] sm:$0xf]
  %v3096 = vld [vmem:[%s3 + $0x1a4] sm:$0xf]
  %v3097 = vld [vmem:[%s3 + $0x1a8] sm:$0xf]
  %v3098 = vld [vmem:[%s3 + $0x1ac] sm:$0xf]
  %v3099 = vld [vmem:[%s3 + $0x1b0] sm:$0xf]
  %v3100 = vld [vmem:[%s3 + $0x1b4] sm:$0xf]
  %v3101 = vld [vmem:[%s3 + $0x1b8] sm:$0xf]
  %v3102 = vld [vmem:[%s3 + $0x1bc] sm:$0xf]
  %v3103 = vld [vmem:[%s3 + $0x1c0] sm:$0xf]
  %v3104 = vld [vmem:[%s3 + $0x1c4] sm:$0xf]
  %v3105 = vld [vmem:[%s3 + $0x1c8] sm:$0xf]
  %v3106 = vld [vmem:[%s3 + $0x1cc] sm:$0xf]
  %v3107 = vld [vmem:[%s3 + $0x1d0] sm:$0xf]
  %v3108 = vld [vmem:[%s3 + $0x1d4] sm:$0xf]
  %v3109 = vld [vmem:[%s3 + $0x1d8] sm:$0xf]
  %v3110 = vld [vmem:[%s3 + $0x1dc] sm:$0xf]
  %v3111 = vld [vmem:[%s3 + $0x1e0] sm:$0xf]
  %v3112 = vld [vmem:[%s3 + $0x1e4] sm:$0xf]
  %v3113 = vld [vmem:[%s3 + $0x1e8] sm:$0xf]
  %v3114 = vld [vmem:[%s3 + $0x1ec] sm:$0xf]
  %v3115 = vld [vmem:[%s3 + $0x1f0] sm:$0xf]
  %v3116 = vld [vmem:[%s3 + $0x1f4] sm:$0xf]
  %v3117 = vld [vmem:[%s3 + $0x1f8] sm:$0xf]
  %v3118 = vld [vmem:[%s3 + $0x1fc] sm:$0xf]
  %v3119 = vld [vmem:[%s3 + $0x200] sm:$0xf]
  %v3120 = vld [vmem:[%s3 + $0x204] sm:$0xf]
  %v3121 = vld [vmem:[%s3 + $0x208] sm:$0xf]
  %v3122 = vld [vmem:[%s3 + $0x20c] sm:$0xf]
  %v3123 = vld [vmem:[%s3 + $0x210] sm:$0xf]
  %v3124 = vld [vmem:[%s3 + $0x214] sm:$0xf]
  %v3125 = vld [vmem:[%s3 + $0x218] sm:$0xf]
  %v3126 = vld [vmem:[%s3 + $0x21c] sm:$0xf]
  %v3127 = vld [vmem:[%s3 + $0x220] sm:$0xf]
  %v3128 = vld [vmem:[%s3 + $0x224] sm:$0xf]
  %v3129 = vld [vmem:[%s3 + $0x228] sm:$0xf]
  %v3130 = vld [vmem:[%s3 + $0x22c] sm:$0xf]
  %v3131 = vld [vmem:[%s3 + $0x230] sm:$0xf]
  %v3132 = vld [vmem:[%s3 + $0x234] sm:$0xf]
  %v3133 = vld [vmem:[%s3 + $0x238] sm:$0xf]
  %v3134 = vld [vmem:[%s3 + $0x23c] sm:$0xf]
  %v3135 = vld [vmem:[#allocation5] sm:$0xff]
  %v3136 = vld [vmem:[#allocation5 + $0x8] sm:$0xff]
  %v3137 = vld [vmem:[#allocation5 + $0x10] sm:$0xff]
  %v3138 = vld [vmem:[#allocation5 + $0x18] sm:$0xff]
  %v3139 = vld [vmem:[#allocation5 + $0x20] sm:$0xff]
  %v3140 = vld [vmem:[#allocation5 + $0x28] sm:$0xff]
  %v3141 = vld [vmem:[#allocation5 + $0x30] sm:$0xff]
  %v3142 = vld [vmem:[#allocation5 + $0x38] sm:$0xff]
  %v3143 = vld [vmem:[#allocation5 + $0x40] sm:$0xff]
  %v3144 = vld [vmem:[#allocation5 + $0x48] sm:$0xff]
  %v3145 = vld [vmem:[#allocation5 + $0x50] sm:$0xff]
  %v3146 = vld [vmem:[#allocation5 + $0x58] sm:$0xff]
  %v3147 = vld [vmem:[#allocation5 + $0x60] sm:$0xff]
  %v3148 = vld [vmem:[#allocation5 + $0x68] sm:$0xff]
  %v3149 = vld [vmem:[#allocation5 + $0x70] sm:$0xff]
  %v3150 = vld [vmem:[#allocation5 + $0x78] sm:$0xff]
  %v3295 = vunpack.c.l.b16 %v2991
  %v3296 = vunpack.c.l.b16 %v2992
  %v3297 = vunpack.c.l.b16 %v2993
  %v3298 = vunpack.c.l.b16 %v2994
  %v3299 = vunpack.c.l.b16 %v2995
  %v3300 = vunpack.c.l.b16 %v2996
  %v3301 = vunpack.c.l.b16 %v2997
  %v3302 = vunpack.c.l.b16 %v2998
  %v3303 = vunpack.c.l.b16 %v2999
  %v3304 = vunpack.c.l.b16 %v3000
  %v3305 = vunpack.c.l.b16 %v3001
  %v3306 = vunpack.c.l.b16 %v3002
  %v3307 = vunpack.c.l.b16 %v3003
  %v3308 = vunpack.c.l.b16 %v3004
  %v3309 = vunpack.c.l.b16 %v3005
  %v3310 = vunpack.c.l.b16 %v3006
  %v3311 = vunpack.c.l.b16 %v3007
  %v3312 = vunpack.c.l.b16 %v3008
  %v3313 = vunpack.c.l.b16 %v3009
  %v3314 = vunpack.c.l.b16 %v3010
  %v3315 = vunpack.c.l.b16 %v3011
  %v3316 = vunpack.c.l.b16 %v3012
  %v3317 = vunpack.c.l.b16 %v3013
  %v3318 = vunpack.c.l.b16 %v3014
  %v3319 = vunpack.c.l.b16 %v3015
  %v3320 = vunpack.c.l.b16 %v3016
  %v3321 = vunpack.c.l.b16 %v3017
  %v3322 = vunpack.c.l.b16 %v3018
  %v3323 = vunpack.c.l.b16 %v3019
  %v3324 = vunpack.c.l.b16 %v3020
  %v3325 = vunpack.c.l.b16 %v3021
  %v3326 = vunpack.c.l.b16 %v3022
  %v3327 = vunpack.c.l.b16 %v3023
  %v3328 = vunpack.c.l.b16 %v3024
  %v3329 = vunpack.c.l.b16 %v3025
  %v3330 = vunpack.c.l.b16 %v3026
  %v3331 = vunpack.c.l.b16 %v3027
  %v3332 = vunpack.c.l.b16 %v3028
  %v3333 = vunpack.c.l.b16 %v3029
  %v3334 = vunpack.c.l.b16 %v3030
  %v3335 = vunpack.c.l.b16 %v3031
  %v3336 = vunpack.c.l.b16 %v3032
  %v3337 = vunpack.c.l.b16 %v3033
  %v3338 = vunpack.c.l.b16 %v3034
  %v3339 = vunpack.c.l.b16 %v3035
  %v3340 = vunpack.c.l.b16 %v3036
  %v3341 = vunpack.c.l.b16 %v3037
  %v3342 = vunpack.c.l.b16 %v3038
  %v3343 = vunpack.c.l.b16 %v3039
  %v3344 = vunpack.c.l.b16 %v3040
  %v3345 = vunpack.c.l.b16 %v3041
  %v3346 = vunpack.c.l.b16 %v3042
  %v3347 = vunpack.c.l.b16 %v3043
  %v3348 = vunpack.c.l.b16 %v3044
  %v3349 = vunpack.c.l.b16 %v3045
  %v3350 = vunpack.c.l.b16 %v3046
  %v3351 = vunpack.c.l.b16 %v3047
  %v3352 = vunpack.c.l.b16 %v3048
  %v3353 = vunpack.c.l.b16 %v3049
  %v3354 = vunpack.c.l.b16 %v3050
  %v3355 = vunpack.c.l.b16 %v3051
  %v3356 = vunpack.c.l.b16 %v3052
  %v3357 = vunpack.c.l.b16 %v3053
  %v3358 = vunpack.c.l.b16 %v3054
  %v3359 = vunpack.c.l.b16 %v3055
  %v3360 = vunpack.c.l.b16 %v3056
  %v3361 = vunpack.c.l.b16 %v3057
  %v3362 = vunpack.c.l.b16 %v3058
  %v3363 = vunpack.c.l.b16 %v3059
  %v3364 = vunpack.c.l.b16 %v3060
  %v3365 = vunpack.c.l.b16 %v3061
  %v3366 = vunpack.c.l.b16 %v3062
  %v3367 = vunpack.c.l.b16 %v3063
  %v3368 = vunpack.c.l.b16 %v3064
  %v3369 = vunpack.c.l.b16 %v3065
  %v3370 = vunpack.c.l.b16 %v3066
  %v3371 = vunpack.c.l.b16 %v3067
  %v3372 = vunpack.c.l.b16 %v3068
  %v3373 = vunpack.c.l.b16 %v3069
  %v3374 = vunpack.c.l.b16 %v3070
  %v3375 = vunpack.c.l.b16 %v3071
  %v3376 = vunpack.c.l.b16 %v3072
  %v3377 = vunpack.c.l.b16 %v3073
  %v3378 = vunpack.c.l.b16 %v3074
  %v3379 = vunpack.c.l.b16 %v3075
  %v3380 = vunpack.c.l.b16 %v3076
  %v3381 = vunpack.c.l.b16 %v3077
  %v3382 = vunpack.c.l.b16 %v3078
  %v3383 = vunpack.c.l.b16 %v3079
  %v3384 = vunpack.c.l.b16 %v3080
  %v3385 = vunpack.c.l.b16 %v3081
  %v3386 = vunpack.c.l.b16 %v3082
  %v3387 = vunpack.c.l.b16 %v3083
  %v3388 = vunpack.c.l.b16 %v3084
  %v3389 = vunpack.c.l.b16 %v3085
  %v3390 = vunpack.c.l.b16 %v3086
  %v3391 = vunpack.c.l.b16 %v3087
  %v3392 = vunpack.c.l.b16 %v3088
  %v3393 = vunpack.c.l.b16 %v3089
  %v3394 = vunpack.c.l.b16 %v3090
  %v3395 = vunpack.c.l.b16 %v3091
  %v3396 = vunpack.c.l.b16 %v3092
  %v3397 = vunpack.c.l.b16 %v3093
  %v3398 = vunpack.c.l.b16 %v3094
  %v3399 = vunpack.c.l.b16 %v3095
  %v3400 = vunpack.c.l.b16 %v3096
  %v3401 = vunpack.c.l.b16 %v3097
  %v3402 = vunpack.c.l.b16 %v3098
  %v3403 = vunpack.c.l.b16 %v3099
  %v3404 = vunpack.c.l.b16 %v3100
  %v3405 = vunpack.c.l.b16 %v3101
  %v3406 = vunpack.c.l.b16 %v3102
  %v3407 = vunpack.c.l.b16 %v3103
  %v3408 = vunpack.c.l.b16 %v3104
  %v3409 = vunpack.c.l.b16 %v3105
  %v3410 = vunpack.c.l.b16 %v3106
  %v3411 = vunpack.c.l.b16 %v3107
  %v3412 = vunpack.c.l.b16 %v3108
  %v3413 = vunpack.c.l.b16 %v3109
  %v3414 = vunpack.c.l.b16 %v3110
  %v3415 = vunpack.c.l.b16 %v3111
  %v3416 = vunpack.c.l.b16 %v3112
  %v3417 = vunpack.c.l.b16 %v3113
  %v3418 = vunpack.c.l.b16 %v3114
  %v3419 = vunpack.c.l.b16 %v3115
  %v3420 = vunpack.c.l.b16 %v3116
  %v3421 = vunpack.c.l.b16 %v3117
  %v3422 = vunpack.c.l.b16 %v3118
  %v3423 = vunpack.c.l.b16 %v3119
  %v3424 = vunpack.c.l.b16 %v3120
  %v3425 = vunpack.c.l.b16 %v3121
  %v3426 = vunpack.c.l.b16 %v3122
  %v3427 = vunpack.c.l.b16 %v3123
  %v3428 = vunpack.c.l.b16 %v3124
  %v3429 = vunpack.c.l.b16 %v3125
  %v3430 = vunpack.c.l.b16 %v3126
  %v3431 = vunpack.c.l.b16 %v3127
  %v3432 = vunpack.c.l.b16 %v3128
  %v3433 = vunpack.c.l.b16 %v3129
  %v3434 = vunpack.c.l.b16 %v3130
  %v3435 = vunpack.c.l.b16 %v3131
  %v3436 = vunpack.c.l.b16 %v3132
  %v3437 = vunpack.c.l.b16 %v3133
  %v3438 = vunpack.c.l.b16 %v3134
  %v3439 = vpack.c.b16 %v3296, %v3295
  %v3440 = vpack.c.b16 %v3298, %v3297
  %v3441 = vpack.c.b16 %v3300, %v3299
  %v3442 = vpack.c.b16 %v3302, %v3301
  %v3443 = vpack.c.b16 %v3304, %v3303
  %v3444 = vpack.c.b16 %v3306, %v3305
  %v3445 = vpack.c.b16 %v3308, %v3307
  %v3446 = vpack.c.b16 %v3310, %v3309
  %v3447 = vpack.c.b16 %v3312, %v3311
  %v3448 = vpack.c.b16 %v3314, %v3313
  %v3449 = vpack.c.b16 %v3316, %v3315
  %v3450 = vpack.c.b16 %v3318, %v3317
  %v3451 = vpack.c.b16 %v3320, %v3319
  %v3452 = vpack.c.b16 %v3322, %v3321
  %v3453 = vpack.c.b16 %v3324, %v3323
  %v3454 = vpack.c.b16 %v3326, %v3325
  %v3455 = vpack.c.b16 %v3328, %v3327
  %v3456 = vpack.c.b16 %v3330, %v3329
  %v3457 = vpack.c.b16 %v3332, %v3331
  %v3458 = vpack.c.b16 %v3334, %v3333
  %v3459 = vpack.c.b16 %v3336, %v3335
  %v3460 = vpack.c.b16 %v3338, %v3337
  %v3461 = vpack.c.b16 %v3340, %v3339
  %v3462 = vpack.c.b16 %v3342, %v3341
  %v3463 = vpack.c.b16 %v3344, %v3343
  %v3464 = vpack.c.b16 %v3346, %v3345
  %v3465 = vpack.c.b16 %v3348, %v3347
  %v3466 = vpack.c.b16 %v3350, %v3349
  %v3467 = vpack.c.b16 %v3352, %v3351
  %v3468 = vpack.c.b16 %v3354, %v3353
  %v3469 = vpack.c.b16 %v3356, %v3355
  %v3470 = vpack.c.b16 %v3358, %v3357
  %v3471 = vpack.c.b16 %v3360, %v3359
  %v3472 = vpack.c.b16 %v3362, %v3361
  %v3473 = vpack.c.b16 %v3364, %v3363
  %v3474 = vpack.c.b16 %v3366, %v3365
  %v3475 = vpack.c.b16 %v3368, %v3367
  %v3476 = vpack.c.b16 %v3370, %v3369
  %v3477 = vpack.c.b16 %v3372, %v3371
  %v3478 = vpack.c.b16 %v3374, %v3373
  %v3479 = vpack.c.b16 %v3376, %v3375
  %v3480 = vpack.c.b16 %v3378, %v3377
  %v3481 = vpack.c.b16 %v3380, %v3379
  %v3482 = vpack.c.b16 %v3382, %v3381
  %v3483 = vpack.c.b16 %v3384, %v3383
  %v3484 = vpack.c.b16 %v3386, %v3385
  %v3485 = vpack.c.b16 %v3388, %v3387
  %v3486 = vpack.c.b16 %v3390, %v3389
  %v3487 = vpack.c.b16 %v3392, %v3391
  %v3488 = vpack.c.b16 %v3394, %v3393
  %v3489 = vpack.c.b16 %v3396, %v3395
  %v3490 = vpack.c.b16 %v3398, %v3397
  %v3491 = vpack.c.b16 %v3400, %v3399
  %v3492 = vpack.c.b16 %v3402, %v3401
  %v3493 = vpack.c.b16 %v3404, %v3403
  %v3494 = vpack.c.b16 %v3406, %v3405
  %v3495 = vpack.c.b16 %v3408, %v3407
  %v3496 = vpack.c.b16 %v3410, %v3409
  %v3497 = vpack.c.b16 %v3412, %v3411
  %v3498 = vpack.c.b16 %v3414, %v3413
  %v3499 = vpack.c.b16 %v3416, %v3415
  %v3500 = vpack.c.b16 %v3418, %v3417
  %v3501 = vpack.c.b16 %v3420, %v3419
  %v3502 = vpack.c.b16 %v3422, %v3421
  %v3503 = vpack.c.b16 %v3424, %v3423
  %v3504 = vpack.c.b16 %v3426, %v3425
  %v3505 = vpack.c.b16 %v3428, %v3427
  %v3506 = vpack.c.b16 %v3430, %v3429
  %v3507 = vpack.c.b16 %v3432, %v3431
  %v3508 = vpack.c.b16 %v3434, %v3433
  %v3509 = vpack.c.b16 %v3436, %v3435
  %v3510 = vpack.c.b16 %v3438, %v3437
  %3583 = vmatprep.subr.bf16.mxu0 0
  %3584 = vmatpush1.bf16.msra.mxu0 %v3439
  %3585 = vmatprep.subr.bf16.mxu0 0
  %3586 = vmatpush1.bf16.msra.mxu0 %v3440
  %3587 = vmatprep.subr.bf16.mxu0 0
  %3588 = vmatpush1.bf16.msra.mxu0 %v3441
  %3589 = vmatprep.subr.bf16.mxu0 0
  %3590 = vmatpush1.bf16.msra.mxu0 %v3442
  %3591 = vmatprep.subr.bf16.mxu0 0
  %3592 = vmatpush1.bf16.msra.mxu0 %v3443
  %3593 = vmatprep.subr.bf16.mxu0 0
  %3594 = vmatpush1.bf16.msra.mxu0 %v3444
  %3595 = vmatprep.subr.bf16.mxu0 0
  %3596 = vmatpush1.bf16.msra.mxu0 %v3445
  %3597 = vmatprep.subr.bf16.mxu0 0
  %3598 = vmatpush1.bf16.msra.mxu0 %v3446
  %3599 = vmatprep.subr.bf16.mxu0 0
  %3600 = vmatpush1.bf16.msra.mxu0 %v3447
  %3601 = vmatprep.subr.bf16.mxu0 0
  %3602 = vmatpush1.bf16.msra.mxu0 %v3448
  %3603 = vmatprep.subr.bf16.mxu0 0
  %3604 = vmatpush1.bf16.msra.mxu0 %v3449
  %3605 = vmatprep.subr.bf16.mxu0 0
  %3606 = vmatpush1.bf16.msra.mxu0 %v3450
  %3607 = vmatprep.subr.bf16.mxu0 0
  %3608 = vmatpush1.bf16.msra.mxu0 %v3451
  %3609 = vmatprep.subr.bf16.mxu0 0
  %3610 = vmatpush1.bf16.msra.mxu0 %v3452
  %3611 = vmatprep.subr.bf16.mxu0 0
  %3612 = vmatpush1.bf16.msra.mxu0 %v3453
  %3613 = vmatprep.subr.bf16.mxu0 0
  %3614 = vmatpush1.bf16.msra.mxu0 %v3454
  %3615 = vmatprep.mubr.bf16.mxu0 %v2920
  %3616 = vmatmul.mubr.bf16.gmra.mrb[0].mxu0 %v2919
  %v3617 = vpop.f32.mrb[0].mxu0
  %v3618 = vadd.f32 %v3135, %v3617
  %v3619 = vpop.f32.mrb[0].mxu0
  %v3620 = vpop.f32.mrb[0].mxu0
  %v3621 = vadd.f32 %v3136, %v3620
  %v3622 = vpop.f32.mrb[0].mxu0
  %3623 = vmatprep.mubr.bf16.mxu0 %v2929
  %3624 = vmatmul.mubr.bf16.gmra.mrb[0].mxu0 %v2928
  %v3625 = vpop.f32.mrb[0].mxu0
  %v3626 = vadd.f32 %v3137, %v3625
  %v3627 = vpop.f32.mrb[0].mxu0
  %v3628 = vpop.f32.mrb[0].mxu0
  %v3629 = vadd.f32 %v3138, %v3628
  %v3630 = vpop.f32.mrb[0].mxu0
  %3631 = vmatprep.mubr.bf16.mxu0 %v2938
  %3632 = vmatmul.mubr.bf16.gmra.mrb[0].mxu0 %v2937
  %v3633 = vpop.f32.mrb[0].mxu0
  %v3634 = vadd.f32 %v3139, %v3633
  %v3635 = vpop.f32.mrb[0].mxu0
  %v3636 = vpop.f32.mrb[0].mxu0
  %v3637 = vadd.f32 %v3140, %v3636
  %v3638 = vpop.f32.mrb[0].mxu0
  %3639 = vmatprep.mubr.bf16.mxu0 %v2947
  %3640 = vmatmul.mubr.bf16.gmra.mrb[0].mxu0 %v2946
  %v3641 = vpop.f32.mrb[0].mxu0
  %v3642 = vadd.f32 %v3141, %v3641
  %v3643 = vpop.f32.mrb[0].mxu0
  %v3644 = vpop.f32.mrb[0].mxu0
  %v3645 = vadd.f32 %v3142, %v3644
  %v3646 = vpop.f32.mrb[0].mxu0
  %3647 = vmatprep.mubr.bf16.mxu0 %v2956
  %3648 = vmatmul.mubr.bf16.gmra.mrb[0].mxu0 %v2955
  %v3649 = vpop.f32.mrb[0].mxu0
  %v3650 = vadd.f32 %v3143, %v3649
  %v3651 = vpop.f32.mrb[0].mxu0
  %v3652 = vpop.f32.mrb[0].mxu0
  %v3653 = vadd.f32 %v3144, %v3652
  %v3654 = vpop.f32.mrb[0].mxu0
  %3655 = vmatprep.mubr.bf16.mxu0 %v2965
  %3656 = vmatmul.mubr.bf16.gmra.mrb[0].mxu0 %v2964
  %v3657 = vpop.f32.mrb[0].mxu0
  %v3658 = vadd.f32 %v3145, %v3657
  %v3659 = vpop.f32.mrb[0].mxu0
  %v3660 = vpop.f32.mrb[0].mxu0
  %v3661 = vadd.f32 %v3146, %v3660
  %v3662 = vpop.f32.mrb[0].mxu0
  %3663 = vmatprep.mubr.bf16.mxu0 %v2974
  %3664 = vmatmul.mubr.bf16.gmra.mrb[0].mxu0 %v2973
  %v3665 = vpop.f32.mrb[0].mxu0
  %v3666 = vadd.f32 %v3147, %v3665
  %v3667 = vpop.f32.mrb[0].mxu0
  %v3668 = vpop.f32.mrb[0].mxu0
  %v3669 = vadd.f32 %v3148, %v3668
  %v3670 = vpop.f32.mrb[0].mxu0
  %3671 = vmatprep.mubr.bf16.mxu0 %v2983
  %3672 = vmatmul.mubr.bf16.gmra.mrb[0].mxu0 %v2982
  %v3673 = vpop.f32.mrb[0].mxu0
  %v3674 = vadd.f32 %v3149, %v3673
  %v3675 = vpop.f32.mrb[0].mxu0
  %v3676 = vpop.f32.mrb[0].mxu0
  %v3677 = vadd.f32 %v3150, %v3676
  %v3678 = vpop.f32.mrb[0].mxu0
  %3679 = vdwg.mxu0
  %3680 = vmatprep.subr.bf16.mxu0 0
  %3681 = vmatpush1.bf16.msra.mxu0 %v3455
  %3682 = vmatprep.subr.bf16.mxu0 0
  %3683 = vmatpush1.bf16.msra.mxu0 %v3456
  %3684 = vmatprep.subr.bf16.mxu0 0
  %3685 = vmatpush1.bf16.msra.mxu0 %v3457
  %3686 = vmatprep.subr.bf16.mxu0 0
  %3687 = vmatpush1.bf16.msra.mxu0 %v3458
  %3688 = vmatprep.subr.bf16.mxu0 0
  %3689 = vmatpush1.bf16.msra.mxu0 %v3459
  %3690 = vmatprep.subr.bf16.mxu0 0
  %3691 = vmatpush1.bf16.msra.mxu0 %v3460
  %3692 = vmatprep.subr.bf16.mxu0 0
  %3693 = vmatpush1.bf16.msra.mxu0 %v3461
  %3694 = vmatprep.subr.bf16.mxu0 0
  %3695 = vmatpush1.bf16.msra.mxu0 %v3462
  %3696 = vmatprep.subr.bf16.mxu0 0
  %3697 = vmatpush1.bf16.msra.mxu0 %v3463
  %3698 = vmatprep.subr.bf16.mxu0 0
  %3699 = vmatpush1.bf16.msra.mxu0 %v3464
  %3700 = vmatprep.subr.bf16.mxu0 0
  %3701 = vmatpush1.bf16.msra.mxu0 %v3465
  %3702 = vmatprep.subr.bf16.mxu0 0
  %3703 = vmatpush1.bf16.msra.mxu0 %v3466
  %3704 = vmatprep.subr.bf16.mxu0 0
  %3705 = vmatpush1.bf16.msra.mxu0 %v3467
  %3706 = vmatprep.subr.bf16.mxu0 0
  %3707 = vmatpush1.bf16.msra.mxu0 %v3468
  %3708 = vmatprep.subr.bf16.mxu0 0
  %3709 = vmatpush1.bf16.msra.mxu0 %v3469
  %3710 = vmatprep.subr.bf16.mxu0 0
  %3711 = vmatpush1.bf16.msra.mxu0 %v3470
  %3712 = vmatprep.mubr.bf16.mxu0 %v2922
  %3713 = vmatmul.mubr.bf16.gmra.mrb[0].mxu0 %v2921
  %v3714 = vpop.f32.mrb[0].mxu0
  %v3715 = vadd.f32 %v3618, %v3714
  %v3716 = vpop.f32.mrb[0].mxu0
  %v3717 = vpop.f32.mrb[0].mxu0
  %v3718 = vadd.f32 %v3621, %v3717
  %v3719 = vpop.f32.mrb[0].mxu0
  %3720 = vmatprep.mubr.bf16.mxu0 %v2931
  %3721 = vmatmul.mubr.bf16.gmra.mrb[0].mxu0 %v2930
  %v3722 = vpop.f32.mrb[0].mxu0
  %v3723 = vadd.f32 %v3626, %v3722
  %v3724 = vpop.f32.mrb[0].mxu0
  %v3725 = vpop.f32.mrb[0].mxu0
  %v3726 = vadd.f32 %v3629, %v3725
  %v3727 = vpop.f32.mrb[0].mxu0
  %3728 = vmatprep.mubr.bf16.mxu0 %v2940
  %3729 = vmatmul.mubr.bf16.gmra.mrb[0].mxu0 %v2939
  %v3730 = vpop.f32.mrb[0].mxu0
  %v3731 = vadd.f32 %v3634, %v3730
  %v3732 = vpop.f32.mrb[0].mxu0
  %v3733 = vpop.f32.mrb[0].mxu0
  %v3734 = vadd.f32 %v3637, %v3733
  %v3735 = vpop.f32.mrb[0].mxu0
  %3736 = vmatprep.mubr.bf16.mxu0 %v2949
  %3737 = vmatmul.mubr.bf16.gmra.mrb[0].mxu0 %v2948
  %v3738 = vpop.f32.mrb[0].mxu0
  %v3739 = vadd.f32 %v3642, %v3738
  %v3740 = vpop.f32.mrb[0].mxu0
  %v3741 = vpop.f32.mrb[0].mxu0
  %v3742 = vadd.f32 %v3645, %v3741
  %v3743 = vpop.f32.mrb[0].mxu0
  %3744 = vmatprep.mubr.bf16.mxu0 %v2958
  %3745 = vmatmul.mubr.bf16.gmra.mrb[0].mxu0 %v2957
  %v3746 = vpop.f32.mrb[0].mxu0
  %v3747 = vadd.f32 %v3650, %v3746
  %v3748 = vpop.f32.mrb[0].mxu0
  %v3749 = vpop.f32.mrb[0].mxu0
  %v3750 = vadd.f32 %v3653, %v3749
  %v3751 = vpop.f32.mrb[0].mxu0
  %3752 = vmatprep.mubr.bf16.mxu0 %v2967
  %3753 = vmatmul.mubr.bf16.gmra.mrb[0].mxu0 %v2966
  %v3754 = vpop.f32.mrb[0].mxu0
  %v3755 = vadd.f32 %v3658, %v3754
  %v3756 = vpop.f32.mrb[0].mxu0
  %v3757 = vpop.f32.mrb[0].mxu0
  %v3758 = vadd.f32 %v3661, %v3757
  %v3759 = vpop.f32.mrb[0].mxu0
  %3760 = vmatprep.mubr.bf16.mxu0 %v2976
  %3761 = vmatmul.mubr.bf16.gmra.mrb[0].mxu0 %v2975
  %v3762 = vpop.f32.mrb[0].mxu0
  %v3763 = vadd.f32 %v3666, %v3762
  %v3764 = vpop.f32.mrb[0].mxu0
  %v3765 = vpop.f32.mrb[0].mxu0
  %v3766 = vadd.f32 %v3669, %v3765
  %v3767 = vpop.f32.mrb[0].mxu0
  %3768 = vmatprep.mubr.bf16.mxu0 %v2985
  %3769 = vmatmul.mubr.bf16.gmra.mrb[0].mxu0 %v2984
  %v3770 = vpop.f32.mrb[0].mxu0
  %v3771 = vadd.f32 %v3674, %v3770
  %v3772 = vpop.f32.mrb[0].mxu0
  %v3773 = vpop.f32.mrb[0].mxu0
  %v3774 = vadd.f32 %v3677, %v3773
  %v3775 = vpop.f32.mrb[0].mxu0
  %3776 = vdwg.mxu0
  %3777 = vmatprep.subr.bf16.mxu0 0
  %3778 = vmatpush1.bf16.msra.mxu0 %v3471
  %3779 = vmatprep.subr.bf16.mxu0 0
  %3780 = vmatpush1.bf16.msra.mxu0 %v3472
  %3781 = vmatprep.subr.bf16.mxu0 0
  %3782 = vmatpush1.bf16.msra.mxu0 %v3473
  %3783 = vmatprep.subr.bf16.mxu0 0
  %3784 = vmatpush1.bf16.msra.mxu0 %v3474
  %3785 = vmatprep.subr.bf16.mxu0 0
  %3786 = vmatpush1.bf16.msra.mxu0 %v3475
  %3787 = vmatprep.subr.bf16.mxu0 0
  %3788 = vmatpush1.bf16.msra.mxu0 %v3476
  %3789 = vmatprep.subr.bf16.mxu0 0
  %3790 = vmatpush1.bf16.msra.mxu0 %v3477
  %3791 = vmatprep.subr.bf16.mxu0 0
  %3792 = vmatpush1.bf16.msra.mxu0 %v3478
  %3793 = vmatprep.subr.bf16.mxu0 0
  %3794 = vmatpush1.bf16.msra.mxu0 %v3479
  %3795 = vmatprep.subr.bf16.mxu0 0
  %3796 = vmatpush1.bf16.msra.mxu0 %v3480
  %3797 = vmatprep.subr.bf16.mxu0 0
  %3798 = vmatpush1.bf16.msra.mxu0 %v3481
  %3799 = vmatprep.subr.bf16.mxu0 0
  %3800 = vmatpush1.bf16.msra.mxu0 %v3482
  %3801 = vmatprep.subr.bf16.mxu0 0
  %3802 = vmatpush1.bf16.msra.mxu0 %v3483
  %3803 = vmatprep.subr.bf16.mxu0 0
  %3804 = vmatpush1.bf16.msra.mxu0 %v3484
  %3805 = vmatprep.subr.bf16.mxu0 0
  %3806 = vmatpush1.bf16.msra.mxu0 %v3485
  %3807 = vmatprep.subr.bf16.mxu0 0
  %3808 = vmatpush1.bf16.msra.mxu0 %v3486
  %3809 = vmatprep.mubr.bf16.mxu0 %v2924
  %3810 = vmatmul.mubr.bf16.gmra.mrb[0].mxu0 %v2923
  %v3811 = vpop.f32.mrb[0].mxu0
  %v3812 = vadd.f32 %v3715, %v3811
  %v3813 = vpop.f32.mrb[0].mxu0
  %v3814 = vpop.f32.mrb[0].mxu0
  %v3815 = vadd.f32 %v3718, %v3814
  %v3816 = vpop.f32.mrb[0].mxu0
  %3817 = vmatprep.mubr.bf16.mxu0 %v2933
  %3818 = vmatmul.mubr.bf16.gmra.mrb[0].mxu0 %v2932
  %v3819 = vpop.f32.mrb[0].mxu0
  %v3820 = vadd.f32 %v3723, %v3819
  %v3821 = vpop.f32.mrb[0].mxu0
  %v3822 = vpop.f32.mrb[0].mxu0
  %v3823 = vadd.f32 %v3726, %v3822
  %v3824 = vpop.f32.mrb[0].mxu0
  %3825 = vmatprep.mubr.bf16.mxu0 %v2942
  %3826 = vmatmul.mubr.bf16.gmra.mrb[0].mxu0 %v2941
  %v3827 = vpop.f32.mrb[0].mxu0
  %v3828 = vadd.f32 %v3731, %v3827
  %v3829 = vpop.f32.mrb[0].mxu0
  %v3830 = vpop.f32.mrb[0].mxu0
  %v3831 = vadd.f32 %v3734, %v3830
  %v3832 = vpop.f32.mrb[0].mxu0
  %3833 = vmatprep.mubr.bf16.mxu0 %v2951
  %3834 = vmatmul.mubr.bf16.gmra.mrb[0].mxu0 %v2950
  %v3835 = vpop.f32.mrb[0].mxu0
  %v3836 = vadd.f32 %v3739, %v3835
  %v3837 = vpop.f32.mrb[0].mxu0
  %v3838 = vpop.f32.mrb[0].mxu0
  %v3839 = vadd.f32 %v3742, %v3838
  %v3840 = vpop.f32.mrb[0].mxu0
  %3841 = vmatprep.mubr.bf16.mxu0 %v2960
  %3842 = vmatmul.mubr.bf16.gmra.mrb[0].mxu0 %v2959
  %v3843 = vpop.f32.mrb[0].mxu0
  %v3844 = vadd.f32 %v3747, %v3843
  %v3845 = vpop.f32.mrb[0].mxu0
  %v3846 = vpop.f32.mrb[0].mxu0
  %v3847 = vadd.f32 %v3750, %v3846
  %v3848 = vpop.f32.mrb[0].mxu0
  %3849 = vmatprep.mubr.bf16.mxu0 %v2969
  %3850 = vmatmul.mubr.bf16.gmra.mrb[0].mxu0 %v2968
  %v3851 = vpop.f32.mrb[0].mxu0
  %v3852 = vadd.f32 %v3755, %v3851
  %v3853 = vpop.f32.mrb[0].mxu0
  %v3854 = vpop.f32.mrb[0].mxu0
  %v3855 = vadd.f32 %v3758, %v3854
  %v3856 = vpop.f32.mrb[0].mxu0
  %3857 = vmatprep.mubr.bf16.mxu0 %v2978
  %3858 = vmatmul.mubr.bf16.gmra.mrb[0].mxu0 %v2977
  %v3859 = vpop.f32.mrb[0].mxu0
  %v3860 = vadd.f32 %v3763, %v3859
  %v3861 = vpop.f32.mrb[0].mxu0
  %v3862 = vpop.f32.mrb[0].mxu0
  %v3863 = vadd.f32 %v3766, %v3862
  %v3864 = vpop.f32.mrb[0].mxu0
  %3865 = vmatprep.mubr.bf16.mxu0 %v2987
  %3866 = vmatmul.mubr.bf16.gmra.mrb[0].mxu0 %v2986
  %v3867 = vpop.f32.mrb[0].mxu0
  %v3868 = vadd.f32 %v3771, %v3867
  %v3869 = vpop.f32.mrb[0].mxu0
  %v3870 = vpop.f32.mrb[0].mxu0
  %v3871 = vadd.f32 %v3774, %v3870
  %v3872 = vpop.f32.mrb[0].mxu0
  %3873 = vdwg.mxu0
  %3874 = vmatprep.subr.bf16.mxu0 0
  %3875 = vmatpush1.bf16.msra.mxu0 %v3487
  %3876 = vmatprep.subr.bf16.mxu0 0
  %3877 = vmatpush1.bf16.msra.mxu0 %v3488
  %3878 = vmatprep.subr.bf16.mxu0 0
  %3879 = vmatpush1.bf16.msra.mxu0 %v3489
  %3880 = vmatprep.subr.bf16.mxu0 0
  %3881 = vmatpush1.bf16.msra.mxu0 %v3490
  %3882 = vmatprep.subr.bf16.mxu0 0
  %3883 = vmatpush1.bf16.msra.mxu0 %v3491
  %3884 = vmatprep.subr.bf16.mxu0 0
  %3885 = vmatpush1.bf16.msra.mxu0 %v3492
  %3886 = vmatprep.subr.bf16.mxu0 0
  %3887 = vmatpush1.bf16.msra.mxu0 %v3493
  %3888 = vmatprep.subr.bf16.mxu0 0
  %3889 = vmatpush1.bf16.msra.mxu0 %v3494
  %3890 = vmatprep.subr.bf16.mxu0 0
  %3891 = vmatpush1.bf16.msra.mxu0 %v3495
  %3892 = vmatprep.subr.bf16.mxu0 0
  %3893 = vmatpush1.bf16.msra.mxu0 %v3496
  %3894 = vmatprep.subr.bf16.mxu0 0
  %3895 = vmatpush1.bf16.msra.mxu0 %v3497
  %3896 = vmatprep.subr.bf16.mxu0 0
  %3897 = vmatpush1.bf16.msra.mxu0 %v3498
  %3898 = vmatprep.subr.bf16.mxu0 0
  %3899 = vmatpush1.bf16.msra.mxu0 %v3499
  %3900 = vmatprep.subr.bf16.mxu0 0
  %3901 = vmatpush1.bf16.msra.mxu0 %v3500
  %3902 = vmatprep.subr.bf16.mxu0 0
  %3903 = vmatpush1.bf16.msra.mxu0 %v3501
  %3904 = vmatprep.subr.bf16.mxu0 0
  %3905 = vmatpush1.bf16.msra.mxu0 %v3502
  %3906 = vmatprep.mubr.bf16.mxu0 %v2926
  %3907 = vmatmul.mubr.bf16.gmra.mrb[0].mxu0 %v2925
  %v3908 = vpop.f32.mrb[0].mxu0
  %v3909 = vadd.f32 %v3812, %v3908
  %v3910 = vpop.f32.mrb[0].mxu0
  %v3911 = vpop.f32.mrb[0].mxu0
  %v3912 = vadd.f32 %v3815, %v3911
  %v3913 = vpop.f32.mrb[0].mxu0
  %3914 = vmatprep.mubr.bf16.mxu0 %v2935
  %3915 = vmatmul.mubr.bf16.gmra.mrb[0].mxu0 %v2934
  %v3916 = vpop.f32.mrb[0].mxu0
  %v3917 = vadd.f32 %v3820, %v3916
  %v3918 = vpop.f32.mrb[0].mxu0
  %v3919 = vpop.f32.mrb[0].mxu0
  %v3920 = vadd.f32 %v3823, %v3919
  %v3921 = vpop.f32.mrb[0].mxu0
  %3922 = vmatprep.mubr.bf16.mxu0 %v2944
  %3923 = vmatmul.mubr.bf16.gmra.mrb[0].mxu0 %v2943
  %v3924 = vpop.f32.mrb[0].mxu0
  %v3925 = vadd.f32 %v3828, %v3924
  %v3926 = vpop.f32.mrb[0].mxu0
  %v3927 = vpop.f32.mrb[0].mxu0
  %v3928 = vadd.f32 %v3831, %v3927
  %v3929 = vpop.f32.mrb[0].mxu0
  %3930 = vmatprep.mubr.bf16.mxu0 %v2953
  %3931 = vmatmul.mubr.bf16.gmra.mrb[0].mxu0 %v2952
  %v3932 = vpop.f32.mrb[0].mxu0
  %v3933 = vadd.f32 %v3836, %v3932
  %v3934 = vpop.f32.mrb[0].mxu0
  %v3935 = vpop.f32.mrb[0].mxu0
  %v3936 = vadd.f32 %v3839, %v3935
  %v3937 = vpop.f32.mrb[0].mxu0
  %3938 = vmatprep.mubr.bf16.mxu0 %v2962
  %3939 = vmatmul.mubr.bf16.gmra.mrb[0].mxu0 %v2961
  %v3940 = vpop.f32.mrb[0].mxu0
  %v3941 = vadd.f32 %v3844, %v3940
  %v3942 = vpop.f32.mrb[0].mxu0
  %v3943 = vpop.f32.mrb[0].mxu0
  %v3944 = vadd.f32 %v3847, %v3943
  %v3945 = vpop.f32.mrb[0].mxu0
  %3946 = vmatprep.mubr.bf16.mxu0 %v2971
  %3947 = vmatmul.mubr.bf16.gmra.mrb[0].mxu0 %v2970
  %v3948 = vpop.f32.mrb[0].mxu0
  %v3949 = vadd.f32 %v3852, %v3948
  %v3950 = vpop.f32.mrb[0].mxu0
  %v3951 = vpop.f32.mrb[0].mxu0
  %v3952 = vadd.f32 %v3855, %v3951
  %v3953 = vpop.f32.mrb[0].mxu0
  %3954 = vmatprep.mubr.bf16.mxu0 %v2980
  %3955 = vmatmul.mubr.bf16.gmra.mrb[0].mxu0 %v2979
  %v3956 = vpop.f32.mrb[0].mxu0
  %v3957 = vadd.f32 %v3860, %v3956
  %v3958 = vpop.f32.mrb[0].mxu0
  %v3959 = vpop.f32.mrb[0].mxu0
  %v3960 = vadd.f32 %v3863, %v3959
  %v3961 = vpop.f32.mrb[0].mxu0
  %3962 = vmatprep.mubr.bf16.mxu0 %v2989
  %3963 = vmatmul.mubr.bf16.gmra.mrb[0].mxu0 %v2988
  %v3964 = vpop.f32.mrb[0].mxu0
  %v3965 = vadd.f32 %v3868, %v3964
  %v3966 = vpop.f32.mrb[0].mxu0
  %v3967 = vpop.f32.mrb[0].mxu0
  %v3968 = vadd.f32 %v3871, %v3967
  %v3969 = vpop.f32.mrb[0].mxu0
  %3970 = vdwg.mxu0
  %3971 = vmatprep.subr.bf16.mxu0 0
  %3972 = vmatpush1.bf16.msra.mxu0 %v3503
  %3973 = vmatprep.subr.bf16.mxu0 0
  %3974 = vmatpush1.bf16.msra.mxu0 %v3504
  %3975 = vmatprep.subr.bf16.mxu0 0
  %3976 = vmatpush1.bf16.msra.mxu0 %v3505
  %3977 = vmatprep.subr.bf16.mxu0 0
  %3978 = vmatpush1.bf16.msra.mxu0 %v3506
  %3979 = vmatprep.subr.bf16.mxu0 0
  %3980 = vmatpush1.bf16.msra.mxu0 %v3507
  %3981 = vmatprep.subr.bf16.mxu0 0
  %3982 = vmatpush1.bf16.msra.mxu0 %v3508
  %3983 = vmatprep.subr.bf16.mxu0 0
  %3984 = vmatpush1.bf16.msra.mxu0 %v3509
  %3985 = vmatprep.subr.bf16.mxu0 0
  %3986 = vmatpush1.bf16.msra.mxu0 %v3510
  %3987 = vmatprep.subr.bf16.mxu0 0
  %3988 = vmatpush1.bf16.msra.mxu0 0
  %3989 = vmatprep.subr.bf16.mxu0 0
  %3990 = vmatpush1.bf16.msra.mxu0 0
  %3991 = vmatprep.subr.bf16.mxu0 0
  %3992 = vmatpush1.bf16.msra.mxu0 0
  %3993 = vmatprep.subr.bf16.mxu0 0
  %3994 = vmatpush1.bf16.msra.mxu0 0
  %3995 = vmatprep.subr.bf16.mxu0 0
  %3996 = vmatpush1.bf16.msra.mxu0 0
  %3997 = vmatprep.subr.bf16.mxu0 0
  %3998 = vmatpush1.bf16.msra.mxu0 0
  %3999 = vmatprep.subr.bf16.mxu0 0
  %4000 = vmatpush1.bf16.msra.mxu0 0
  %4001 = vmatprep.subr.bf16.mxu0 0
  %4002 = vmatpush1.bf16.msra.mxu0 0
  %4003 = vmatprep.mubr.bf16.mxu0 0
  %4004 = vmatmul.mubr.bf16.gmra.mrb[0].mxu0 %v2927
  %v4005 = vpop.f32.mrb[0].mxu0
  %v4006 = vadd.f32 %v3909, %v4005
  %v4007 = vpop.f32.mrb[0].mxu0
  %v4008 = vpop.f32.mrb[0].mxu0
  %v4009 = vadd.f32 %v3912, %v4008
  %v4010 = vpop.f32.mrb[0].mxu0
  %4011 = vmatprep.mubr.bf16.mxu0 0
  %4012 = vmatmul.mubr.bf16.gmra.mrb[0].mxu0 %v2936
  %v4013 = vpop.f32.mrb[0].mxu0
  %v4014 = vadd.f32 %v3917, %v4013
  %v4015 = vpop.f32.mrb[0].mxu0
  %v4016 = vpop.f32.mrb[0].mxu0
  %v4017 = vadd.f32 %v3920, %v4016
  %v4018 = vpop.f32.mrb[0].mxu0
  %4019 = vmatprep.mubr.bf16.mxu0 0
  %4020 = vmatmul.mubr.bf16.gmra.mrb[0].mxu0 %v2945
  %v4021 = vpop.f32.mrb[0].mxu0
  %v4022 = vadd.f32 %v3925, %v4021
  %v4023 = vpop.f32.mrb[0].mxu0
  %v4024 = vpop.f32.mrb[0].mxu0
  %v4025 = vadd.f32 %v3928, %v4024
  %v4026 = vpop.f32.mrb[0].mxu0
  %4027 = vmatprep.mubr.bf16.mxu0 0
  %4028 = vmatmul.mubr.bf16.gmra.mrb[0].mxu0 %v2954
  %v4029 = vpop.f32.mrb[0].mxu0
  %v4030 = vadd.f32 %v3933, %v4029
  %v4031 = vpop.f32.mrb[0].mxu0
  %v4032 = vpop.f32.mrb[0].mxu0
  %v4033 = vadd.f32 %v3936, %v4032
  %v4034 = vpop.f32.mrb[0].mxu0
  %4035 = vmatprep.mubr.bf16.mxu0 0
  %4036 = vmatmul.mubr.bf16.gmra.mrb[0].mxu0 %v2963
  %v4037 = vpop.f32.mrb[0].mxu0
  %v4038 = vadd.f32 %v3941, %v4037
  %v4039 = vpop.f32.mrb[0].mxu0
  %v4040 = vpop.f32.mrb[0].mxu0
  %v4041 = vadd.f32 %v3944, %v4040
  %v4042 = vpop.f32.mrb[0].mxu0
  %4043 = vmatprep.mubr.bf16.mxu0 0
  %4044 = vmatmul.mubr.bf16.gmra.mrb[0].mxu0 %v2972
  %v4045 = vpop.f32.mrb[0].mxu0
  %v4046 = vadd.f32 %v3949, %v4045
  %v4047 = vpop.f32.mrb[0].mxu0
  %v4048 = vpop.f32.mrb[0].mxu0
  %v4049 = vadd.f32 %v3952, %v4048
  %v4050 = vpop.f32.mrb[0].mxu0
  %4051 = vmatprep.mubr.bf16.mxu0 0
  %4052 = vmatmul.mubr.bf16.gmra.mrb[0].mxu0 %v2981
  %v4053 = vpop.f32.mrb[0].mxu0
  %v4054 = vadd.f32 %v3957, %v4053
  %v4055 = vpop.f32.mrb[0].mxu0
  %v4056 = vpop.f32.mrb[0].mxu0
  %v4057 = vadd.f32 %v3960, %v4056
  %v4058 = vpop.f32.mrb[0].mxu0
  %4059 = vmatprep.mubr.bf16.mxu0 0
  %4060 = vmatmul.mubr.bf16.gmra.mrb[0].mxu0 %v2990
  %v4061 = vpop.f32.mrb[0].mxu0
  %v4062 = vadd.f32 %v3965, %v4061
  %v4063 = vpop.f32.mrb[0].mxu0
  %v4064 = vpop.f32.mrb[0].mxu0
  %v4065 = vadd.f32 %v3968, %v4064
  %v4066 = vpop.f32.mrb[0].mxu0
  %4067 = vdwg.mxu0
  %v4068 = vmax.f32 %v4006, 0.0
  %v4069 = vmax.f32 %v4009, 0.0
  %v4070 = vmax.f32 %v4014, 0.0
  %v4071 = vmax.f32 %v4017, 0.0
  %v4072 = vmax.f32 %v4022, 0.0
  %v4073 = vmax.f32 %v4025, 0.0
  %v4074 = vmax.f32 %v4030, 0.0
  %v4075 = vmax.f32 %v4033, 0.0
  %v4076 = vmax.f32 %v4038, 0.0
  %v4077 = vmax.f32 %v4041, 0.0
  %v4078 = vmax.f32 %v4046, 0.0
  %v4079 = vmax.f32 %v4049, 0.0
  %v4080 = vmax.f32 %v4054, 0.0
  %v4081 = vmax.f32 %v4057, 0.0
  %v4082 = vmax.f32 %v4062, 0.0
  %v4083 = vmax.f32 %v4065, 0.0
  %4084 = vst [vmem:[%s4] sm:$0xff] %v4068
  %4085 = vst [vmem:[%s4 + $0x8] sm:$0xff] %v4069
  %4086 = vst [vmem:[%s4 + $0x10] sm:$0xff] %v4070
  %4087 = vst [vmem:[%s4 + $0x18] sm:$0xff] %v4071
  %4088 = vst [vmem:[%s4 + $0x20] sm:$0xff] %v4072
  %4089 = vst [vmem:[%s4 + $0x28] sm:$0xff] %v4073
  %4090 = vst [vmem:[%s4 + $0x30] sm:$0xff] %v4074
  %4091 = vst [vmem:[%s4 + $0x38] sm:$0xff] %v4075
  %4092 = vst [vmem:[%s4 + $0x40] sm:$0xff] %v4076
  %4093 = vst [vmem:[%s4 + $0x48] sm:$0xff] %v4077
  %4094 = vst [vmem:[%s4 + $0x50] sm:$0xff] %v4078
  %4095 = vst [vmem:[%s4 + $0x58] sm:$0xff] %v4079
  %4096 = vst [vmem:[%s4 + $0x60] sm:$0xff] %v4080
  %4097 = vst [vmem:[%s4 + $0x68] sm:$0xff] %v4081
  %4098 = vst [vmem:[%s4 + $0x70] sm:$0xff] %v4082
  %4099 = vst [vmem:[%s4 + $0x78] sm:$0xff] %v4083
  // Predicated region
  $region18: #{resnet_block_forward.1} parent=0 // pred_check
    _
  $region19: #{resnet_block_forward.1} parent=0 // pred_check_branch
    %4101 = sbr.rel (0) target = $region21
  $region20: #{resnet_block_forward.1} parent=0 // pred_region
    _
  $region21: #{resnet_block_forward.1} parent=0 // pred_fallthru
    _
  // Predicated region
  $region22: #{resnet_block_forward.1} parent=0 // pred_check
    _
  $region23: #{resnet_block_forward.1} parent=0 // pred_check_branch
    %4103 = sbr.rel (0) target = $region25
  $region24: #{resnet_block_forward.1} parent=0 // pred_region
    _
  $region25: #{resnet_block_forward.1} parent=0 // pred_fallthru
    _

</llo_original>
